<compile_context>
chip_gen: v7x
topology: tpu7x:2x2x1
jax: 0.10.0
libtpu: 0.0.40
codegen_flags: <defaults>
</compile_context>

<pallas_src>
import jax
import jax.numpy as jnp
from jax.experimental import pallas as pl
from jax.experimental.pallas import tpu as pltpu


# ---------------------------------------------------------------------------
# Kernel 1: per-point stage (Conv1/BN1 -> Conv2/BN2 -> Conv16/BN16 -> max_N).
# ---------------------------------------------------------------------------
def pointwise_kernel(x_ref,
                     w1_ref, b1_ref, w2_ref, b2_ref, w3_ref, b3_ref,
                     g_ref):
    bt, n, k = x_ref.shape
    # Flatten the batch tile so the three 1x1-conv layers run as one tall
    # (Bt*N, k) GEMM that fills the MXU rows (leading-dim merge: layout no-op).
    x = x_ref[...].reshape(bt * n, k)                                   # bf16

    h = jnp.dot(x, w1_ref[...], preferred_element_type=jnp.float32) + b1_ref[...]
    h = jnp.maximum(h, 0.0).astype(jnp.bfloat16)                        # (Bt*N, k)
    h = jnp.dot(h, w2_ref[...], preferred_element_type=jnp.float32) + b2_ref[...]
    h = jnp.maximum(h, 0.0).astype(jnp.bfloat16)                        # (Bt*N, 2k)
    h = jnp.dot(h, w3_ref[...], preferred_element_type=jnp.float32) + b3_ref[...]
    h = jnp.maximum(h, 0.0)                                             # (Bt*N, 16k) f32

    # torch.max(x, dim=2): max over points, per batch element.  Cast to
    # g_ref.dtype (bf16 by default) BEFORE the max: rounding is monotonic so
    # max(cast(x)) == cast(max(x)), and the big (Bt*N, 16k) tensor moves at
    # half the vreg / load / store traffic.
    h = h.astype(g_ref.dtype)
    g_ref[...] = jnp.max(h.reshape(bt, n, h.shape[-1]), axis=1)         # (Bt, 16k)


# ---------------------------------------------------------------------------
# Kernel 2: MLP head (Mlp16/BN8 -> Mlp8/BN4 -> Mlp4 + I), batched at M = B.
# ---------------------------------------------------------------------------
def head_kernel(g_ref, w4_ref, b4_ref, w5_ref, b5_ref, w6_ref, b6_ref, out_ref):
    g = g_ref[...].astype(jnp.bfloat16)                                 # (B, 16k)
    h = jnp.dot(g, w4_ref[...], preferred_element_type=jnp.float32) + b4_ref[...]
    h = jnp.maximum(h, 0.0).astype(jnp.bfloat16)                        # (B, 8k)
    h = jnp.dot(h, w5_ref[...], preferred_element_type=jnp.float32) + b5_ref[...]
    h = jnp.maximum(h, 0.0).astype(jnp.bfloat16)                        # (B, 4k)
    # Mlp4 (no BN, no ReLU); the flattened identity is folded into b6.
    out = jnp.dot(h, w6_ref[...], preferred_element_type=jnp.float32) + b6_ref[...]
    out_ref[...] = out.astype(out_ref.dtype)                            # (B, k*k)


# ---------------------------------------------------------------------------
# Tiling / spec helpers.
# ---------------------------------------------------------------------------
def _pick_batch_tile(B, N, k, *, target_m=256, min_grid_steps=1,
                     act_budget_bytes=12 * 1024 * 1024):
    """Pick the per-grid-step batch tile Bt for the per-point kernel.

    * Bt*N >= target_m so the per-point GEMMs fill the MXU rows (256 on
      v6e/v7x; 128 is already enough on v5e's 128-row MXU).
    * Bounded by a VMEM budget for the (Bt*N, 16k) layer-3 activation.
    * min_grid_steps=2 only matters on v7x (2 TensorCores per chip); on
      v5e/v6e leave it at 1 so Bt can grow to the whole batch.
    * Bt divides B and (Bt % 8 == 0 or Bt == B) so the 2-D (Bt, 16k) pooled
      output block keeps sublane-dense, unmasked stores.
    """
    # Rough per-row activation bytes of the flattened per-point stage
    # (f32 accumulator + bf16 copy per layer); dominated by the 16k layer.
    bytes_per_row = (16 * k) * (4 + 2) + (2 * k) * (4 + 2) + k * (4 + 2)
    max_rows = max(N, act_budget_bytes // max(1, bytes_per_row))
    cap = max(1, B // max(1, min_grid_steps))

    divisors = [d for d in range(1, B + 1) if B % d == 0 and d <= cap]
    aligned = [d for d in divisors if d % 8 == 0 or d == B]
    candidates = aligned if aligned else divisors

    within = [d for d in candidates if d * N <= max_rows]
    if not within:
        return min(candidates)
    hits = [d for d in within if d * N >= target_m]
    return min(hits) if hits else max(within)


def _const_specs(consts, single_buffer):
    # Constant index_map -> the block never changes, so there is nothing to
    # pipeline: request a single VMEM buffer to halve the weight footprint.
    pipeline_mode = pl.Buffered(1) if single_buffer else None
    return [pl.BlockSpec(p.shape, lambda b_: (0, 0), pipeline_mode=pipeline_mode)
            for p in consts]


def _pointwise_call(x, consts, B, N, k, bt, g_dtype, single_buffer_consts):
    in_specs = ([pl.BlockSpec((bt, N, k), lambda b_: (b_, 0, 0))]
                + _const_specs(consts, single_buffer_consts))
    out_specs = pl.BlockSpec((bt, 16 * k), lambda b_: (b_, 0))

    flops = 2 * B * N * (k * k + k * 2 * k + 2 * k * 16 * k)
    bytes_accessed = (int(x.size) * x.dtype.itemsize
                      + sum(int(p.size) * p.dtype.itemsize for p in consts)
                      + B * 16 * k * jnp.dtype(g_dtype).itemsize)
    cost = pl.CostEstimate(flops=int(flops), transcendentals=0,
                           bytes_accessed=int(bytes_accessed))

    return pl.pallas_call(
        pointwise_kernel,
        out_shape=jax.ShapeDtypeStruct((B, 16 * k), g_dtype),
        grid_spec=pltpu.PrefetchScalarGridSpec(
            num_scalar_prefetch=0,
            grid=(B // bt,),
            in_specs=in_specs,
            out_specs=out_specs,
        ),
        compiler_params=pltpu.CompilerParams(
            dimension_semantics=("parallel",),
            vmem_limit_bytes=32 * 1024 * 1024,
        ),
        cost_estimate=cost,
    )(x, *consts)


def _head_call(g, consts, B, k):
    flops = 2 * B * (16 * k * 8 * k + 8 * k * 4 * k + 4 * k * k * k)
    bytes_accessed = (int(g.size) * g.dtype.itemsize
                      + sum(int(p.size) * p.dtype.itemsize for p in consts)
                      + B * k * k * 4)
    cost = pl.CostEstimate(flops=int(flops), transcendentals=0,
                           bytes_accessed=int(bytes_accessed))
    # Single invocation, whole arrays in VMEM (working set ~6 MiB at k=64).
    return pl.pallas_call(
        head_kernel,
        out_shape=jax.ShapeDtypeStruct((B, k * k), jnp.float32),
        compiler_params=pltpu.CompilerParams(vmem_limit_bytes=32 * 1024 * 1024),
        cost_estimate=cost,
    )(g, *consts)


# ---------------------------------------------------------------------------
# Public wrapper.
# ---------------------------------------------------------------------------
def spatial_transformer_pallas(x_nck, params, k, *, batch_tile=None,
                               target_m=256, min_grid_steps=1,
                               epilogue_dtype=jnp.bfloat16):
    """x_nck: (B, k, N) float32, matching the PyTorch module's input layout.

    On v5e prefer epilogue_dtype=jnp.float32 (no native bf16 VPU) and
    target_m=128; on v7x pass min_grid_steps=2 so both TensorCores get work.
    """
    B, C, N = x_nck.shape
    assert C == k

    # TODO(synk): for very large point clouds, fuse this transpose + bf16 cast
    # into the kernel (contract k directly against the (B, k, N) layout) to
    # avoid an extra HBM round trip; negligible at small N.
    x = jnp.transpose(x_nck, (0, 2, 1)).astype(jnp.bfloat16)            # (B, N, k)

    # Pad the point axis to a multiple of 16 (bf16 sublane pack) by repeating
    # the last point: keeps the in-kernel reshapes layout no-ops and leaves
    # the max-over-points result unchanged.
    pad = (-N) % 16
    if pad:
        x = jnp.concatenate(
            [x, jnp.broadcast_to(x[:, N - 1:N, :], (B, pad, k))], axis=1)
    Np = N + pad

    if batch_tile is None:
        bt = _pick_batch_tile(B, Np, k, target_m=target_m,
                              min_grid_steps=min_grid_steps)
    else:
        bt = batch_tile
    assert B % bt == 0, "batch_tile must divide the batch size"

    (w1, b1, w2, b2, w3, b3, w4, b4, w5, b5, w6, b6) = params
    # Fold the "+ I" into the last bias (constant folding, saves an input).
    b6_eff = b6 + jnp.eye(k, dtype=jnp.float32).reshape(1, k * k)

    pw_consts = (w1.astype(jnp.bfloat16), b1,
                 w2.astype(jnp.bfloat16), b2,
                 w3.astype(jnp.bfloat16), b3)
    head_consts = (w4.astype(jnp.bfloat16), b4,
                   w5.astype(jnp.bfloat16), b5,
                   w6.astype(jnp.bfloat16), b6_eff)

    try:
        g = _pointwise_call(x, pw_consts, B, Np, k, bt, epilogue_dtype, True)
    except Exception:
        # Fallback if this Pallas build does not lower pipeline_mode=Buffered(1)
        # on constant blocks; semantics are identical, only VMEM use differs.
        g = _pointwise_call(x, pw_consts, B, Np, k, bt, epilogue_dtype, False)

    out = _head_call(g, head_consts, B, k)
    return out.reshape(B, k, k)


# ---------------------------------------------------------------------------
# Parameter construction + pure-JAX reference (eval-mode BN folded).
# ---------------------------------------------------------------------------
def make_params(key, k):
    """Deterministic synthetic parameters; BN (eval mode) folded into (W, b)."""
    eps = 1e-5

    def linear_init(ki, in_c, out_c):
        kw, kb = jax.random.split(ki)
        bound = 1.0 / jnp.sqrt(jnp.float32(in_c))
        W = jax.random.uniform(kw, (out_c, in_c), jnp.float32, -bound, bound)
        b = jax.random.uniform(kb, (out_c,), jnp.float32, -bound, bound)
        return W, b

    def bn_init(ki, c):
        k1, k2, k3, k4 = jax.random.split(ki, 4)
        gamma = 1.0 + 0.1 * jax.random.normal(k1, (c,), jnp.float32)
        beta = 0.1 * jax.random.normal(k2, (c,), jnp.float32)
        mean = 0.1 * jax.random.normal(k3, (c,), jnp.float32)
        var = jnp.abs(jax.random.normal(k4, (c,), jnp.float32)) + 0.5
        return gamma, beta, mean, var

    def fold(W, b, bn):
        gamma, beta, mean, var = bn
        scale = gamma / jnp.sqrt(var + eps)
        W_eff = (W * scale[:, None]).T                 # (in, out)
        b_eff = (b - mean) * scale + beta              # (out,)
        return W_eff, b_eff.reshape(1, -1)

    keys = jax.random.split(key, 12)
    layers = [
        (k,      k),       # Conv1  + BN1
        (k,      2 * k),   # Conv2  + BN2
        (2 * k,  16 * k),  # Conv16 + BN16
        (16 * k, 8 * k),   # Mlp16  + BN8
        (8 * k,  4 * k),   # Mlp8   + BN4
    ]
    params = []
    for i, (cin, cout) in enumerate(layers):
        W, b = linear_init(keys[2 * i], cin, cout)
        bn = bn_init(keys[2 * i + 1], cout)
        params.extend(fold(W, b, bn))
    # Mlp4: no BN
    W6, b6 = linear_init(keys[10], 4 * k, k * k)
    params.extend([W6.T, b6.reshape(1, -1)])
    return tuple(params)


def spatial_transformer_ref(x_nck, params, k, dtype=jnp.float32):
    """Pure-JAX reference of the same (BN-folded, eval-mode) forward pass.

    dtype controls the matmul-operand precision so the kernel's bf16-on-MXU
    math can be reproduced exactly; accumulation is always f32."""
    (w1, b1, w2, b2, w3, b3, w4, b4, w5, b5, w6, b6) = params
    B = x_nck.shape[0]
    x = jnp.transpose(x_nck, (0, 2, 1))                            # (B, N, k)

    def mm(a, w):
        return jnp.dot(a.astype(dtype), w.astype(dtype),
                       preferred_element_type=jnp.float32)

    h = jax.nn.relu(mm(x, w1) + b1)
    h = jax.nn.relu(mm(h, w2) + b2)
    h = jax.nn.relu(mm(h, w3) + b3)                                # (B, N, 16k)
    g = jnp.max(h, axis=1)                                         # (B, 16k)
    g = jax.nn.relu(mm(g, w4) + b4)
    g = jax.nn.relu(mm(g, w5) + b5)
    out = mm(g, w6) + b6                                           # (B, k*k)
    out = out + jnp.eye(k, dtype=jnp.float32).reshape(1, k * k)
    return out.reshape(B, k, k)


if __name__ == "__main__":
    k = 64          # module default
    B = 8           # small batch -> Bt = 8, Bt*N = 128 rows per GEMM
    N = 16          # number of points

    key = jax.random.PRNGKey(0)
    kx, kp = jax.random.split(key)
    x = jax.random.normal(kx, (B, k, N), jnp.float32)   # PyTorch layout (B, k, N)
    params = make_params(kp, k)

    out = spatial_transformer_pallas(x, params, k)
    out = jax.block_until_ready(out)
    assert out.shape == (B, k, k)

    # Tight check against a reference using the same bf16-operand / f32-accum math.
    ref_bf16 = spatial_transformer_ref(x, params, k, dtype=jnp.bfloat16)
    assert jnp.allclose(out, ref_bf16, rtol=2e-2, atol=2e-2), "mismatch vs bf16 reference"

    # Looser sanity check against the full-f32 eval-mode reference.
    ref_f32 = spatial_transformer_ref(x, params, k, dtype=jnp.float32)
    assert jnp.allclose(out, ref_f32, rtol=5e-2, atol=5e-2), "mismatch vs f32 reference"

    print("KERNEL_OK")
</pallas_src>

<mosaic_0001>
module attributes {stable_mosaic.version = 11 : i64} {
  func.func @pointwise_kernel(%arg0: i32, %arg1: memref<8x16x64xbf16, #tpu.memory_space<vmem>>, %arg2: memref<64x64xbf16, #tpu.memory_space<vmem>>, %arg3: memref<1x64xf32, #tpu.memory_space<vmem>>, %arg4: memref<64x128xbf16, #tpu.memory_space<vmem>>, %arg5: memref<1x128xf32, #tpu.memory_space<vmem>>, %arg6: memref<128x1024xbf16, #tpu.memory_space<vmem>>, %arg7: memref<1x1024xf32, #tpu.memory_space<vmem>>, %arg8: memref<8x1024xbf16, #tpu.memory_space<vmem>>) attributes {dimension_semantics = [#tpu.dimension_semantics<parallel>], iteration_bounds = array<i64: 1>, scalar_prefetch = 0 : i64, scratch_operands = 0 : i64, tpu.core_type = #tpu.core_type<tc>, window_params = [{transform_indices = @transform_0, window_bounds = array<i64: 8, 16, 64>}, {pipeline_mode = #tpu.pipeline_mode<synchronous>, transform_indices = @transform_1, window_bounds = array<i64: 64, 64>}, {pipeline_mode = #tpu.pipeline_mode<synchronous>, transform_indices = @transform_2, window_bounds = array<i64: 1, 64>}, {pipeline_mode = #tpu.pipeline_mode<synchronous>, transform_indices = @transform_3, window_bounds = array<i64: 64, 128>}, {pipeline_mode = #tpu.pipeline_mode<synchronous>, transform_indices = @transform_4, window_bounds = array<i64: 1, 128>}, {pipeline_mode = #tpu.pipeline_mode<synchronous>, transform_indices = @transform_5, window_bounds = array<i64: 128, 1024>}, {pipeline_mode = #tpu.pipeline_mode<synchronous>, transform_indices = @transform_6, window_bounds = array<i64: 1, 1024>}, {transform_indices = @transform_7, window_bounds = array<i64: 8, 1024>}]} {
    %c0 = arith.constant 0 : index
    %c0_0 = arith.constant 0 : index
    %c0_1 = arith.constant 0 : index
    %0 = vector.load %arg1[%c0, %c0_0, %c0_1] : memref<8x16x64xbf16, #tpu.memory_space<vmem>>, vector<8x16x64xbf16>
    %1 = vector.shape_cast %0 : vector<8x16x64xbf16> to vector<128x64xbf16>
    %c0_2 = arith.constant 0 : index
    %c0_3 = arith.constant 0 : index
    %2 = vector.load %arg2[%c0_2, %c0_3] : memref<64x64xbf16, #tpu.memory_space<vmem>>, vector<64x64xbf16>
    %cst = arith.constant dense<0.000000e+00> : vector<128x64xf32>
    %3 = tpu.matmul %1, %2, %cst {dimension_numbers = #tpu.dot_dimension_numbers<[1], [0], [0], [1], [0, 0, 1, 1], [], []>} : vector<128x64xbf16>, vector<64x64xbf16>, vector<128x64xf32> -> vector<128x64xf32>
    %c0_4 = arith.constant 0 : index
    %c0_5 = arith.constant 0 : index
    %4 = vector.load %arg3[%c0_4, %c0_5] : memref<1x64xf32, #tpu.memory_space<vmem>>, vector<1x64xf32>
    %5 = vector.broadcast %4 : vector<1x64xf32> to vector<128x64xf32>
    %6 = arith.addf %3, %5 : vector<128x64xf32>
    %cst_6 = arith.constant 0.000000e+00 : f32
    %7 = vector.broadcast %cst_6 : f32 to vector<128x64xf32>
    %8 = arith.maximumf %6, %7 : vector<128x64xf32>
    %9 = arith.truncf %8 : vector<128x64xf32> to vector<128x64xbf16>
    %c0_7 = arith.constant 0 : index
    %c0_8 = arith.constant 0 : index
    %10 = vector.load %arg4[%c0_7, %c0_8] : memref<64x128xbf16, #tpu.memory_space<vmem>>, vector<64x128xbf16>
    %cst_9 = arith.constant dense<0.000000e+00> : vector<128x128xf32>
    %11 = tpu.matmul %9, %10, %cst_9 {dimension_numbers = #tpu.dot_dimension_numbers<[1], [0], [0], [1], [0, 0, 1, 1], [], []>} : vector<128x64xbf16>, vector<64x128xbf16>, vector<128x128xf32> -> vector<128x128xf32>
    %c0_10 = arith.constant 0 : index
    %c0_11 = arith.constant 0 : index
    %12 = vector.load %arg5[%c0_10, %c0_11] : memref<1x128xf32, #tpu.memory_space<vmem>>, vector<1x128xf32>
    %13 = vector.broadcast %12 : vector<1x128xf32> to vector<128x128xf32>
    %14 = arith.addf %11, %13 : vector<128x128xf32>
    %cst_12 = arith.constant 0.000000e+00 : f32
    %15 = vector.broadcast %cst_12 : f32 to vector<128x128xf32>
    %16 = arith.maximumf %14, %15 : vector<128x128xf32>
    %17 = arith.truncf %16 : vector<128x128xf32> to vector<128x128xbf16>
    %c0_13 = arith.constant 0 : index
    %c0_14 = arith.constant 0 : index
    %18 = vector.load %arg6[%c0_13, %c0_14] : memref<128x1024xbf16, #tpu.memory_space<vmem>>, vector<128x1024xbf16>
    %cst_15 = arith.constant dense<0.000000e+00> : vector<128x1024xf32>
    %19 = tpu.matmul %17, %18, %cst_15 {dimension_numbers = #tpu.dot_dimension_numbers<[1], [0], [0], [1], [0, 0, 1, 1], [], []>} : vector<128x128xbf16>, vector<128x1024xbf16>, vector<128x1024xf32> -> vector<128x1024xf32>
    %c0_16 = arith.constant 0 : index
    %c0_17 = arith.constant 0 : index
    %20 = vector.load %arg7[%c0_16, %c0_17] : memref<1x1024xf32, #tpu.memory_space<vmem>>, vector<1x1024xf32>
    %21 = vector.broadcast %20 : vector<1x1024xf32> to vector<128x1024xf32>
    %22 = arith.addf %19, %21 : vector<128x1024xf32>
    %cst_18 = arith.constant 0.000000e+00 : f32
    %23 = vector.broadcast %cst_18 : f32 to vector<128x1024xf32>
    %24 = arith.maximumf %22, %23 : vector<128x1024xf32>
    %25 = arith.truncf %24 : vector<128x1024xf32> to vector<128x1024xbf16>
    %26 = vector.shape_cast %25 : vector<128x1024xbf16> to vector<8x16x1024xbf16>
    %cst_19 = arith.constant dense<0xFF80> : vector<8x1024xbf16>
    %27 = vector.multi_reduction <maximumf>, %26, %cst_19 [1] : vector<8x16x1024xbf16> to vector<8x1024xbf16>
    %c0_20 = arith.constant 0 : index
    %c0_21 = arith.constant 0 : index
    %28 = vector.load %arg8[%c0_20, %c0_21] : memref<8x1024xbf16, #tpu.memory_space<vmem>>, vector<8x1024xbf16>
    tpu.vector_store %arg8[%c0_20, %c0_21], %27 {strides = array<i32>} : memref<8x1024xbf16, #tpu.memory_space<vmem>>, vector<8x1024xbf16>,
    return
  }
  func.func @transform_0(%arg0: i32) -> (i32, i32, i32) {
    %c0_i32 = arith.constant 0 : i32
    %c0_i32_0 = arith.constant 0 : i32
    %c0_i32_1 = arith.constant 0 : i32
    return %arg0, %c0_i32, %c0_i32_0 : i32, i32, i32
  }
  func.func @transform_1(%arg0: i32) -> (i32, i32) {
    %c0_i32 = arith.constant 0 : i32
    %c0_i32_0 = arith.constant 0 : i32
    %c0_i32_1 = arith.constant 0 : i32
    return %c0_i32, %c0_i32_0 : i32, i32
  }
  func.func @transform_2(%arg0: i32) -> (i32, i32) {
    %c0_i32 = arith.constant 0 : i32
    %c0_i32_0 = arith.constant 0 : i32
    %c0_i32_1 = arith.constant 0 : i32
    return %c0_i32, %c0_i32_0 : i32, i32
  }
  func.func @transform_3(%arg0: i32) -> (i32, i32) {
    %c0_i32 = arith.constant 0 : i32
    %c0_i32_0 = arith.constant 0 : i32
    %c0_i32_1 = arith.constant 0 : i32
    return %c0_i32, %c0_i32_0 : i32, i32
  }
  func.func @transform_4(%arg0: i32) -> (i32, i32) {
    %c0_i32 = arith.constant 0 : i32
    %c0_i32_0 = arith.constant 0 : i32
    %c0_i32_1 = arith.constant 0 : i32
    return %c0_i32, %c0_i32_0 : i32, i32
  }
  func.func @transform_5(%arg0: i32) -> (i32, i32) {
    %c0_i32 = arith.constant 0 : i32
    %c0_i32_0 = arith.constant 0 : i32
    %c0_i32_1 = arith.constant 0 : i32
    return %c0_i32, %c0_i32_0 : i32, i32
  }
  func.func @transform_6(%arg0: i32) -> (i32, i32) {
    %c0_i32 = arith.constant 0 : i32
    %c0_i32_0 = arith.constant 0 : i32
    %c0_i32_1 = arith.constant 0 : i32
    return %c0_i32, %c0_i32_0 : i32, i32
  }
  func.func @transform_7(%arg0: i32) -> (i32, i32) {
    %c0_i32 = arith.constant 0 : i32
    %c0_i32_0 = arith.constant 0 : i32
    return %arg0, %c0_i32 : i32, i32
  }
}

module attributes {stable_mosaic.version = 11 : i64} {
  func.func @pointwise_kernel(%arg0: i32, %arg1: memref<8x16x64xbf16, #tpu.memory_space<vmem>>, %arg2: memref<64x64xbf16, #tpu.memory_space<vmem>>, %arg3: memref<1x64xf32, #tpu.memory_space<vmem>>, %arg4: memref<64x128xbf16, #tpu.memory_space<vmem>>, %arg5: memref<1x128xf32, #tpu.memory_space<vmem>>, %arg6: memref<128x1024xbf16, #tpu.memory_space<vmem>>, %arg7: memref<1x1024xf32, #tpu.memory_space<vmem>>, %arg8: memref<8x1024xbf16, #tpu.memory_space<vmem>>) attributes {dimension_semantics = [#tpu.dimension_semantics<parallel>], iteration_bounds = array<i64: 1>, scalar_prefetch = 0 : i64, scratch_operands = 0 : i64, tpu.core_type = #tpu.core_type<tc>, window_params = [{transform_indices = @transform_0, window_bounds = array<i64: 8, 16, 64>}, {pipeline_mode = #tpu.pipeline_mode<synchronous>, transform_indices = @transform_1, window_bounds = array<i64: 64, 64>}, {pipeline_mode = #tpu.pipeline_mode<synchronous>, transform_indices = @transform_2, window_bounds = array<i64: 1, 64>}, {pipeline_mode = #tpu.pipeline_mode<synchronous>, transform_indices = @transform_3, window_bounds = array<i64: 64, 128>}, {pipeline_mode = #tpu.pipeline_mode<synchronous>, transform_indices = @transform_4, window_bounds = array<i64: 1, 128>}, {pipeline_mode = #tpu.pipeline_mode<synchronous>, transform_indices = @transform_5, window_bounds = array<i64: 128, 1024>}, {pipeline_mode = #tpu.pipeline_mode<synchronous>, transform_indices = @transform_6, window_bounds = array<i64: 1, 1024>}, {transform_indices = @transform_7, window_bounds = array<i64: 8, 1024>}]} {
    %c0 = arith.constant 0 : index
    %c0_0 = arith.constant 0 : index
    %c0_1 = arith.constant 0 : index
    %0 = vector.load %arg1[%c0, %c0_0, %c0_1] : memref<8x16x64xbf16, #tpu.memory_space<vmem>>, vector<8x16x64xbf16>
    %1 = vector.shape_cast %0 : vector<8x16x64xbf16> to vector<128x64xbf16>
    %c0_2 = arith.constant 0 : index
    %c0_3 = arith.constant 0 : index
    %2 = vector.load %arg2[%c0_2, %c0_3] : memref<64x64xbf16, #tpu.memory_space<vmem>>, vector<64x64xbf16>
    %cst = arith.constant dense<0.000000e+00> : vector<128x64xf32>
    %3 = tpu.matmul %1, %2, %cst {dimension_numbers = #tpu.dot_dimension_numbers<[1], [0], [0], [1], [0, 0, 1, 1], [], []>} : vector<128x64xbf16>, vector<64x64xbf16>, vector<128x64xf32> -> vector<128x64xf32>
    %c0_4 = arith.constant 0 : index
    %c0_5 = arith.constant 0 : index
    %4 = vector.load %arg3[%c0_4, %c0_5] : memref<1x64xf32, #tpu.memory_space<vmem>>, vector<1x64xf32>
    %5 = vector.broadcast %4 : vector<1x64xf32> to vector<128x64xf32>
    %6 = arith.addf %3, %5 : vector<128x64xf32>
    %cst_6 = arith.constant 0.000000e+00 : f32
    %7 = vector.broadcast %cst_6 : f32 to vector<128x64xf32>
    %8 = arith.maximumf %6, %7 : vector<128x64xf32>
    %9 = arith.truncf %8 : vector<128x64xf32> to vector<128x64xbf16>
    %c0_7 = arith.constant 0 : index
    %c0_8 = arith.constant 0 : index
    %10 = vector.load %arg4[%c0_7, %c0_8] : memref<64x128xbf16, #tpu.memory_space<vmem>>, vector<64x128xbf16>
    %cst_9 = arith.constant dense<0.000000e+00> : vector<128x128xf32>
    %11 = tpu.matmul %9, %10, %cst_9 {dimension_numbers = #tpu.dot_dimension_numbers<[1], [0], [0], [1], [0, 0, 1, 1], [], []>} : vector<128x64xbf16>, vector<64x128xbf16>, vector<128x128xf32> -> vector<128x128xf32>
    %c0_10 = arith.constant 0 : index
    %c0_11 = arith.constant 0 : index
    %12 = vector.load %arg5[%c0_10, %c0_11] : memref<1x128xf32, #tpu.memory_space<vmem>>, vector<1x128xf32>
    %13 = vector.broadcast %12 : vector<1x128xf32> to vector<128x128xf32>
    %14 = arith.addf %11, %13 : vector<128x128xf32>
    %cst_12 = arith.constant 0.000000e+00 : f32
    %15 = vector.broadcast %cst_12 : f32 to vector<128x128xf32>
    %16 = arith.maximumf %14, %15 : vector<128x128xf32>
    %17 = arith.truncf %16 : vector<128x128xf32> to vector<128x128xbf16>
    %c0_13 = arith.constant 0 : index
    %c0_14 = arith.constant 0 : index
    %18 = vector.load %arg6[%c0_13, %c0_14] : memref<128x1024xbf16, #tpu.memory_space<vmem>>, vector<128x1024xbf16>
    %cst_15 = arith.constant dense<0.000000e+00> : vector<128x1024xf32>
    %19 = tpu.matmul %17, %18, %cst_15 {dimension_numbers = #tpu.dot_dimension_numbers<[1], [0], [0], [1], [0, 0, 1, 1], [], []>} : vector<128x128xbf16>, vector<128x1024xbf16>, vector<128x1024xf32> -> vector<128x1024xf32>
    %c0_16 = arith.constant 0 : index
    %c0_17 = arith.constant 0 : index
    %20 = vector.load %arg7[%c0_16, %c0_17] : memref<1x1024xf32, #tpu.memory_space<vmem>>, vector<1x1024xf32>
    %21 = vector.broadcast %20 : vector<1x1024xf32> to vector<128x1024xf32>
    %22 = arith.addf %19, %21 : vector<128x1024xf32>
    %cst_18 = arith.constant 0.000000e+00 : f32
    %23 = vector.broadcast %cst_18 : f32 to vector<128x1024xf32>
    %24 = arith.maximumf %22, %23 : vector<128x1024xf32>
    %25 = arith.truncf %24 : vector<128x1024xf32> to vector<128x1024xbf16>
    %26 = vector.shape_cast %25 : vector<128x1024xbf16> to vector<8x16x1024xbf16>
    %cst_19 = arith.constant dense<0xFF80> : vector<8x1024xbf16>
    %27 = vector.multi_reduction <maximumf>, %26, %cst_19 [1] : vector<8x16x1024xbf16> to vector<8x1024xbf16>
    %c0_20 = arith.constant 0 : index
    %c0_21 = arith.constant 0 : index
    %28 = vector.load %arg8[%c0_20, %c0_21] : memref<8x1024xbf16, #tpu.memory_space<vmem>>, vector<8x1024xbf16>
    tpu.vector_store %arg8[%c0_20, %c0_21], %27 {strides = array<i32>} : memref<8x1024xbf16, #tpu.memory_space<vmem>>, vector<8x1024xbf16>,
    return
  }
  func.func @transform_0(%arg0: i32) -> (i32, i32, i32) {
    %c0_i32 = arith.constant 0 : i32
    %c0_i32_0 = arith.constant 0 : i32
    %c0_i32_1 = arith.constant 0 : i32
    return %arg0, %c0_i32, %c0_i32_0 : i32, i32, i32
  }
  func.func @transform_1(%arg0: i32) -> (i32, i32) {
    %c0_i32 = arith.constant 0 : i32
    %c0_i32_0 = arith.constant 0 : i32
    %c0_i32_1 = arith.constant 0 : i32
    return %c0_i32, %c0_i32_0 : i32, i32
  }
  func.func @transform_2(%arg0: i32) -> (i32, i32) {
    %c0_i32 = arith.constant 0 : i32
    %c0_i32_0 = arith.constant 0 : i32
    %c0_i32_1 = arith.constant 0 : i32
    return %c0_i32, %c0_i32_0 : i32, i32
  }
  func.func @transform_3(%arg0: i32) -> (i32, i32) {
    %c0_i32 = arith.constant 0 : i32
    %c0_i32_0 = arith.constant 0 : i32
    %c0_i32_1 = arith.constant 0 : i32
    return %c0_i32, %c0_i32_0 : i32, i32
  }
  func.func @transform_4(%arg0: i32) -> (i32, i32) {
    %c0_i32 = arith.constant 0 : i32
    %c0_i32_0 = arith.constant 0 : i32
    %c0_i32_1 = arith.constant 0 : i32
    return %c0_i32, %c0_i32_0 : i32, i32
  }
  func.func @transform_5(%arg0: i32) -> (i32, i32) {
    %c0_i32 = arith.constant 0 : i32
    %c0_i32_0 = arith.constant 0 : i32
    %c0_i32_1 = arith.constant 0 : i32
    return %c0_i32, %c0_i32_0 : i32, i32
  }
  func.func @transform_6(%arg0: i32) -> (i32, i32) {
    %c0_i32 = arith.constant 0 : i32
    %c0_i32_0 = arith.constant 0 : i32
    %c0_i32_1 = arith.constant 0 : i32
    return %c0_i32, %c0_i32_0 : i32, i32
  }
  func.func @transform_7(%arg0: i32) -> (i32, i32) {
    %c0_i32 = arith.constant 0 : i32
    %c0_i32_0 = arith.constant 0 : i32
    return %arg0, %c0_i32 : i32, i32
  }
}

</mosaic_0001>

<llo_original>
// kernel: tpu_custom_call.1
$region0: #{tpu_custom_call.1}
  #allocation0 [shape = 'u32[]', space=smem, size = 0x4, offset = 0x4, fixed_abs, tag = 'smem constant byte address 0x4 - core index']
  #allocation1 [shape = 'u32[144,128]{1,0:T(1,128)}', space=vmem, size = 0x12000, scoped, tag = 'internal scratch']
  %s0 = inlined_call_operand.hbm [shape: bf16[8,16,64], index: 0, kind: input, shape index: {}]
  %s1 = inlined_call_operand.hbm [shape: bf16[64,64], index: 1, kind: input, shape index: {}]
  %s2 = inlined_call_operand.vmem [shape: f32[1,64], index: 2, kind: input, shape index: {}]
  %s3 = inlined_call_operand.hbm [shape: bf16[64,128], index: 3, kind: input, shape index: {}]
  %s4 = inlined_call_operand.vmem [shape: f32[1,128], index: 4, kind: input, shape index: {}]
  %s5 = inlined_call_operand.hbm [shape: bf16[128,1024], index: 5, kind: input, shape index: {}]
  %s6 = inlined_call_operand.vmem [shape: f32[1,1024], index: 6, kind: input, shape index: {}]
  %s7 = inlined_call_operand.hbm [shape: bf16[8,1024], index: 7, kind: output, shape index: {}]
  %s8 = sld [smem:[#allocation0]]
  $region54: #{tpu_custom_call.1} parent=0
    _
  %s10 = ssub.s32 1, %s8
  %s11 = scalar_select 0, %s10, %s8
  $region1: #{tpu_custom_call.1} parent=0
    #allocation2 [shape = 'u8[32768]{0}', space=vmem, size = 0x8000, scoped, tag = 'input window, operand 0, single buffered']
    #allocation3 [shape = 's32[1]{0}', space=sflag, size = 0x4, scoped, tag = 'scoped memory for tpu_custom_call.1']
    #allocation4 [shape = 's32[1]{0}', space=sflag, size = 0x4, scoped, tag = 'scoped memory for tpu_custom_call.1']
    #allocation5 [shape = 'u8[16384]{0}', space=vmem, size = 0x4000, scoped, tag = 'input window, operand 1, single buffered']
    #allocation6 [shape = 's32[1]{0}', space=sflag, size = 0x4, scoped, tag = 'scoped memory for tpu_custom_call.1']
    #allocation7 [shape = 'u8[16384]{0}', space=vmem, size = 0x4000, scoped, tag = 'input window, operand 3, single buffered']
    #allocation8 [shape = 'u8[262144]{0}', space=vmem, size = 0x40000, scoped, tag = 'input window, operand 5, single buffered']
    #allocation9 [shape = 's32[1]{0}', space=sflag, size = 0x4, scoped, tag = 'scoped memory for tpu_custom_call.1']
    #allocation10 [shape = 'u8[16384]{0}', space=vmem, size = 0x4000, scoped, tag = 'output window, operand 0, single buffered']
    %12 = vsyncpa [#allocation3], 0
    %13 = vsyncpa [#allocation6], 0
    %14 = vsyncpa [#allocation9], 0
    %15 = vsyncpa [#allocation4], 0
    // Predicated region
    $region2: #{tpu_custom_call.1} parent=1 // pred_check
      _
    $region3: #{tpu_custom_call.1} parent=1 // pred_check_branch
      %17 = sbr.rel (0) target = $region5
    $region4: #{tpu_custom_call.1} parent=1 // pred_region
      %s19 = ssub.s32 1024, 1024
      %20 = vsyncadd [#allocation3], %s19
      %s21 = sshll.u32 [#allocation2], 4
      %s22 = int_to_ptr.vmem [resolvable:$true] %s21
      %27 = dma.hbm_to_vmem [thread:$0]  %s0, 1024, %s22, [#allocation3], 64, 64, 4
    $region5: #{tpu_custom_call.1} parent=1 // pred_fallthru
      _
    // Predicated region
    $region6: #{tpu_custom_call.1} parent=1 // pred_check
      _
    $region7: #{tpu_custom_call.1} parent=1 // pred_check_branch
      %29 = sbr.rel (0) target = $region9
    $region8: #{tpu_custom_call.1} parent=1 // pred_region
      %s31 = ssub.s32 512, 512
      %32 = vsyncadd [#allocation6], %s31
      %s33 = sshll.u32 [#allocation5], 4
      %s34 = int_to_ptr.vmem [resolvable:$true] %s33
      %39 = dma.hbm_to_vmem [thread:$0]  %s1, 512, %s34, [#allocation6], 64, 64, 4
    $region9: #{tpu_custom_call.1} parent=1 // pred_fallthru
      _
    // Predicated region
    $region10: #{tpu_custom_call.1} parent=1 // pred_check
      _
    $region11: #{tpu_custom_call.1} parent=1 // pred_check_branch
      %41 = sbr.rel (0) target = $region13
    $region12: #{tpu_custom_call.1} parent=1 // pred_region
      _
    $region13: #{tpu_custom_call.1} parent=1 // pred_fallthru
      _
    // Predicated region
    $region14: #{tpu_custom_call.1} parent=1 // pred_check
      _
    $region15: #{tpu_custom_call.1} parent=1 // pred_check_branch
      %43 = sbr.rel (0) target = $region17
    $region16: #{tpu_custom_call.1} parent=1 // pred_region
      %s45 = ssub.s32 512, 512
      %46 = vsyncadd [#allocation6], %s45
      %s47 = sshll.u32 [#allocation7], 4
      %s48 = int_to_ptr.vmem [resolvable:$true] %s47
      %53 = dma.hbm_to_vmem [thread:$0]  %s3, 512, %s48, [#allocation6], 64, 64, 4
    $region17: #{tpu_custom_call.1} parent=1 // pred_fallthru
      _
    // Predicated region
    $region18: #{tpu_custom_call.1} parent=1 // pred_check
      _
    $region19: #{tpu_custom_call.1} parent=1 // pred_check_branch
      %55 = sbr.rel (0) target = $region21
    $region20: #{tpu_custom_call.1} parent=1 // pred_region
      _
    $region21: #{tpu_custom_call.1} parent=1 // pred_fallthru
      _
    // Predicated region
    $region22: #{tpu_custom_call.1} parent=1 // pred_check
      _
    $region23: #{tpu_custom_call.1} parent=1 // pred_check_branch
      %57 = sbr.rel (0) target = $region25
    $region24: #{tpu_custom_call.1} parent=1 // pred_region
      %s59 = ssub.s32 8192, 8192
      %60 = vsyncadd [#allocation9], %s59
      %s61 = sshll.u32 [#allocation8], 4
      %s62 = int_to_ptr.vmem [resolvable:$true] %s61
      %67 = dma.hbm_to_vmem [thread:$0]  %s5, 8192, %s62, [#allocation9], 512, 512, 32
    $region25: #{tpu_custom_call.1} parent=1 // pred_fallthru
      _
    // Predicated region
    $region26: #{tpu_custom_call.1} parent=1 // pred_check
      _
    $region27: #{tpu_custom_call.1} parent=1 // pred_check_branch
      %69 = sbr.rel (0) target = $region29
    $region28: #{tpu_custom_call.1} parent=1 // pred_region
      _
    $region29: #{tpu_custom_call.1} parent=1 // pred_fallthru
      _
    // Predicated region
    $region30: #{tpu_custom_call.1} parent=1 // pred_check
      _
    $region31: #{tpu_custom_call.1} parent=1 // pred_check_branch
      %71 = sbr.rel (0) target = $region33
    $region32: #{tpu_custom_call.1} parent=1 // pred_region
      %72 = dma.done [#allocation3], 1024
    $region33: #{tpu_custom_call.1} parent=1 // pred_fallthru
      _
    // Predicated region
    $region34: #{tpu_custom_call.1} parent=1 // pred_check
      _
    $region35: #{tpu_custom_call.1} parent=1 // pred_check_branch
      %74 = sbr.rel (0) target = $region37
    $region36: #{tpu_custom_call.1} parent=1 // pred_region
      %75 = dma.done [#allocation6], 512
    $region37: #{tpu_custom_call.1} parent=1 // pred_fallthru
      _
    // Predicated region
    $region38: #{tpu_custom_call.1} parent=1 // pred_check
      _
    $region39: #{tpu_custom_call.1} parent=1 // pred_check_branch
      %77 = sbr.rel (0) target = $region41
    $region40: #{tpu_custom_call.1} parent=1 // pred_region
      %78 = dma.done [#allocation6], 512
    $region41: #{tpu_custom_call.1} parent=1 // pred_fallthru
      _
    // Predicated region
    $region42: #{tpu_custom_call.1} parent=1 // pred_check
      _
    $region43: #{tpu_custom_call.1} parent=1 // pred_check_branch
      %80 = sbr.rel (0) target = $region45
    $region44: #{tpu_custom_call.1} parent=1 // pred_region
      %81 = dma.done [#allocation9], 8192
    $region45: #{tpu_custom_call.1} parent=1 // pred_fallthru
      _
    %v83 = vld [vmem:[#allocation2] sm:$0xf]
    %v84 = vld [vmem:[#allocation2 + $0x4] sm:$0xf]
    %v85 = vld [vmem:[#allocation2 + $0x8] sm:$0xf]
    %v86 = vld [vmem:[#allocation2 + $0xc] sm:$0xf]
    %v87 = vld [vmem:[#allocation2 + $0x10] sm:$0xf]
    %v88 = vld [vmem:[#allocation2 + $0x14] sm:$0xf]
    %v89 = vld [vmem:[#allocation2 + $0x18] sm:$0xf]
    %v90 = vld [vmem:[#allocation2 + $0x1c] sm:$0xf]
    %v91 = vld [vmem:[#allocation2 + $0x20] sm:$0xf]
    %v92 = vld [vmem:[#allocation2 + $0x24] sm:$0xf]
    %v93 = vld [vmem:[#allocation2 + $0x28] sm:$0xf]
    %v94 = vld [vmem:[#allocation2 + $0x2c] sm:$0xf]
    %v95 = vld [vmem:[#allocation2 + $0x30] sm:$0xf]
    %v96 = vld [vmem:[#allocation2 + $0x34] sm:$0xf]
    %v97 = vld [vmem:[#allocation2 + $0x38] sm:$0xf]
    %v98 = vld [vmem:[#allocation2 + $0x3c] sm:$0xf]
    %v99 = vld [vmem:[#allocation5] sm:$0xf]
    %v100 = vld [vmem:[#allocation5 + $0x4] sm:$0xf]
    %v101 = vld [vmem:[#allocation5 + $0x8] sm:$0xf]
    %v102 = vld [vmem:[#allocation5 + $0xc] sm:$0xf]
    %v103 = vld [vmem:[#allocation5 + $0x10] sm:$0xf]
    %v104 = vld [vmem:[#allocation5 + $0x14] sm:$0xf]
    %v105 = vld [vmem:[#allocation5 + $0x18] sm:$0xf]
    %v106 = vld [vmem:[#allocation5 + $0x1c] sm:$0xf]
    %v107 = vld [vmem:[%s2] sm:$0x1]
    %v109 = vlaneseq
    %v110 = vshrl.u32 %v109, 7
    %v111 = vsub.s32 0, %v110
    %v112 = vrot.slane %v107, %v111
    %v130 = vunpack.c.l.b16 %v83
    %v131 = vunpack.c.l.b16 %v84
    %v132 = vunpack.c.l.b16 %v85
    %v133 = vunpack.c.l.b16 %v86
    %v134 = vunpack.c.l.b16 %v87
    %v135 = vunpack.c.l.b16 %v88
    %v136 = vunpack.c.l.b16 %v89
    %v137 = vunpack.c.l.b16 %v90
    %v138 = vunpack.c.l.b16 %v91
    %v139 = vunpack.c.l.b16 %v92
    %v140 = vunpack.c.l.b16 %v93
    %v141 = vunpack.c.l.b16 %v94
    %v142 = vunpack.c.l.b16 %v95
    %v143 = vunpack.c.l.b16 %v96
    %v144 = vunpack.c.l.b16 %v97
    %v145 = vunpack.c.l.b16 %v98
    %v146 = vpack.c.b16 %v131, %v130
    %v147 = vpack.c.b16 %v133, %v132
    %v148 = vpack.c.b16 %v135, %v134
    %v149 = vpack.c.b16 %v137, %v136
    %v150 = vpack.c.b16 %v139, %v138
    %v151 = vpack.c.b16 %v141, %v140
    %v152 = vpack.c.b16 %v143, %v142
    %v153 = vpack.c.b16 %v145, %v144
    %v162 = vunpack.c.l.b16 %v99
    %v163 = vunpack.c.l.b16 %v100
    %v164 = vunpack.c.l.b16 %v101
    %v165 = vunpack.c.l.b16 %v102
    %v166 = vunpack.c.l.b16 %v103
    %v167 = vunpack.c.l.b16 %v104
    %v168 = vunpack.c.l.b16 %v105
    %v169 = vunpack.c.l.b16 %v106
    %v170 = vpack.c.b16 %v163, %v162
    %v171 = vpack.c.b16 %v165, %v164
    %v172 = vpack.c.b16 %v167, %v166
    %v173 = vpack.c.b16 %v169, %v168
    %vm178 = vcmask 523264
    %v180 = vsel %vm178, %v146, 0
    %v183 = vsel %vm178, %v147, 0
    %v186 = vsel %vm178, %v148, 0
    %v189 = vsel %vm178, %v149, 0
    %v192 = vsel %vm178, %v150, 0
    %v195 = vsel %vm178, %v151, 0
    %v198 = vsel %vm178, %v152, 0
    %v201 = vsel %vm178, %v153, 0
    %203 = vmatprep.subr.bf16.mxu0 0
    %204 = vmatpush1.bf16.msra.mxu0 %v170
    %205 = vmatprep.subr.bf16.mxu0 0
    %206 = vmatpush1.bf16.msra.mxu0 %v171
    %207 = vmatprep.subr.bf16.mxu0 0
    %208 = vmatpush1.bf16.msra.mxu0 %v172
    %209 = vmatprep.subr.bf16.mxu0 0
    %210 = vmatpush1.bf16.msra.mxu0 %v173
    %211 = vmatprep.subr.bf16.mxu0 0
    %212 = vmatpush1.bf16.msra.mxu0 0
    %213 = vmatprep.subr.bf16.mxu0 0
    %214 = vmatpush1.bf16.msra.mxu0 0
    %215 = vmatprep.subr.bf16.mxu0 0
    %216 = vmatpush1.bf16.msra.mxu0 0
    %217 = vmatprep.subr.bf16.mxu0 0
    %218 = vmatpush1.bf16.msra.mxu0 0
    %219 = vmatprep.subr.bf16.mxu0 0
    %220 = vmatpush1.bf16.msra.mxu0 0
    %221 = vmatprep.subr.bf16.mxu0 0
    %222 = vmatpush1.bf16.msra.mxu0 0
    %223 = vmatprep.subr.bf16.mxu0 0
    %224 = vmatpush1.bf16.msra.mxu0 0
    %225 = vmatprep.subr.bf16.mxu0 0
    %226 = vmatpush1.bf16.msra.mxu0 0
    %227 = vmatprep.subr.bf16.mxu0 0
    %228 = vmatpush1.bf16.msra.mxu0 0
    %229 = vmatprep.subr.bf16.mxu0 0
    %230 = vmatpush1.bf16.msra.mxu0 0
    %231 = vmatprep.subr.bf16.mxu0 0
    %232 = vmatpush1.bf16.msra.mxu0 0
    %233 = vmatprep.subr.bf16.mxu0 0
    %234 = vmatpush1.bf16.msra.mxu0 0
    %235 = vmatprep.mubr.bf16.mxu0 0
    %236 = vmatmul.mubr.bf16.gmra.mrb[0].mxu0 %v180
    %v237 = vpop.f32.mrb[0].mxu0
    %v238 = vadd.f32 %v112, %v237
    %v239 = vpop.f32.mrb[0].mxu0
    %v240 = vpop.f32.mrb[0].mxu0
    %v241 = vadd.f32 %v112, %v240
    %v242 = vpop.f32.mrb[0].mxu0
    %243 = vmatprep.mubr.bf16.mxu0 0
    %244 = vmatmul.mubr.bf16.gmra.mrb[0].mxu0 %v183
    %v245 = vpop.f32.mrb[0].mxu0
    %v246 = vadd.f32 %v112, %v245
    %v247 = vpop.f32.mrb[0].mxu0
    %v248 = vpop.f32.mrb[0].mxu0
    %v249 = vadd.f32 %v112, %v248
    %v250 = vpop.f32.mrb[0].mxu0
    %251 = vmatprep.mubr.bf16.mxu0 0
    %252 = vmatmul.mubr.bf16.gmra.mrb[0].mxu0 %v186
    %v253 = vpop.f32.mrb[0].mxu0
    %v254 = vadd.f32 %v112, %v253
    %v255 = vpop.f32.mrb[0].mxu0
    %v256 = vpop.f32.mrb[0].mxu0
    %v257 = vadd.f32 %v112, %v256
    %v258 = vpop.f32.mrb[0].mxu0
    %259 = vmatprep.mubr.bf16.mxu0 0
    %260 = vmatmul.mubr.bf16.gmra.mrb[0].mxu0 %v189
    %v261 = vpop.f32.mrb[0].mxu0
    %v262 = vadd.f32 %v112, %v261
    %v263 = vpop.f32.mrb[0].mxu0
    %v264 = vpop.f32.mrb[0].mxu0
    %v265 = vadd.f32 %v112, %v264
    %v266 = vpop.f32.mrb[0].mxu0
    %267 = vmatprep.mubr.bf16.mxu0 0
    %268 = vmatmul.mubr.bf16.gmra.mrb[0].mxu0 %v192
    %v269 = vpop.f32.mrb[0].mxu0
    %v270 = vadd.f32 %v112, %v269
    %v271 = vpop.f32.mrb[0].mxu0
    %v272 = vpop.f32.mrb[0].mxu0
    %v273 = vadd.f32 %v112, %v272
    %v274 = vpop.f32.mrb[0].mxu0
    %275 = vmatprep.mubr.bf16.mxu0 0
    %276 = vmatmul.mubr.bf16.gmra.mrb[0].mxu0 %v195
    %v277 = vpop.f32.mrb[0].mxu0
    %v278 = vadd.f32 %v112, %v277
    %v279 = vpop.f32.mrb[0].mxu0
    %v280 = vpop.f32.mrb[0].mxu0
    %v281 = vadd.f32 %v112, %v280
    %v282 = vpop.f32.mrb[0].mxu0
    %283 = vmatprep.mubr.bf16.mxu0 0
    %284 = vmatmul.mubr.bf16.gmra.mrb[0].mxu0 %v198
    %v285 = vpop.f32.mrb[0].mxu0
    %v286 = vadd.f32 %v112, %v285
    %v287 = vpop.f32.mrb[0].mxu0
    %v288 = vpop.f32.mrb[0].mxu0
    %v289 = vadd.f32 %v112, %v288
    %v290 = vpop.f32.mrb[0].mxu0
    %291 = vmatprep.mubr.bf16.mxu0 0
    %292 = vmatmul.mubr.bf16.gmra.mrb[0].mxu0 %v201
    %v293 = vpop.f32.mrb[0].mxu0
    %v294 = vadd.f32 %v112, %v293
    %v295 = vpop.f32.mrb[0].mxu0
    %v296 = vpop.f32.mrb[0].mxu0
    %v297 = vadd.f32 %v112, %v296
    %v298 = vpop.f32.mrb[0].mxu0
    %299 = vdwg.mxu0
    %v300 = vmax.f32 %v238, 0.0
    %v301 = vmax.f32 %v241, 0.0
    %v302 = vmax.f32 %v246, 0.0
    %v303 = vmax.f32 %v249, 0.0
    %v304 = vmax.f32 %v254, 0.0
    %v305 = vmax.f32 %v257, 0.0
    %v306 = vmax.f32 %v262, 0.0
    %v307 = vmax.f32 %v265, 0.0
    %v308 = vmax.f32 %v270, 0.0
    %v309 = vmax.f32 %v273, 0.0
    %v310 = vmax.f32 %v278, 0.0
    %v311 = vmax.f32 %v281, 0.0
    %v312 = vmax.f32 %v286, 0.0
    %v313 = vmax.f32 %v289, 0.0
    %v314 = vmax.f32 %v294, 0.0
    %v315 = vmax.f32 %v297, 0.0
    %v316 = vpack.c.bf16 %v301, %v300
    %v317 = vpack.c.bf16 %v303, %v302
    %v318 = vpack.c.bf16 %v305, %v304
    %v319 = vpack.c.bf16 %v307, %v306
    %v320 = vpack.c.bf16 %v309, %v308
    %v321 = vpack.c.bf16 %v311, %v310
    %v322 = vpack.c.bf16 %v313, %v312
    %v323 = vpack.c.bf16 %v315, %v314
    %v324 = vld [vmem:[#allocation7] sm:$0xf]
    %v325 = vld [vmem:[#allocation7 + $0x4] sm:$0xf]
    %v326 = vld [vmem:[#allocation7 + $0x8] sm:$0xf]
    %v327 = vld [vmem:[#allocation7 + $0xc] sm:$0xf]
    %v328 = vld [vmem:[#allocation7 + $0x10] sm:$0xf]
    %v329 = vld [vmem:[#allocation7 + $0x14] sm:$0xf]
    %v330 = vld [vmem:[#allocation7 + $0x18] sm:$0xf]
    %v331 = vld [vmem:[#allocation7 + $0x1c] sm:$0xf]
    %v332 = vld [vmem:[%s4] sm:$0x1]
    %v334 = vlaneseq
    %v335 = vshrl.u32 %v334, 7
    %v336 = vsub.s32 0, %v335
    %v337 = vrot.slane %v332, %v336
    %v347 = vunpack.c.l.b16 %v324
    %v348 = vunpack.c.l.b16 %v325
    %v349 = vunpack.c.l.b16 %v326
    %v350 = vunpack.c.l.b16 %v327
    %v351 = vunpack.c.l.b16 %v328
    %v352 = vunpack.c.l.b16 %v329
    %v353 = vunpack.c.l.b16 %v330
    %v354 = vunpack.c.l.b16 %v331
    %v355 = vpack.c.b16 %v348, %v347
    %v356 = vpack.c.b16 %v350, %v349
    %v357 = vpack.c.b16 %v352, %v351
    %v358 = vpack.c.b16 %v354, %v353
    %v364 = vsel %vm178, %v316, 0
    %v367 = vsel %vm178, %v317, 0
    %v370 = vsel %vm178, %v318, 0
    %v373 = vsel %vm178, %v319, 0
    %v376 = vsel %vm178, %v320, 0
    %v379 = vsel %vm178, %v321, 0
    %v382 = vsel %vm178, %v322, 0
    %v385 = vsel %vm178, %v323, 0
    %387 = vmatprep.subr.bf16.mxu0 0
    %388 = vmatpush1.bf16.msra.mxu0 %v355
    %389 = vmatprep.subr.bf16.mxu0 0
    %390 = vmatpush1.bf16.msra.mxu0 %v356
    %391 = vmatprep.subr.bf16.mxu0 0
    %392 = vmatpush1.bf16.msra.mxu0 %v357
    %393 = vmatprep.subr.bf16.mxu0 0
    %394 = vmatpush1.bf16.msra.mxu0 %v358
    %395 = vmatprep.subr.bf16.mxu0 0
    %396 = vmatpush1.bf16.msra.mxu0 0
    %397 = vmatprep.subr.bf16.mxu0 0
    %398 = vmatpush1.bf16.msra.mxu0 0
    %399 = vmatprep.subr.bf16.mxu0 0
    %400 = vmatpush1.bf16.msra.mxu0 0
    %401 = vmatprep.subr.bf16.mxu0 0
    %402 = vmatpush1.bf16.msra.mxu0 0
    %403 = vmatprep.subr.bf16.mxu0 0
    %404 = vmatpush1.bf16.msra.mxu0 0
    %405 = vmatprep.subr.bf16.mxu0 0
    %406 = vmatpush1.bf16.msra.mxu0 0
    %407 = vmatprep.subr.bf16.mxu0 0
    %408 = vmatpush1.bf16.msra.mxu0 0
    %409 = vmatprep.subr.bf16.mxu0 0
    %410 = vmatpush1.bf16.msra.mxu0 0
    %411 = vmatprep.subr.bf16.mxu0 0
    %412 = vmatpush1.bf16.msra.mxu0 0
    %413 = vmatprep.subr.bf16.mxu0 0
    %414 = vmatpush1.bf16.msra.mxu0 0
    %415 = vmatprep.subr.bf16.mxu0 0
    %416 = vmatpush1.bf16.msra.mxu0 0
    %417 = vmatprep.subr.bf16.mxu0 0
    %418 = vmatpush1.bf16.msra.mxu0 0
    %419 = vmatprep.mubr.bf16.mxu0 0
    %420 = vmatmul.mubr.bf16.gmra.mrb[0].mxu0 %v364
    %v421 = vpop.f32.mrb[0].mxu0
    %v422 = vadd.f32 %v337, %v421
    %v423 = vpop.f32.mrb[0].mxu0
    %v424 = vpop.f32.mrb[0].mxu0
    %v425 = vadd.f32 %v337, %v424
    %v426 = vpop.f32.mrb[0].mxu0
    %427 = vmatprep.mubr.bf16.mxu0 0
    %428 = vmatmul.mubr.bf16.gmra.mrb[0].mxu0 %v367
    %v429 = vpop.f32.mrb[0].mxu0
    %v430 = vadd.f32 %v337, %v429
    %v431 = vpop.f32.mrb[0].mxu0
    %v432 = vpop.f32.mrb[0].mxu0
    %v433 = vadd.f32 %v337, %v432
    %v434 = vpop.f32.mrb[0].mxu0
    %435 = vmatprep.mubr.bf16.mxu0 0
    %436 = vmatmul.mubr.bf16.gmra.mrb[0].mxu0 %v370
    %v437 = vpop.f32.mrb[0].mxu0
    %v438 = vadd.f32 %v337, %v437
    %v439 = vpop.f32.mrb[0].mxu0
    %v440 = vpop.f32.mrb[0].mxu0
    %v441 = vadd.f32 %v337, %v440
    %v442 = vpop.f32.mrb[0].mxu0
    %443 = vmatprep.mubr.bf16.mxu0 0
    %444 = vmatmul.mubr.bf16.gmra.mrb[0].mxu0 %v373
    %v445 = vpop.f32.mrb[0].mxu0
    %v446 = vadd.f32 %v337, %v445
    %v447 = vpop.f32.mrb[0].mxu0
    %v448 = vpop.f32.mrb[0].mxu0
    %v449 = vadd.f32 %v337, %v448
    %v450 = vpop.f32.mrb[0].mxu0
    %451 = vmatprep.mubr.bf16.mxu0 0
    %452 = vmatmul.mubr.bf16.gmra.mrb[0].mxu0 %v376
    %v453 = vpop.f32.mrb[0].mxu0
    %v454 = vadd.f32 %v337, %v453
    %v455 = vpop.f32.mrb[0].mxu0
    %v456 = vpop.f32.mrb[0].mxu0
    %v457 = vadd.f32 %v337, %v456
    %v458 = vpop.f32.mrb[0].mxu0
    %459 = vmatprep.mubr.bf16.mxu0 0
    %460 = vmatmul.mubr.bf16.gmra.mrb[0].mxu0 %v379
    %v461 = vpop.f32.mrb[0].mxu0
    %v462 = vadd.f32 %v337, %v461
    %v463 = vpop.f32.mrb[0].mxu0
    %v464 = vpop.f32.mrb[0].mxu0
    %v465 = vadd.f32 %v337, %v464
    %v466 = vpop.f32.mrb[0].mxu0
    %467 = vmatprep.mubr.bf16.mxu0 0
    %468 = vmatmul.mubr.bf16.gmra.mrb[0].mxu0 %v382
    %v469 = vpop.f32.mrb[0].mxu0
    %v470 = vadd.f32 %v337, %v469
    %v471 = vpop.f32.mrb[0].mxu0
    %v472 = vpop.f32.mrb[0].mxu0
    %v473 = vadd.f32 %v337, %v472
    %v474 = vpop.f32.mrb[0].mxu0
    %475 = vmatprep.mubr.bf16.mxu0 0
    %476 = vmatmul.mubr.bf16.gmra.mrb[0].mxu0 %v385
    %v477 = vpop.f32.mrb[0].mxu0
    %v478 = vadd.f32 %v337, %v477
    %v479 = vpop.f32.mrb[0].mxu0
    %v480 = vpop.f32.mrb[0].mxu0
    %v481 = vadd.f32 %v337, %v480
    %v482 = vpop.f32.mrb[0].mxu0
    %483 = vdwg.mxu0
    %v484 = vmax.f32 %v422, 0.0
    %v485 = vmax.f32 %v425, 0.0
    %v486 = vmax.f32 %v430, 0.0
    %v487 = vmax.f32 %v433, 0.0
    %v488 = vmax.f32 %v438, 0.0
    %v489 = vmax.f32 %v441, 0.0
    %v490 = vmax.f32 %v446, 0.0
    %v491 = vmax.f32 %v449, 0.0
    %v492 = vmax.f32 %v454, 0.0
    %v493 = vmax.f32 %v457, 0.0
    %v494 = vmax.f32 %v462, 0.0
    %v495 = vmax.f32 %v465, 0.0
    %v496 = vmax.f32 %v470, 0.0
    %v497 = vmax.f32 %v473, 0.0
    %v498 = vmax.f32 %v478, 0.0
    %v499 = vmax.f32 %v481, 0.0
    %v500 = vpack.c.bf16 %v485, %v484
    %v501 = vpack.c.bf16 %v487, %v486
    %v502 = vpack.c.bf16 %v489, %v488
    %v503 = vpack.c.bf16 %v491, %v490
    %v504 = vpack.c.bf16 %v493, %v492
    %v505 = vpack.c.bf16 %v495, %v494
    %v506 = vpack.c.bf16 %v497, %v496
    %v507 = vpack.c.bf16 %v499, %v498
    %v508 = vld [vmem:[#allocation8] sm:$0xff]
    %v509 = vld [vmem:[#allocation8 + $0x8] sm:$0xff]
    %v510 = vld [vmem:[#allocation8 + $0x10] sm:$0xff]
    %v511 = vld [vmem:[#allocation8 + $0x18] sm:$0xff]
    %v512 = vld [vmem:[#allocation8 + $0x20] sm:$0xff]
    %v513 = vld [vmem:[#allocation8 + $0x28] sm:$0xff]
    %v514 = vld [vmem:[#allocation8 + $0x30] sm:$0xff]
    %v515 = vld [vmem:[#allocation8 + $0x38] sm:$0xff]
    %v516 = vld [vmem:[#allocation8 + $0x40] sm:$0xff]
    %v517 = vld [vmem:[#allocation8 + $0x48] sm:$0xff]
    %v518 = vld [vmem:[#allocation8 + $0x50] sm:$0xff]
    %v519 = vld [vmem:[#allocation8 + $0x58] sm:$0xff]
    %v520 = vld [vmem:[#allocation8 + $0x60] sm:$0xff]
    %v521 = vld [vmem:[#allocation8 + $0x68] sm:$0xff]
    %v522 = vld [vmem:[#allocation8 + $0x70] sm:$0xff]
    %v523 = vld [vmem:[#allocation8 + $0x78] sm:$0xff]
    %v524 = vld [vmem:[#allocation8 + $0x80] sm:$0xff]
    %v525 = vld [vmem:[#allocation8 + $0x88] sm:$0xff]
    %v526 = vld [vmem:[#allocation8 + $0x90] sm:$0xff]
    %v527 = vld [vmem:[#allocation8 + $0x98] sm:$0xff]
    %v528 = vld [vmem:[#allocation8 + $0xa0] sm:$0xff]
    %v529 = vld [vmem:[#allocation8 + $0xa8] sm:$0xff]
    %v530 = vld [vmem:[#allocation8 + $0xb0] sm:$0xff]
    %v531 = vld [vmem:[#allocation8 + $0xb8] sm:$0xff]
    %v532 = vld [vmem:[#allocation8 + $0xc0] sm:$0xff]
    %v533 = vld [vmem:[#allocation8 + $0xc8] sm:$0xff]
    %v534 = vld [vmem:[#allocation8 + $0xd0] sm:$0xff]
    %v535 = vld [vmem:[#allocation8 + $0xd8] sm:$0xff]
    %v536 = vld [vmem:[#allocation8 + $0xe0] sm:$0xff]
    %v537 = vld [vmem:[#allocation8 + $0xe8] sm:$0xff]
    %v538 = vld [vmem:[#allocation8 + $0xf0] sm:$0xff]
    %v539 = vld [vmem:[#allocation8 + $0xf8] sm:$0xff]
    %v540 = vld [vmem:[#allocation8 + $0x100] sm:$0xff]
    %v541 = vld [vmem:[#allocation8 + $0x108] sm:$0xff]
    %v542 = vld [vmem:[#allocation8 + $0x110] sm:$0xff]
    %v543 = vld [vmem:[#allocation8 + $0x118] sm:$0xff]
    %v544 = vld [vmem:[#allocation8 + $0x120] sm:$0xff]
    %v545 = vld [vmem:[#allocation8 + $0x128] sm:$0xff]
    %v546 = vld [vmem:[#allocation8 + $0x130] sm:$0xff]
    %v547 = vld [vmem:[#allocation8 + $0x138] sm:$0xff]
    %v548 = vld [vmem:[#allocation8 + $0x140] sm:$0xff]
    %v549 = vld [vmem:[#allocation8 + $0x148] sm:$0xff]
    %v550 = vld [vmem:[#allocation8 + $0x150] sm:$0xff]
    %v551 = vld [vmem:[#allocation8 + $0x158] sm:$0xff]
    %v552 = vld [vmem:[#allocation8 + $0x160] sm:$0xff]
    %v553 = vld [vmem:[#allocation8 + $0x168] sm:$0xff]
    %v554 = vld [vmem:[#allocation8 + $0x170] sm:$0xff]
    %v555 = vld [vmem:[#allocation8 + $0x178] sm:$0xff]
    %v556 = vld [vmem:[#allocation8 + $0x180] sm:$0xff]
    %v557 = vld [vmem:[#allocation8 + $0x188] sm:$0xff]
    %v558 = vld [vmem:[#allocation8 + $0x190] sm:$0xff]
    %v559 = vld [vmem:[#allocation8 + $0x198] sm:$0xff]
    %v560 = vld [vmem:[#allocation8 + $0x1a0] sm:$0xff]
    %v561 = vld [vmem:[#allocation8 + $0x1a8] sm:$0xff]
    %v562 = vld [vmem:[#allocation8 + $0x1b0] sm:$0xff]
    %v563 = vld [vmem:[#allocation8 + $0x1b8] sm:$0xff]
    %v564 = vld [vmem:[#allocation8 + $0x1c0] sm:$0xff]
    %v565 = vld [vmem:[#allocation8 + $0x1c8] sm:$0xff]
    %v566 = vld [vmem:[#allocation8 + $0x1d0] sm:$0xff]
    %v567 = vld [vmem:[#allocation8 + $0x1d8] sm:$0xff]
    %v568 = vld [vmem:[#allocation8 + $0x1e0] sm:$0xff]
    %v569 = vld [vmem:[#allocation8 + $0x1e8] sm:$0xff]
    %v570 = vld [vmem:[#allocation8 + $0x1f0] sm:$0xff]
    %v571 = vld [vmem:[#allocation8 + $0x1f8] sm:$0xff]
    %v572 = vld [vmem:[%s6] sm:$0xff]
    %v574 = vlaneseq
    %v575 = vshrl.u32 %v574, 7
    %v576 = vsub.s32 0, %v575
    %v577 = vrot.slane %v572, %v576
    %v578 = vlaneseq
    %v579 = vshrl.u32 %v578, 7
    %v580 = vsub.s32 1, %v579
    %v581 = vrot.slane %v572, %v580
    %v582 = vlaneseq
    %v583 = vshrl.u32 %v582, 7
    %v584 = vsub.s32 2, %v583
    %v585 = vrot.slane %v572, %v584
    %v586 = vlaneseq
    %v587 = vshrl.u32 %v586, 7
    %v588 = vsub.s32 3, %v587
    %v589 = vrot.slane %v572, %v588
    %v590 = vlaneseq
    %v591 = vshrl.u32 %v590, 7
    %v592 = vsub.s32 4, %v591
    %v593 = vrot.slane %v572, %v592
    %v594 = vlaneseq
    %v595 = vshrl.u32 %v594, 7
    %v596 = vsub.s32 5, %v595
    %v597 = vrot.slane %v572, %v596
    %v598 = vlaneseq
    %v599 = vshrl.u32 %v598, 7
    %v600 = vsub.s32 6, %v599
    %v601 = vrot.slane %v572, %v600
    %v602 = vlaneseq
    %v603 = vshrl.u32 %v602, 7
    %v604 = vsub.s32 7, %v603
    %v605 = vrot.slane %v572, %v604
    %v678 = vunpack.c.l.b16 %v508
    %v679 = vunpack.c.h.b16 %v508
    %v680 = vunpack.c.l.b16 %v509
    %v681 = vunpack.c.h.b16 %v509
    %v682 = vunpack.c.l.b16 %v510
    %v683 = vunpack.c.h.b16 %v510
    %v684 = vunpack.c.l.b16 %v511
    %v685 = vunpack.c.h.b16 %v511
    %v686 = vunpack.c.l.b16 %v512
    %v687 = vunpack.c.h.b16 %v512
    %v688 = vunpack.c.l.b16 %v513
    %v689 = vunpack.c.h.b16 %v513
    %v690 = vunpack.c.l.b16 %v514
    %v691 = vunpack.c.h.b16 %v514
    %v692 = vunpack.c.l.b16 %v515
    %v693 = vunpack.c.h.b16 %v515
    %v694 = vunpack.c.l.b16 %v516
    %v695 = vunpack.c.h.b16 %v516
    %v696 = vunpack.c.l.b16 %v517
    %v697 = vunpack.c.h.b16 %v517
    %v698 = vunpack.c.l.b16 %v518
    %v699 = vunpack.c.h.b16 %v518
    %v700 = vunpack.c.l.b16 %v519
    %v701 = vunpack.c.h.b16 %v519
    %v702 = vunpack.c.l.b16 %v520
    %v703 = vunpack.c.h.b16 %v520
    %v704 = vunpack.c.l.b16 %v521
    %v705 = vunpack.c.h.b16 %v521
    %v706 = vunpack.c.l.b16 %v522
    %v707 = vunpack.c.h.b16 %v522
    %v708 = vunpack.c.l.b16 %v523
    %v709 = vunpack.c.h.b16 %v523
    %v710 = vunpack.c.l.b16 %v524
    %v711 = vunpack.c.h.b16 %v524
    %v712 = vunpack.c.l.b16 %v525
    %v713 = vunpack.c.h.b16 %v525
    %v714 = vunpack.c.l.b16 %v526
    %v715 = vunpack.c.h.b16 %v526
    %v716 = vunpack.c.l.b16 %v527
    %v717 = vunpack.c.h.b16 %v527
    %v718 = vunpack.c.l.b16 %v528
    %v719 = vunpack.c.h.b16 %v528
    %v720 = vunpack.c.l.b16 %v529
    %v721 = vunpack.c.h.b16 %v529
    %v722 = vunpack.c.l.b16 %v530
    %v723 = vunpack.c.h.b16 %v530
    %v724 = vunpack.c.l.b16 %v531
    %v725 = vunpack.c.h.b16 %v531
    %v726 = vunpack.c.l.b16 %v532
    %v727 = vunpack.c.h.b16 %v532
    %v728 = vunpack.c.l.b16 %v533
    %v729 = vunpack.c.h.b16 %v533
    %v730 = vunpack.c.l.b16 %v534
    %v731 = vunpack.c.h.b16 %v534
    %v732 = vunpack.c.l.b16 %v535
    %v733 = vunpack.c.h.b16 %v535
    %v734 = vunpack.c.l.b16 %v536
    %v735 = vunpack.c.h.b16 %v536
    %v736 = vunpack.c.l.b16 %v537
    %v737 = vunpack.c.h.b16 %v537
    %v738 = vunpack.c.l.b16 %v538
    %v739 = vunpack.c.h.b16 %v538
    %v740 = vunpack.c.l.b16 %v539
    %v741 = vunpack.c.h.b16 %v539
    %v742 = vunpack.c.l.b16 %v540
    %v743 = vunpack.c.h.b16 %v540
    %v744 = vunpack.c.l.b16 %v541
    %v745 = vunpack.c.h.b16 %v541
    %v746 = vunpack.c.l.b16 %v542
    %v747 = vunpack.c.h.b16 %v542
    %v748 = vunpack.c.l.b16 %v543
    %v749 = vunpack.c.h.b16 %v543
    %v750 = vunpack.c.l.b16 %v544
    %v751 = vunpack.c.h.b16 %v544
    %v752 = vunpack.c.l.b16 %v545
    %v753 = vunpack.c.h.b16 %v545
    %v754 = vunpack.c.l.b16 %v546
    %v755 = vunpack.c.h.b16 %v546
    %v756 = vunpack.c.l.b16 %v547
    %v757 = vunpack.c.h.b16 %v547
    %v758 = vunpack.c.l.b16 %v548
    %v759 = vunpack.c.h.b16 %v548
    %v760 = vunpack.c.l.b16 %v549
    %v761 = vunpack.c.h.b16 %v549
    %v762 = vunpack.c.l.b16 %v550
    %v763 = vunpack.c.h.b16 %v550
    %v764 = vunpack.c.l.b16 %v551
    %v765 = vunpack.c.h.b16 %v551
    %v766 = vunpack.c.l.b16 %v552
    %v767 = vunpack.c.h.b16 %v552
    %v768 = vunpack.c.l.b16 %v553
    %v769 = vunpack.c.h.b16 %v553
    %v770 = vunpack.c.l.b16 %v554
    %v771 = vunpack.c.h.b16 %v554
    %v772 = vunpack.c.l.b16 %v555
    %v773 = vunpack.c.h.b16 %v555
    %v774 = vunpack.c.l.b16 %v556
    %v775 = vunpack.c.h.b16 %v556
    %v776 = vunpack.c.l.b16 %v557
    %v777 = vunpack.c.h.b16 %v557
    %v778 = vunpack.c.l.b16 %v558
    %v779 = vunpack.c.h.b16 %v558
    %v780 = vunpack.c.l.b16 %v559
    %v781 = vunpack.c.h.b16 %v559
    %v782 = vunpack.c.l.b16 %v560
    %v783 = vunpack.c.h.b16 %v560
    %v784 = vunpack.c.l.b16 %v561
    %v785 = vunpack.c.h.b16 %v561
    %v786 = vunpack.c.l.b16 %v562
    %v787 = vunpack.c.h.b16 %v562
    %v788 = vunpack.c.l.b16 %v563
    %v789 = vunpack.c.h.b16 %v563
    %v790 = vunpack.c.l.b16 %v564
    %v791 = vunpack.c.h.b16 %v564
    %v792 = vunpack.c.l.b16 %v565
    %v793 = vunpack.c.h.b16 %v565
    %v794 = vunpack.c.l.b16 %v566
    %v795 = vunpack.c.h.b16 %v566
    %v796 = vunpack.c.l.b16 %v567
    %v797 = vunpack.c.h.b16 %v567
    %v798 = vunpack.c.l.b16 %v568
    %v799 = vunpack.c.h.b16 %v568
    %v800 = vunpack.c.l.b16 %v569
    %v801 = vunpack.c.h.b16 %v569
    %v802 = vunpack.c.l.b16 %v570
    %v803 = vunpack.c.h.b16 %v570
    %v804 = vunpack.c.l.b16 %v571
    %v805 = vunpack.c.h.b16 %v571
    %v806 = vpack.c.b16 %v686, %v678
    %v807 = vpack.c.b16 %v687, %v679
    %v808 = vpack.c.b16 %v688, %v680
    %v809 = vpack.c.b16 %v689, %v681
    %v810 = vpack.c.b16 %v690, %v682
    %v811 = vpack.c.b16 %v691, %v683
    %v812 = vpack.c.b16 %v692, %v684
    %v813 = vpack.c.b16 %v693, %v685
    %v814 = vpack.c.b16 %v702, %v694
    %v815 = vpack.c.b16 %v703, %v695
    %v816 = vpack.c.b16 %v704, %v696
    %v817 = vpack.c.b16 %v705, %v697
    %v818 = vpack.c.b16 %v706, %v698
    %v819 = vpack.c.b16 %v707, %v699
    %v820 = vpack.c.b16 %v708, %v700
    %v821 = vpack.c.b16 %v709, %v701
    %v822 = vpack.c.b16 %v718, %v710
    %v823 = vpack.c.b16 %v719, %v711
    %v824 = vpack.c.b16 %v720, %v712
    %v825 = vpack.c.b16 %v721, %v713
    %v826 = vpack.c.b16 %v722, %v714
    %v827 = vpack.c.b16 %v723, %v715
    %v828 = vpack.c.b16 %v724, %v716
    %v829 = vpack.c.b16 %v725, %v717
    %v830 = vpack.c.b16 %v734, %v726
    %v831 = vpack.c.b16 %v735, %v727
    %v832 = vpack.c.b16 %v736, %v728
    %v833 = vpack.c.b16 %v737, %v729
    %v834 = vpack.c.b16 %v738, %v730
    %v835 = vpack.c.b16 %v739, %v731
    %v836 = vpack.c.b16 %v740, %v732
    %v837 = vpack.c.b16 %v741, %v733
    %v838 = vpack.c.b16 %v750, %v742
    %v839 = vpack.c.b16 %v751, %v743
    %v840 = vpack.c.b16 %v752, %v744
    %v841 = vpack.c.b16 %v753, %v745
    %v842 = vpack.c.b16 %v754, %v746
    %v843 = vpack.c.b16 %v755, %v747
    %v844 = vpack.c.b16 %v756, %v748
    %v845 = vpack.c.b16 %v757, %v749
    %v846 = vpack.c.b16 %v766, %v758
    %v847 = vpack.c.b16 %v767, %v759
    %v848 = vpack.c.b16 %v768, %v760
    %v849 = vpack.c.b16 %v769, %v761
    %v850 = vpack.c.b16 %v770, %v762
    %v851 = vpack.c.b16 %v771, %v763
    %v852 = vpack.c.b16 %v772, %v764
    %v853 = vpack.c.b16 %v773, %v765
    %v854 = vpack.c.b16 %v782, %v774
    %v855 = vpack.c.b16 %v783, %v775
    %v856 = vpack.c.b16 %v784, %v776
    %v857 = vpack.c.b16 %v785, %v777
    %v858 = vpack.c.b16 %v786, %v778
    %v859 = vpack.c.b16 %v787, %v779
    %v860 = vpack.c.b16 %v788, %v780
    %v861 = vpack.c.b16 %v789, %v781
    %v862 = vpack.c.b16 %v798, %v790
    %v863 = vpack.c.b16 %v799, %v791
    %v864 = vpack.c.b16 %v800, %v792
    %v865 = vpack.c.b16 %v801, %v793
    %v866 = vpack.c.b16 %v802, %v794
    %v867 = vpack.c.b16 %v803, %v795
    %v868 = vpack.c.b16 %v804, %v796
    %v869 = vpack.c.b16 %v805, %v797
    %934 = vmatprep.subr.bf16.mxu0 %v807
    %935 = vmatpush1.bf16.msra.mxu0 %v806
    %936 = vmatprep.subr.bf16.mxu0 %v815
    %937 = vmatpush1.bf16.msra.mxu0 %v814
    %938 = vmatprep.subr.bf16.mxu0 %v823
    %939 = vmatpush1.bf16.msra.mxu0 %v822
    %940 = vmatprep.subr.bf16.mxu0 %v831
    %941 = vmatpush1.bf16.msra.mxu0 %v830
    %942 = vmatprep.subr.bf16.mxu0 %v839
    %943 = vmatpush1.bf16.msra.mxu0 %v838
    %944 = vmatprep.subr.bf16.mxu0 %v847
    %945 = vmatpush1.bf16.msra.mxu0 %v846
    %946 = vmatprep.subr.bf16.mxu0 %v855
    %947 = vmatpush1.bf16.msra.mxu0 %v854
    %948 = vmatprep.subr.bf16.mxu0 %v863
    %949 = vmatpush1.bf16.msra.mxu0 %v862
    %950 = vmatprep.subr.bf16.mxu0 0
    %951 = vmatpush1.bf16.msra.mxu0 0
    %952 = vmatprep.subr.bf16.mxu0 0
    %953 = vmatpush1.bf16.msra.mxu0 0
    %954 = vmatprep.subr.bf16.mxu0 0
    %955 = vmatpush1.bf16.msra.mxu0 0
    %956 = vmatprep.subr.bf16.mxu0 0
    %957 = vmatpush1.bf16.msra.mxu0 0
    %958 = vmatprep.subr.bf16.mxu0 0
    %959 = vmatpush1.bf16.msra.mxu0 0
    %960 = vmatprep.subr.bf16.mxu0 0
    %961 = vmatpush1.bf16.msra.mxu0 0
    %962 = vmatprep.subr.bf16.mxu0 0
    %963 = vmatpush1.bf16.msra.mxu0 0
    %964 = vmatprep.subr.bf16.mxu0 0
    %965 = vmatpush1.bf16.msra.mxu0 0
    %966 = vmatprep.mubr.bf16.mxu0 0
    %967 = vmatmul.mubr.bf16.gmra.mrb[0].mxu0 %v500
    %v968 = vpop.f32.mrb[0].mxu0
    %v969 = vadd.f32 %v577, %v968
    %v970 = vpop.f32.mrb[0].mxu0
    %v971 = vadd.f32 %v581, %v970
    %v972 = vpop.f32.mrb[0].mxu0
    %v973 = vadd.f32 %v577, %v972
    %v974 = vpop.f32.mrb[0].mxu0
    %v975 = vadd.f32 %v581, %v974
    %976 = vmatprep.mubr.bf16.mxu0 0
    %977 = vmatmul.mubr.bf16.gmra.mrb[0].mxu0 %v501
    %v978 = vpop.f32.mrb[0].mxu0
    %v979 = vadd.f32 %v577, %v978
    %v980 = vpop.f32.mrb[0].mxu0
    %v981 = vadd.f32 %v581, %v980
    %v982 = vpop.f32.mrb[0].mxu0
    %v983 = vadd.f32 %v577, %v982
    %v984 = vpop.f32.mrb[0].mxu0
    %v985 = vadd.f32 %v581, %v984
    %986 = vmatprep.mubr.bf16.mxu0 0
    %987 = vmatmul.mubr.bf16.gmra.mrb[0].mxu0 %v502
    %v988 = vpop.f32.mrb[0].mxu0
    %v989 = vadd.f32 %v577, %v988
    %v990 = vpop.f32.mrb[0].mxu0
    %v991 = vadd.f32 %v581, %v990
    %v992 = vpop.f32.mrb[0].mxu0
    %v993 = vadd.f32 %v577, %v992
    %v994 = vpop.f32.mrb[0].mxu0
    %v995 = vadd.f32 %v581, %v994
    %996 = vmatprep.mubr.bf16.mxu0 0
    %997 = vmatmul.mubr.bf16.gmra.mrb[0].mxu0 %v503
    %v998 = vpop.f32.mrb[0].mxu0
    %v999 = vadd.f32 %v577, %v998
    %v1000 = vpop.f32.mrb[0].mxu0
    %v1001 = vadd.f32 %v581, %v1000
    %v1002 = vpop.f32.mrb[0].mxu0
    %v1003 = vadd.f32 %v577, %v1002
    %v1004 = vpop.f32.mrb[0].mxu0
    %v1005 = vadd.f32 %v581, %v1004
    %1006 = vmatprep.mubr.bf16.mxu0 0
    %1007 = vmatmul.mubr.bf16.gmra.mrb[0].mxu0 %v504
    %v1008 = vpop.f32.mrb[0].mxu0
    %v1009 = vadd.f32 %v577, %v1008
    %v1010 = vpop.f32.mrb[0].mxu0
    %v1011 = vadd.f32 %v581, %v1010
    %v1012 = vpop.f32.mrb[0].mxu0
    %v1013 = vadd.f32 %v577, %v1012
    %v1014 = vpop.f32.mrb[0].mxu0
    %v1015 = vadd.f32 %v581, %v1014
    %1016 = vmatprep.mubr.bf16.mxu0 0
    %1017 = vmatmul.mubr.bf16.gmra.mrb[0].mxu0 %v505
    %v1018 = vpop.f32.mrb[0].mxu0
    %v1019 = vadd.f32 %v577, %v1018
    %v1020 = vpop.f32.mrb[0].mxu0
    %v1021 = vadd.f32 %v581, %v1020
    %v1022 = vpop.f32.mrb[0].mxu0
    %v1023 = vadd.f32 %v577, %v1022
    %v1024 = vpop.f32.mrb[0].mxu0
    %v1025 = vadd.f32 %v581, %v1024
    %1026 = vmatprep.mubr.bf16.mxu0 0
    %1027 = vmatmul.mubr.bf16.gmra.mrb[0].mxu0 %v506
    %v1028 = vpop.f32.mrb[0].mxu0
    %v1029 = vadd.f32 %v577, %v1028
    %v1030 = vpop.f32.mrb[0].mxu0
    %v1031 = vadd.f32 %v581, %v1030
    %v1032 = vpop.f32.mrb[0].mxu0
    %v1033 = vadd.f32 %v577, %v1032
    %v1034 = vpop.f32.mrb[0].mxu0
    %v1035 = vadd.f32 %v581, %v1034
    %1036 = vmatprep.mubr.bf16.mxu0 0
    %1037 = vmatmul.mubr.bf16.gmra.mrb[0].mxu0 %v507
    %v1038 = vpop.f32.mrb[0].mxu0
    %v1039 = vadd.f32 %v577, %v1038
    %v1040 = vpop.f32.mrb[0].mxu0
    %v1041 = vadd.f32 %v581, %v1040
    %v1042 = vpop.f32.mrb[0].mxu0
    %v1043 = vadd.f32 %v577, %v1042
    %v1044 = vpop.f32.mrb[0].mxu0
    %v1045 = vadd.f32 %v581, %v1044
    %1046 = vdwg.mxu0
    %1047 = vmatprep.subr.bf16.mxu0 %v809
    %1048 = vmatpush1.bf16.msra.mxu0 %v808
    %1049 = vmatprep.subr.bf16.mxu0 %v817
    %1050 = vmatpush1.bf16.msra.mxu0 %v816
    %1051 = vmatprep.subr.bf16.mxu0 %v825
    %1052 = vmatpush1.bf16.msra.mxu0 %v824
    %1053 = vmatprep.subr.bf16.mxu0 %v833
    %1054 = vmatpush1.bf16.msra.mxu0 %v832
    %1055 = vmatprep.subr.bf16.mxu0 %v841
    %1056 = vmatpush1.bf16.msra.mxu0 %v840
    %1057 = vmatprep.subr.bf16.mxu0 %v849
    %1058 = vmatpush1.bf16.msra.mxu0 %v848
    %1059 = vmatprep.subr.bf16.mxu0 %v857
    %1060 = vmatpush1.bf16.msra.mxu0 %v856
    %1061 = vmatprep.subr.bf16.mxu0 %v865
    %1062 = vmatpush1.bf16.msra.mxu0 %v864
    %1063 = vmatprep.subr.bf16.mxu0 0
    %1064 = vmatpush1.bf16.msra.mxu0 0
    %1065 = vmatprep.subr.bf16.mxu0 0
    %1066 = vmatpush1.bf16.msra.mxu0 0
    %1067 = vmatprep.subr.bf16.mxu0 0
    %1068 = vmatpush1.bf16.msra.mxu0 0
    %1069 = vmatprep.subr.bf16.mxu0 0
    %1070 = vmatpush1.bf16.msra.mxu0 0
    %1071 = vmatprep.subr.bf16.mxu0 0
    %1072 = vmatpush1.bf16.msra.mxu0 0
    %1073 = vmatprep.subr.bf16.mxu0 0
    %1074 = vmatpush1.bf16.msra.mxu0 0
    %1075 = vmatprep.subr.bf16.mxu0 0
    %1076 = vmatpush1.bf16.msra.mxu0 0
    %1077 = vmatprep.subr.bf16.mxu0 0
    %1078 = vmatpush1.bf16.msra.mxu0 0
    %1079 = vmatprep.mubr.bf16.mxu0 0
    %1080 = vmatmul.mubr.bf16.gmra.mrb[0].mxu0 %v500
    %v1081 = vpop.f32.mrb[0].mxu0
    %v1082 = vadd.f32 %v585, %v1081
    %v1083 = vpop.f32.mrb[0].mxu0
    %v1084 = vadd.f32 %v589, %v1083
    %v1085 = vpop.f32.mrb[0].mxu0
    %v1086 = vadd.f32 %v585, %v1085
    %v1087 = vpop.f32.mrb[0].mxu0
    %v1088 = vadd.f32 %v589, %v1087
    %1089 = vmatprep.mubr.bf16.mxu0 0
    %1090 = vmatmul.mubr.bf16.gmra.mrb[0].mxu0 %v501
    %v1091 = vpop.f32.mrb[0].mxu0
    %v1092 = vadd.f32 %v585, %v1091
    %v1093 = vpop.f32.mrb[0].mxu0
    %v1094 = vadd.f32 %v589, %v1093
    %v1095 = vpop.f32.mrb[0].mxu0
    %v1096 = vadd.f32 %v585, %v1095
    %v1097 = vpop.f32.mrb[0].mxu0
    %v1098 = vadd.f32 %v589, %v1097
    %1099 = vmatprep.mubr.bf16.mxu0 0
    %1100 = vmatmul.mubr.bf16.gmra.mrb[0].mxu0 %v502
    %v1101 = vpop.f32.mrb[0].mxu0
    %v1102 = vadd.f32 %v585, %v1101
    %v1103 = vpop.f32.mrb[0].mxu0
    %v1104 = vadd.f32 %v589, %v1103
    %v1105 = vpop.f32.mrb[0].mxu0
    %v1106 = vadd.f32 %v585, %v1105
    %v1107 = vpop.f32.mrb[0].mxu0
    %v1108 = vadd.f32 %v589, %v1107
    %1109 = vmatprep.mubr.bf16.mxu0 0
    %1110 = vmatmul.mubr.bf16.gmra.mrb[0].mxu0 %v503
    %v1111 = vpop.f32.mrb[0].mxu0
    %v1112 = vadd.f32 %v585, %v1111
    %v1113 = vpop.f32.mrb[0].mxu0
    %v1114 = vadd.f32 %v589, %v1113
    %v1115 = vpop.f32.mrb[0].mxu0
    %v1116 = vadd.f32 %v585, %v1115
    %v1117 = vpop.f32.mrb[0].mxu0
    %v1118 = vadd.f32 %v589, %v1117
    %1119 = vmatprep.mubr.bf16.mxu0 0
    %1120 = vmatmul.mubr.bf16.gmra.mrb[0].mxu0 %v504
    %v1121 = vpop.f32.mrb[0].mxu0
    %v1122 = vadd.f32 %v585, %v1121
    %v1123 = vpop.f32.mrb[0].mxu0
    %v1124 = vadd.f32 %v589, %v1123
    %v1125 = vpop.f32.mrb[0].mxu0
    %v1126 = vadd.f32 %v585, %v1125
    %v1127 = vpop.f32.mrb[0].mxu0
    %v1128 = vadd.f32 %v589, %v1127
    %1129 = vmatprep.mubr.bf16.mxu0 0
    %1130 = vmatmul.mubr.bf16.gmra.mrb[0].mxu0 %v505
    %v1131 = vpop.f32.mrb[0].mxu0
    %v1132 = vadd.f32 %v585, %v1131
    %v1133 = vpop.f32.mrb[0].mxu0
    %v1134 = vadd.f32 %v589, %v1133
    %v1135 = vpop.f32.mrb[0].mxu0
    %v1136 = vadd.f32 %v585, %v1135
    %v1137 = vpop.f32.mrb[0].mxu0
    %v1138 = vadd.f32 %v589, %v1137
    %1139 = vmatprep.mubr.bf16.mxu0 0
    %1140 = vmatmul.mubr.bf16.gmra.mrb[0].mxu0 %v506
    %v1141 = vpop.f32.mrb[0].mxu0
    %v1142 = vadd.f32 %v585, %v1141
    %v1143 = vpop.f32.mrb[0].mxu0
    %v1144 = vadd.f32 %v589, %v1143
    %v1145 = vpop.f32.mrb[0].mxu0
    %v1146 = vadd.f32 %v585, %v1145
    %v1147 = vpop.f32.mrb[0].mxu0
    %v1148 = vadd.f32 %v589, %v1147
    %1149 = vmatprep.mubr.bf16.mxu0 0
    %1150 = vmatmul.mubr.bf16.gmra.mrb[0].mxu0 %v507
    %v1151 = vpop.f32.mrb[0].mxu0
    %v1152 = vadd.f32 %v585, %v1151
    %v1153 = vpop.f32.mrb[0].mxu0
    %v1154 = vadd.f32 %v589, %v1153
    %v1155 = vpop.f32.mrb[0].mxu0
    %v1156 = vadd.f32 %v585, %v1155
    %v1157 = vpop.f32.mrb[0].mxu0
    %v1158 = vadd.f32 %v589, %v1157
    %1159 = vdwg.mxu0
    %1160 = vmatprep.subr.bf16.mxu0 %v811
    %1161 = vmatpush1.bf16.msra.mxu0 %v810
    %1162 = vmatprep.subr.bf16.mxu0 %v819
    %1163 = vmatpush1.bf16.msra.mxu0 %v818
    %1164 = vmatprep.subr.bf16.mxu0 %v827
    %1165 = vmatpush1.bf16.msra.mxu0 %v826
    %1166 = vmatprep.subr.bf16.mxu0 %v835
    %1167 = vmatpush1.bf16.msra.mxu0 %v834
    %1168 = vmatprep.subr.bf16.mxu0 %v843
    %1169 = vmatpush1.bf16.msra.mxu0 %v842
    %1170 = vmatprep.subr.bf16.mxu0 %v851
    %1171 = vmatpush1.bf16.msra.mxu0 %v850
    %1172 = vmatprep.subr.bf16.mxu0 %v859
    %1173 = vmatpush1.bf16.msra.mxu0 %v858
    %1174 = vmatprep.subr.bf16.mxu0 %v867
    %1175 = vmatpush1.bf16.msra.mxu0 %v866
    %1176 = vmatprep.subr.bf16.mxu0 0
    %1177 = vmatpush1.bf16.msra.mxu0 0
    %1178 = vmatprep.subr.bf16.mxu0 0
    %1179 = vmatpush1.bf16.msra.mxu0 0
    %1180 = vmatprep.subr.bf16.mxu0 0
    %1181 = vmatpush1.bf16.msra.mxu0 0
    %1182 = vmatprep.subr.bf16.mxu0 0
    %1183 = vmatpush1.bf16.msra.mxu0 0
    %1184 = vmatprep.subr.bf16.mxu0 0
    %1185 = vmatpush1.bf16.msra.mxu0 0
    %1186 = vmatprep.subr.bf16.mxu0 0
    %1187 = vmatpush1.bf16.msra.mxu0 0
    %1188 = vmatprep.subr.bf16.mxu0 0
    %1189 = vmatpush1.bf16.msra.mxu0 0
    %1190 = vmatprep.subr.bf16.mxu0 0
    %1191 = vmatpush1.bf16.msra.mxu0 0
    %1192 = vmatprep.mubr.bf16.mxu0 0
    %1193 = vmatmul.mubr.bf16.gmra.mrb[0].mxu0 %v500
    %v1194 = vpop.f32.mrb[0].mxu0
    %v1195 = vadd.f32 %v593, %v1194
    %v1196 = vpop.f32.mrb[0].mxu0
    %v1197 = vadd.f32 %v597, %v1196
    %v1198 = vpop.f32.mrb[0].mxu0
    %v1199 = vadd.f32 %v593, %v1198
    %v1200 = vpop.f32.mrb[0].mxu0
    %v1201 = vadd.f32 %v597, %v1200
    %1202 = vmatprep.mubr.bf16.mxu0 0
    %1203 = vmatmul.mubr.bf16.gmra.mrb[0].mxu0 %v501
    %v1204 = vpop.f32.mrb[0].mxu0
    %v1205 = vadd.f32 %v593, %v1204
    %v1206 = vpop.f32.mrb[0].mxu0
    %v1207 = vadd.f32 %v597, %v1206
    %v1208 = vpop.f32.mrb[0].mxu0
    %v1209 = vadd.f32 %v593, %v1208
    %v1210 = vpop.f32.mrb[0].mxu0
    %v1211 = vadd.f32 %v597, %v1210
    %1212 = vmatprep.mubr.bf16.mxu0 0
    %1213 = vmatmul.mubr.bf16.gmra.mrb[0].mxu0 %v502
    %v1214 = vpop.f32.mrb[0].mxu0
    %v1215 = vadd.f32 %v593, %v1214
    %v1216 = vpop.f32.mrb[0].mxu0
    %v1217 = vadd.f32 %v597, %v1216
    %v1218 = vpop.f32.mrb[0].mxu0
    %v1219 = vadd.f32 %v593, %v1218
    %v1220 = vpop.f32.mrb[0].mxu0
    %v1221 = vadd.f32 %v597, %v1220
    %1222 = vmatprep.mubr.bf16.mxu0 0
    %1223 = vmatmul.mubr.bf16.gmra.mrb[0].mxu0 %v503
    %v1224 = vpop.f32.mrb[0].mxu0
    %v1225 = vadd.f32 %v593, %v1224
    %v1226 = vpop.f32.mrb[0].mxu0
    %v1227 = vadd.f32 %v597, %v1226
    %v1228 = vpop.f32.mrb[0].mxu0
    %v1229 = vadd.f32 %v593, %v1228
    %v1230 = vpop.f32.mrb[0].mxu0
    %v1231 = vadd.f32 %v597, %v1230
    %1232 = vmatprep.mubr.bf16.mxu0 0
    %1233 = vmatmul.mubr.bf16.gmra.mrb[0].mxu0 %v504
    %v1234 = vpop.f32.mrb[0].mxu0
    %v1235 = vadd.f32 %v593, %v1234
    %v1236 = vpop.f32.mrb[0].mxu0
    %v1237 = vadd.f32 %v597, %v1236
    %v1238 = vpop.f32.mrb[0].mxu0
    %v1239 = vadd.f32 %v593, %v1238
    %v1240 = vpop.f32.mrb[0].mxu0
    %v1241 = vadd.f32 %v597, %v1240
    %1242 = vmatprep.mubr.bf16.mxu0 0
    %1243 = vmatmul.mubr.bf16.gmra.mrb[0].mxu0 %v505
    %v1244 = vpop.f32.mrb[0].mxu0
    %v1245 = vadd.f32 %v593, %v1244
    %v1246 = vpop.f32.mrb[0].mxu0
    %v1247 = vadd.f32 %v597, %v1246
    %v1248 = vpop.f32.mrb[0].mxu0
    %v1249 = vadd.f32 %v593, %v1248
    %v1250 = vpop.f32.mrb[0].mxu0
    %v1251 = vadd.f32 %v597, %v1250
    %1252 = vmatprep.mubr.bf16.mxu0 0
    %1253 = vmatmul.mubr.bf16.gmra.mrb[0].mxu0 %v506
    %v1254 = vpop.f32.mrb[0].mxu0
    %v1255 = vadd.f32 %v593, %v1254
    %v1256 = vpop.f32.mrb[0].mxu0
    %v1257 = vadd.f32 %v597, %v1256
    %v1258 = vpop.f32.mrb[0].mxu0
    %v1259 = vadd.f32 %v593, %v1258
    %v1260 = vpop.f32.mrb[0].mxu0
    %v1261 = vadd.f32 %v597, %v1260
    %1262 = vmatprep.mubr.bf16.mxu0 0
    %1263 = vmatmul.mubr.bf16.gmra.mrb[0].mxu0 %v507
    %v1264 = vpop.f32.mrb[0].mxu0
    %v1265 = vadd.f32 %v593, %v1264
    %v1266 = vpop.f32.mrb[0].mxu0
    %v1267 = vadd.f32 %v597, %v1266
    %v1268 = vpop.f32.mrb[0].mxu0
    %v1269 = vadd.f32 %v593, %v1268
    %v1270 = vpop.f32.mrb[0].mxu0
    %v1271 = vadd.f32 %v597, %v1270
    %1272 = vdwg.mxu0
    %1273 = vmatprep.subr.bf16.mxu0 %v813
    %1274 = vmatpush1.bf16.msra.mxu0 %v812
    %1275 = vmatprep.subr.bf16.mxu0 %v821
    %1276 = vmatpush1.bf16.msra.mxu0 %v820
    %1277 = vmatprep.subr.bf16.mxu0 %v829
    %1278 = vmatpush1.bf16.msra.mxu0 %v828
    %1279 = vmatprep.subr.bf16.mxu0 %v837
    %1280 = vmatpush1.bf16.msra.mxu0 %v836
    %1281 = vmatprep.subr.bf16.mxu0 %v845
    %1282 = vmatpush1.bf16.msra.mxu0 %v844
    %1283 = vmatprep.subr.bf16.mxu0 %v853
    %1284 = vmatpush1.bf16.msra.mxu0 %v852
    %1285 = vmatprep.subr.bf16.mxu0 %v861
    %1286 = vmatpush1.bf16.msra.mxu0 %v860
    %1287 = vmatprep.subr.bf16.mxu0 %v869
    %1288 = vmatpush1.bf16.msra.mxu0 %v868
    %1289 = vmatprep.subr.bf16.mxu0 0
    %1290 = vmatpush1.bf16.msra.mxu0 0
    %1291 = vmatprep.subr.bf16.mxu0 0
    %1292 = vmatpush1.bf16.msra.mxu0 0
    %1293 = vmatprep.subr.bf16.mxu0 0
    %1294 = vmatpush1.bf16.msra.mxu0 0
    %1295 = vmatprep.subr.bf16.mxu0 0
    %1296 = vmatpush1.bf16.msra.mxu0 0
    %1297 = vmatprep.subr.bf16.mxu0 0
    %1298 = vmatpush1.bf16.msra.mxu0 0
    %1299 = vmatprep.subr.bf16.mxu0 0
    %1300 = vmatpush1.bf16.msra.mxu0 0
    %1301 = vmatprep.subr.bf16.mxu0 0
    %1302 = vmatpush1.bf16.msra.mxu0 0
    %1303 = vmatprep.subr.bf16.mxu0 0
    %1304 = vmatpush1.bf16.msra.mxu0 0
    %1305 = vmatprep.mubr.bf16.mxu0 0
    %1306 = vmatmul.mubr.bf16.gmra.mrb[0].mxu0 %v500
    %v1307 = vpop.f32.mrb[0].mxu0
    %v1308 = vadd.f32 %v601, %v1307
    %v1309 = vpop.f32.mrb[0].mxu0
    %v1310 = vadd.f32 %v605, %v1309
    %v1311 = vpop.f32.mrb[0].mxu0
    %v1312 = vadd.f32 %v601, %v1311
    %v1313 = vpop.f32.mrb[0].mxu0
    %v1314 = vadd.f32 %v605, %v1313
    %1315 = vmatprep.mubr.bf16.mxu0 0
    %1316 = vmatmul.mubr.bf16.gmra.mrb[0].mxu0 %v501
    %v1317 = vpop.f32.mrb[0].mxu0
    %v1318 = vadd.f32 %v601, %v1317
    %v1319 = vpop.f32.mrb[0].mxu0
    %v1320 = vadd.f32 %v605, %v1319
    %v1321 = vpop.f32.mrb[0].mxu0
    %v1322 = vadd.f32 %v601, %v1321
    %v1323 = vpop.f32.mrb[0].mxu0
    %v1324 = vadd.f32 %v605, %v1323
    %1325 = vmatprep.mubr.bf16.mxu0 0
    %1326 = vmatmul.mubr.bf16.gmra.mrb[0].mxu0 %v502
    %v1327 = vpop.f32.mrb[0].mxu0
    %v1328 = vadd.f32 %v601, %v1327
    %v1329 = vpop.f32.mrb[0].mxu0
    %v1330 = vadd.f32 %v605, %v1329
    %v1331 = vpop.f32.mrb[0].mxu0
    %v1332 = vadd.f32 %v601, %v1331
    %v1333 = vpop.f32.mrb[0].mxu0
    %v1334 = vadd.f32 %v605, %v1333
    %1335 = vmatprep.mubr.bf16.mxu0 0
    %1336 = vmatmul.mubr.bf16.gmra.mrb[0].mxu0 %v503
    %v1337 = vpop.f32.mrb[0].mxu0
    %v1338 = vadd.f32 %v601, %v1337
    %v1339 = vpop.f32.mrb[0].mxu0
    %v1340 = vadd.f32 %v605, %v1339
    %v1341 = vpop.f32.mrb[0].mxu0
    %v1342 = vadd.f32 %v601, %v1341
    %v1343 = vpop.f32.mrb[0].mxu0
    %v1344 = vadd.f32 %v605, %v1343
    %1345 = vmatprep.mubr.bf16.mxu0 0
    %1346 = vmatmul.mubr.bf16.gmra.mrb[0].mxu0 %v504
    %v1347 = vpop.f32.mrb[0].mxu0
    %v1348 = vadd.f32 %v601, %v1347
    %v1349 = vpop.f32.mrb[0].mxu0
    %v1350 = vadd.f32 %v605, %v1349
    %v1351 = vpop.f32.mrb[0].mxu0
    %v1352 = vadd.f32 %v601, %v1351
    %v1353 = vpop.f32.mrb[0].mxu0
    %v1354 = vadd.f32 %v605, %v1353
    %1355 = vmatprep.mubr.bf16.mxu0 0
    %1356 = vmatmul.mubr.bf16.gmra.mrb[0].mxu0 %v505
    %v1357 = vpop.f32.mrb[0].mxu0
    %v1358 = vadd.f32 %v601, %v1357
    %v1359 = vpop.f32.mrb[0].mxu0
    %v1360 = vadd.f32 %v605, %v1359
    %v1361 = vpop.f32.mrb[0].mxu0
    %v1362 = vadd.f32 %v601, %v1361
    %v1363 = vpop.f32.mrb[0].mxu0
    %v1364 = vadd.f32 %v605, %v1363
    %1365 = vmatprep.mubr.bf16.mxu0 0
    %1366 = vmatmul.mubr.bf16.gmra.mrb[0].mxu0 %v506
    %v1367 = vpop.f32.mrb[0].mxu0
    %v1368 = vadd.f32 %v601, %v1367
    %v1369 = vpop.f32.mrb[0].mxu0
    %v1370 = vadd.f32 %v605, %v1369
    %v1371 = vpop.f32.mrb[0].mxu0
    %v1372 = vadd.f32 %v601, %v1371
    %v1373 = vpop.f32.mrb[0].mxu0
    %v1374 = vadd.f32 %v605, %v1373
    %1375 = vmatprep.mubr.bf16.mxu0 0
    %1376 = vmatmul.mubr.bf16.gmra.mrb[0].mxu0 %v507
    %v1377 = vpop.f32.mrb[0].mxu0
    %v1378 = vadd.f32 %v601, %v1377
    %v1379 = vpop.f32.mrb[0].mxu0
    %v1380 = vadd.f32 %v605, %v1379
    %v1381 = vpop.f32.mrb[0].mxu0
    %v1382 = vadd.f32 %v601, %v1381
    %v1383 = vpop.f32.mrb[0].mxu0
    %v1384 = vadd.f32 %v605, %v1383
    %1385 = vdwg.mxu0
    %v1386 = vmax.f32 %v969, 0.0
    %v1387 = vmax.f32 %v971, 0.0
    %v1388 = vmax.f32 %v1082, 0.0
    %v1389 = vmax.f32 %v1084, 0.0
    %v1390 = vmax.f32 %v1195, 0.0
    %v1391 = vmax.f32 %v1197, 0.0
    %v1392 = vmax.f32 %v1308, 0.0
    %v1393 = vmax.f32 %v1310, 0.0
    %v1394 = vmax.f32 %v973, 0.0
    %v1395 = vmax.f32 %v975, 0.0
    %v1396 = vmax.f32 %v1086, 0.0
    %v1397 = vmax.f32 %v1088, 0.0
    %v1398 = vmax.f32 %v1199, 0.0
    %v1399 = vmax.f32 %v1201, 0.0
    %v1400 = vmax.f32 %v1312, 0.0
    %v1401 = vmax.f32 %v1314, 0.0
    %v1402 = vmax.f32 %v979, 0.0
    %v1403 = vmax.f32 %v981, 0.0
    %v1404 = vmax.f32 %v1092, 0.0
    %v1405 = vmax.f32 %v1094, 0.0
    %v1406 = vmax.f32 %v1205, 0.0
    %v1407 = vmax.f32 %v1207, 0.0
    %v1408 = vmax.f32 %v1318, 0.0
    %v1409 = vmax.f32 %v1320, 0.0
    %v1410 = vmax.f32 %v983, 0.0
    %v1411 = vmax.f32 %v985, 0.0
    %v1412 = vmax.f32 %v1096, 0.0
    %v1413 = vmax.f32 %v1098, 0.0
    %v1414 = vmax.f32 %v1209, 0.0
    %v1415 = vmax.f32 %v1211, 0.0
    %v1416 = vmax.f32 %v1322, 0.0
    %v1417 = vmax.f32 %v1324, 0.0
    %v1418 = vmax.f32 %v989, 0.0
    %v1419 = vmax.f32 %v991, 0.0
    %v1420 = vmax.f32 %v1102, 0.0
    %v1421 = vmax.f32 %v1104, 0.0
    %v1422 = vmax.f32 %v1215, 0.0
    %v1423 = vmax.f32 %v1217, 0.0
    %v1424 = vmax.f32 %v1328, 0.0
    %v1425 = vmax.f32 %v1330, 0.0
    %v1426 = vmax.f32 %v993, 0.0
    %v1427 = vmax.f32 %v995, 0.0
    %v1428 = vmax.f32 %v1106, 0.0
    %v1429 = vmax.f32 %v1108, 0.0
    %v1430 = vmax.f32 %v1219, 0.0
    %v1431 = vmax.f32 %v1221, 0.0
    %v1432 = vmax.f32 %v1332, 0.0
    %v1433 = vmax.f32 %v1334, 0.0
    %v1434 = vmax.f32 %v999, 0.0
    %v1435 = vmax.f32 %v1001, 0.0
    %v1436 = vmax.f32 %v1112, 0.0
    %v1437 = vmax.f32 %v1114, 0.0
    %v1438 = vmax.f32 %v1225, 0.0
    %v1439 = vmax.f32 %v1227, 0.0
    %v1440 = vmax.f32 %v1338, 0.0
    %v1441 = vmax.f32 %v1340, 0.0
    %v1442 = vmax.f32 %v1003, 0.0
    %v1443 = vmax.f32 %v1005, 0.0
    %v1444 = vmax.f32 %v1116, 0.0
    %v1445 = vmax.f32 %v1118, 0.0
    %v1446 = vmax.f32 %v1229, 0.0
    %v1447 = vmax.f32 %v1231, 0.0
    %v1448 = vmax.f32 %v1342, 0.0
    %v1449 = vmax.f32 %v1344, 0.0
    %v1450 = vmax.f32 %v1009, 0.0
    %v1451 = vmax.f32 %v1011, 0.0
    %v1452 = vmax.f32 %v1122, 0.0
    %v1453 = vmax.f32 %v1124, 0.0
    %v1454 = vmax.f32 %v1235, 0.0
    %v1455 = vmax.f32 %v1237, 0.0
    %v1456 = vmax.f32 %v1348, 0.0
    %v1457 = vmax.f32 %v1350, 0.0
    %v1458 = vmax.f32 %v1013, 0.0
    %v1459 = vmax.f32 %v1015, 0.0
    %v1460 = vmax.f32 %v1126, 0.0
    %v1461 = vmax.f32 %v1128, 0.0
    %v1462 = vmax.f32 %v1239, 0.0
    %v1463 = vmax.f32 %v1241, 0.0
    %v1464 = vmax.f32 %v1352, 0.0
    %v1465 = vmax.f32 %v1354, 0.0
    %v1466 = vmax.f32 %v1019, 0.0
    %v1467 = vmax.f32 %v1021, 0.0
    %v1468 = vmax.f32 %v1132, 0.0
    %v1469 = vmax.f32 %v1134, 0.0
    %v1470 = vmax.f32 %v1245, 0.0
    %v1471 = vmax.f32 %v1247, 0.0
    %v1472 = vmax.f32 %v1358, 0.0
    %v1473 = vmax.f32 %v1360, 0.0
    %v1474 = vmax.f32 %v1023, 0.0
    %v1475 = vmax.f32 %v1025, 0.0
    %v1476 = vmax.f32 %v1136, 0.0
    %v1477 = vmax.f32 %v1138, 0.0
    %v1478 = vmax.f32 %v1249, 0.0
    %v1479 = vmax.f32 %v1251, 0.0
    %v1480 = vmax.f32 %v1362, 0.0
    %v1481 = vmax.f32 %v1364, 0.0
    %v1482 = vmax.f32 %v1029, 0.0
    %v1483 = vmax.f32 %v1031, 0.0
    %v1484 = vmax.f32 %v1142, 0.0
    %v1485 = vmax.f32 %v1144, 0.0
    %v1486 = vmax.f32 %v1255, 0.0
    %v1487 = vmax.f32 %v1257, 0.0
    %v1488 = vmax.f32 %v1368, 0.0
    %v1489 = vmax.f32 %v1370, 0.0
    %v1490 = vmax.f32 %v1033, 0.0
    %v1491 = vmax.f32 %v1035, 0.0
    %v1492 = vmax.f32 %v1146, 0.0
    %v1493 = vmax.f32 %v1148, 0.0
    %v1494 = vmax.f32 %v1259, 0.0
    %v1495 = vmax.f32 %v1261, 0.0
    %v1496 = vmax.f32 %v1372, 0.0
    %v1497 = vmax.f32 %v1374, 0.0
    %v1498 = vmax.f32 %v1039, 0.0
    %v1499 = vmax.f32 %v1041, 0.0
    %v1500 = vmax.f32 %v1152, 0.0
    %v1501 = vmax.f32 %v1154, 0.0
    %v1502 = vmax.f32 %v1265, 0.0
    %v1503 = vmax.f32 %v1267, 0.0
    %v1504 = vmax.f32 %v1378, 0.0
    %v1505 = vmax.f32 %v1380, 0.0
    %v1506 = vmax.f32 %v1043, 0.0
    %v1507 = vmax.f32 %v1045, 0.0
    %v1508 = vmax.f32 %v1156, 0.0
    %v1509 = vmax.f32 %v1158, 0.0
    %v1510 = vmax.f32 %v1269, 0.0
    %v1511 = vmax.f32 %v1271, 0.0
    %v1512 = vmax.f32 %v1382, 0.0
    %v1513 = vmax.f32 %v1384, 0.0
    %v1514 = vpack.c.bf16 %v1394, %v1386
    %v1515 = vpack.c.bf16 %v1395, %v1387
    %v1516 = vpack.c.bf16 %v1396, %v1388
    %v1517 = vpack.c.bf16 %v1397, %v1389
    %v1518 = vpack.c.bf16 %v1398, %v1390
    %v1519 = vpack.c.bf16 %v1399, %v1391
    %v1520 = vpack.c.bf16 %v1400, %v1392
    %v1521 = vpack.c.bf16 %v1401, %v1393
    %v1522 = vpack.c.bf16 %v1410, %v1402
    %v1523 = vpack.c.bf16 %v1411, %v1403
    %v1524 = vpack.c.bf16 %v1412, %v1404
    %v1525 = vpack.c.bf16 %v1413, %v1405
    %v1526 = vpack.c.bf16 %v1414, %v1406
    %v1527 = vpack.c.bf16 %v1415, %v1407
    %v1528 = vpack.c.bf16 %v1416, %v1408
    %v1529 = vpack.c.bf16 %v1417, %v1409
    %v1530 = vpack.c.bf16 %v1426, %v1418
    %v1531 = vpack.c.bf16 %v1427, %v1419
    %v1532 = vpack.c.bf16 %v1428, %v1420
    %v1533 = vpack.c.bf16 %v1429, %v1421
    %v1534 = vpack.c.bf16 %v1430, %v1422
    %v1535 = vpack.c.bf16 %v1431, %v1423
    %v1536 = vpack.c.bf16 %v1432, %v1424
    %v1537 = vpack.c.bf16 %v1433, %v1425
    %v1538 = vpack.c.bf16 %v1442, %v1434
    %v1539 = vpack.c.bf16 %v1443, %v1435
    %v1540 = vpack.c.bf16 %v1444, %v1436
    %v1541 = vpack.c.bf16 %v1445, %v1437
    %v1542 = vpack.c.bf16 %v1446, %v1438
    %v1543 = vpack.c.bf16 %v1447, %v1439
    %v1544 = vpack.c.bf16 %v1448, %v1440
    %v1545 = vpack.c.bf16 %v1449, %v1441
    %v1546 = vpack.c.bf16 %v1458, %v1450
    %v1547 = vpack.c.bf16 %v1459, %v1451
    %v1548 = vpack.c.bf16 %v1460, %v1452
    %v1549 = vpack.c.bf16 %v1461, %v1453
    %v1550 = vpack.c.bf16 %v1462, %v1454
    %v1551 = vpack.c.bf16 %v1463, %v1455
    %v1552 = vpack.c.bf16 %v1464, %v1456
    %v1553 = vpack.c.bf16 %v1465, %v1457
    %v1554 = vpack.c.bf16 %v1474, %v1466
    %v1555 = vpack.c.bf16 %v1475, %v1467
    %v1556 = vpack.c.bf16 %v1476, %v1468
    %v1557 = vpack.c.bf16 %v1477, %v1469
    %v1558 = vpack.c.bf16 %v1478, %v1470
    %v1559 = vpack.c.bf16 %v1479, %v1471
    %v1560 = vpack.c.bf16 %v1480, %v1472
    %v1561 = vpack.c.bf16 %v1481, %v1473
    %v1562 = vpack.c.bf16 %v1490, %v1482
    %v1563 = vpack.c.bf16 %v1491, %v1483
    %v1564 = vpack.c.bf16 %v1492, %v1484
    %v1565 = vpack.c.bf16 %v1493, %v1485
    %v1566 = vpack.c.bf16 %v1494, %v1486
    %v1567 = vpack.c.bf16 %v1495, %v1487
    %v1568 = vpack.c.bf16 %v1496, %v1488
    %v1569 = vpack.c.bf16 %v1497, %v1489
    %v1570 = vpack.c.bf16 %v1506, %v1498
    %v1571 = vpack.c.bf16 %v1507, %v1499
    %v1572 = vpack.c.bf16 %v1508, %v1500
    %v1573 = vpack.c.bf16 %v1509, %v1501
    %v1574 = vpack.c.bf16 %v1510, %v1502
    %v1575 = vpack.c.bf16 %v1511, %v1503
    %v1576 = vpack.c.bf16 %v1512, %v1504
    %v1577 = vpack.c.bf16 %v1513, %v1505
    %v1578 = vunpack.i.l.bf16 %v1514
    %v1579 = vunpack.i.h.bf16 %v1514
    %v1580 = vmax.f32 %v1578, %v1579
    %v1581 = vrot.slane %v1580, 4
    %v1582 = vmax.f32 %v1580, %v1581
    %v1583 = vrot.slane %v1582, 2
    %v1584 = vmax.f32 %v1582, %v1583
    %v1585 = vrot.slane %v1584, 1
    %v1586 = vmax.f32 %v1584, %v1585
    %v1587 = vpack.i.bf16 %v1586, %v1586
    %v1588 = vunpack.i.l.bf16 %v1515
    %v1589 = vunpack.i.h.bf16 %v1515
    %v1590 = vmax.f32 %v1588, %v1589
    %v1591 = vrot.slane %v1590, 4
    %v1592 = vmax.f32 %v1590, %v1591
    %v1593 = vrot.slane %v1592, 2
    %v1594 = vmax.f32 %v1592, %v1593
    %v1595 = vrot.slane %v1594, 1
    %v1596 = vmax.f32 %v1594, %v1595
    %v1597 = vpack.i.bf16 %v1596, %v1596
    %v1598 = vunpack.i.l.bf16 %v1516
    %v1599 = vunpack.i.h.bf16 %v1516
    %v1600 = vmax.f32 %v1598, %v1599
    %v1601 = vrot.slane %v1600, 4
    %v1602 = vmax.f32 %v1600, %v1601
    %v1603 = vrot.slane %v1602, 2
    %v1604 = vmax.f32 %v1602, %v1603
    %v1605 = vrot.slane %v1604, 1
    %v1606 = vmax.f32 %v1604, %v1605
    %v1607 = vpack.i.bf16 %v1606, %v1606
    %v1608 = vunpack.i.l.bf16 %v1517
    %v1609 = vunpack.i.h.bf16 %v1517
    %v1610 = vmax.f32 %v1608, %v1609
    %v1611 = vrot.slane %v1610, 4
    %v1612 = vmax.f32 %v1610, %v1611
    %v1613 = vrot.slane %v1612, 2
    %v1614 = vmax.f32 %v1612, %v1613
    %v1615 = vrot.slane %v1614, 1
    %v1616 = vmax.f32 %v1614, %v1615
    %v1617 = vpack.i.bf16 %v1616, %v1616
    %v1618 = vunpack.i.l.bf16 %v1518
    %v1619 = vunpack.i.h.bf16 %v1518
    %v1620 = vmax.f32 %v1618, %v1619
    %v1621 = vrot.slane %v1620, 4
    %v1622 = vmax.f32 %v1620, %v1621
    %v1623 = vrot.slane %v1622, 2
    %v1624 = vmax.f32 %v1622, %v1623
    %v1625 = vrot.slane %v1624, 1
    %v1626 = vmax.f32 %v1624, %v1625
    %v1627 = vpack.i.bf16 %v1626, %v1626
    %v1628 = vunpack.i.l.bf16 %v1519
    %v1629 = vunpack.i.h.bf16 %v1519
    %v1630 = vmax.f32 %v1628, %v1629
    %v1631 = vrot.slane %v1630, 4
    %v1632 = vmax.f32 %v1630, %v1631
    %v1633 = vrot.slane %v1632, 2
    %v1634 = vmax.f32 %v1632, %v1633
    %v1635 = vrot.slane %v1634, 1
    %v1636 = vmax.f32 %v1634, %v1635
    %v1637 = vpack.i.bf16 %v1636, %v1636
    %v1638 = vunpack.i.l.bf16 %v1520
    %v1639 = vunpack.i.h.bf16 %v1520
    %v1640 = vmax.f32 %v1638, %v1639
    %v1641 = vrot.slane %v1640, 4
    %v1642 = vmax.f32 %v1640, %v1641
    %v1643 = vrot.slane %v1642, 2
    %v1644 = vmax.f32 %v1642, %v1643
    %v1645 = vrot.slane %v1644, 1
    %v1646 = vmax.f32 %v1644, %v1645
    %v1647 = vpack.i.bf16 %v1646, %v1646
    %v1648 = vunpack.i.l.bf16 %v1521
    %v1649 = vunpack.i.h.bf16 %v1521
    %v1650 = vmax.f32 %v1648, %v1649
    %v1651 = vrot.slane %v1650, 4
    %v1652 = vmax.f32 %v1650, %v1651
    %v1653 = vrot.slane %v1652, 2
    %v1654 = vmax.f32 %v1652, %v1653
    %v1655 = vrot.slane %v1654, 1
    %v1656 = vmax.f32 %v1654, %v1655
    %v1657 = vpack.i.bf16 %v1656, %v1656
    %v1658 = vunpack.i.l.bf16 %v1522
    %v1659 = vunpack.i.h.bf16 %v1522
    %v1660 = vmax.f32 %v1658, %v1659
    %v1661 = vrot.slane %v1660, 4
    %v1662 = vmax.f32 %v1660, %v1661
    %v1663 = vrot.slane %v1662, 2
    %v1664 = vmax.f32 %v1662, %v1663
    %v1665 = vrot.slane %v1664, 1
    %v1666 = vmax.f32 %v1664, %v1665
    %v1667 = vpack.i.bf16 %v1666, %v1666
    %v1668 = vunpack.i.l.bf16 %v1523
    %v1669 = vunpack.i.h.bf16 %v1523
    %v1670 = vmax.f32 %v1668, %v1669
    %v1671 = vrot.slane %v1670, 4
    %v1672 = vmax.f32 %v1670, %v1671
    %v1673 = vrot.slane %v1672, 2
    %v1674 = vmax.f32 %v1672, %v1673
    %v1675 = vrot.slane %v1674, 1
    %v1676 = vmax.f32 %v1674, %v1675
    %v1677 = vpack.i.bf16 %v1676, %v1676
    %v1678 = vunpack.i.l.bf16 %v1524
    %v1679 = vunpack.i.h.bf16 %v1524
    %v1680 = vmax.f32 %v1678, %v1679
    %v1681 = vrot.slane %v1680, 4
    %v1682 = vmax.f32 %v1680, %v1681
    %v1683 = vrot.slane %v1682, 2
    %v1684 = vmax.f32 %v1682, %v1683
    %v1685 = vrot.slane %v1684, 1
    %v1686 = vmax.f32 %v1684, %v1685
    %v1687 = vpack.i.bf16 %v1686, %v1686
    %v1688 = vunpack.i.l.bf16 %v1525
    %v1689 = vunpack.i.h.bf16 %v1525
    %v1690 = vmax.f32 %v1688, %v1689
    %v1691 = vrot.slane %v1690, 4
    %v1692 = vmax.f32 %v1690, %v1691
    %v1693 = vrot.slane %v1692, 2
    %v1694 = vmax.f32 %v1692, %v1693
    %v1695 = vrot.slane %v1694, 1
    %v1696 = vmax.f32 %v1694, %v1695
    %v1697 = vpack.i.bf16 %v1696, %v1696
    %v1698 = vunpack.i.l.bf16 %v1526
    %v1699 = vunpack.i.h.bf16 %v1526
    %v1700 = vmax.f32 %v1698, %v1699
    %v1701 = vrot.slane %v1700, 4
    %v1702 = vmax.f32 %v1700, %v1701
    %v1703 = vrot.slane %v1702, 2
    %v1704 = vmax.f32 %v1702, %v1703
    %v1705 = vrot.slane %v1704, 1
    %v1706 = vmax.f32 %v1704, %v1705
    %v1707 = vpack.i.bf16 %v1706, %v1706
    %v1708 = vunpack.i.l.bf16 %v1527
    %v1709 = vunpack.i.h.bf16 %v1527
    %v1710 = vmax.f32 %v1708, %v1709
    %v1711 = vrot.slane %v1710, 4
    %v1712 = vmax.f32 %v1710, %v1711
    %v1713 = vrot.slane %v1712, 2
    %v1714 = vmax.f32 %v1712, %v1713
    %v1715 = vrot.slane %v1714, 1
    %v1716 = vmax.f32 %v1714, %v1715
    %v1717 = vpack.i.bf16 %v1716, %v1716
    %v1718 = vunpack.i.l.bf16 %v1528
    %v1719 = vunpack.i.h.bf16 %v1528
    %v1720 = vmax.f32 %v1718, %v1719
    %v1721 = vrot.slane %v1720, 4
    %v1722 = vmax.f32 %v1720, %v1721
    %v1723 = vrot.slane %v1722, 2
    %v1724 = vmax.f32 %v1722, %v1723
    %v1725 = vrot.slane %v1724, 1
    %v1726 = vmax.f32 %v1724, %v1725
    %v1727 = vpack.i.bf16 %v1726, %v1726
    %v1728 = vunpack.i.l.bf16 %v1529
    %v1729 = vunpack.i.h.bf16 %v1529
    %v1730 = vmax.f32 %v1728, %v1729
    %v1731 = vrot.slane %v1730, 4
    %v1732 = vmax.f32 %v1730, %v1731
    %v1733 = vrot.slane %v1732, 2
    %v1734 = vmax.f32 %v1732, %v1733
    %v1735 = vrot.slane %v1734, 1
    %v1736 = vmax.f32 %v1734, %v1735
    %v1737 = vpack.i.bf16 %v1736, %v1736
    %v1738 = vunpack.i.l.bf16 %v1530
    %v1739 = vunpack.i.h.bf16 %v1530
    %v1740 = vmax.f32 %v1738, %v1739
    %v1741 = vrot.slane %v1740, 4
    %v1742 = vmax.f32 %v1740, %v1741
    %v1743 = vrot.slane %v1742, 2
    %v1744 = vmax.f32 %v1742, %v1743
    %v1745 = vrot.slane %v1744, 1
    %v1746 = vmax.f32 %v1744, %v1745
    %v1747 = vpack.i.bf16 %v1746, %v1746
    %v1748 = vunpack.i.l.bf16 %v1531
    %v1749 = vunpack.i.h.bf16 %v1531
    %v1750 = vmax.f32 %v1748, %v1749
    %v1751 = vrot.slane %v1750, 4
    %v1752 = vmax.f32 %v1750, %v1751
    %v1753 = vrot.slane %v1752, 2
    %v1754 = vmax.f32 %v1752, %v1753
    %v1755 = vrot.slane %v1754, 1
    %v1756 = vmax.f32 %v1754, %v1755
    %v1757 = vpack.i.bf16 %v1756, %v1756
    %v1758 = vunpack.i.l.bf16 %v1532
    %v1759 = vunpack.i.h.bf16 %v1532
    %v1760 = vmax.f32 %v1758, %v1759
    %v1761 = vrot.slane %v1760, 4
    %v1762 = vmax.f32 %v1760, %v1761
    %v1763 = vrot.slane %v1762, 2
    %v1764 = vmax.f32 %v1762, %v1763
    %v1765 = vrot.slane %v1764, 1
    %v1766 = vmax.f32 %v1764, %v1765
    %v1767 = vpack.i.bf16 %v1766, %v1766
    %v1768 = vunpack.i.l.bf16 %v1533
    %v1769 = vunpack.i.h.bf16 %v1533
    %v1770 = vmax.f32 %v1768, %v1769
    %v1771 = vrot.slane %v1770, 4
    %v1772 = vmax.f32 %v1770, %v1771
    %v1773 = vrot.slane %v1772, 2
    %v1774 = vmax.f32 %v1772, %v1773
    %v1775 = vrot.slane %v1774, 1
    %v1776 = vmax.f32 %v1774, %v1775
    %v1777 = vpack.i.bf16 %v1776, %v1776
    %v1778 = vunpack.i.l.bf16 %v1534
    %v1779 = vunpack.i.h.bf16 %v1534
    %v1780 = vmax.f32 %v1778, %v1779
    %v1781 = vrot.slane %v1780, 4
    %v1782 = vmax.f32 %v1780, %v1781
    %v1783 = vrot.slane %v1782, 2
    %v1784 = vmax.f32 %v1782, %v1783
    %v1785 = vrot.slane %v1784, 1
    %v1786 = vmax.f32 %v1784, %v1785
    %v1787 = vpack.i.bf16 %v1786, %v1786
    %v1788 = vunpack.i.l.bf16 %v1535
    %v1789 = vunpack.i.h.bf16 %v1535
    %v1790 = vmax.f32 %v1788, %v1789
    %v1791 = vrot.slane %v1790, 4
    %v1792 = vmax.f32 %v1790, %v1791
    %v1793 = vrot.slane %v1792, 2
    %v1794 = vmax.f32 %v1792, %v1793
    %v1795 = vrot.slane %v1794, 1
    %v1796 = vmax.f32 %v1794, %v1795
    %v1797 = vpack.i.bf16 %v1796, %v1796
    %v1798 = vunpack.i.l.bf16 %v1536
    %v1799 = vunpack.i.h.bf16 %v1536
    %v1800 = vmax.f32 %v1798, %v1799
    %v1801 = vrot.slane %v1800, 4
    %v1802 = vmax.f32 %v1800, %v1801
    %v1803 = vrot.slane %v1802, 2
    %v1804 = vmax.f32 %v1802, %v1803
    %v1805 = vrot.slane %v1804, 1
    %v1806 = vmax.f32 %v1804, %v1805
    %v1807 = vpack.i.bf16 %v1806, %v1806
    %v1808 = vunpack.i.l.bf16 %v1537
    %v1809 = vunpack.i.h.bf16 %v1537
    %v1810 = vmax.f32 %v1808, %v1809
    %v1811 = vrot.slane %v1810, 4
    %v1812 = vmax.f32 %v1810, %v1811
    %v1813 = vrot.slane %v1812, 2
    %v1814 = vmax.f32 %v1812, %v1813
    %v1815 = vrot.slane %v1814, 1
    %v1816 = vmax.f32 %v1814, %v1815
    %v1817 = vpack.i.bf16 %v1816, %v1816
    %v1818 = vunpack.i.l.bf16 %v1538
    %v1819 = vunpack.i.h.bf16 %v1538
    %v1820 = vmax.f32 %v1818, %v1819
    %v1821 = vrot.slane %v1820, 4
    %v1822 = vmax.f32 %v1820, %v1821
    %v1823 = vrot.slane %v1822, 2
    %v1824 = vmax.f32 %v1822, %v1823
    %v1825 = vrot.slane %v1824, 1
    %v1826 = vmax.f32 %v1824, %v1825
    %v1827 = vpack.i.bf16 %v1826, %v1826
    %v1828 = vunpack.i.l.bf16 %v1539
    %v1829 = vunpack.i.h.bf16 %v1539
    %v1830 = vmax.f32 %v1828, %v1829
    %v1831 = vrot.slane %v1830, 4
    %v1832 = vmax.f32 %v1830, %v1831
    %v1833 = vrot.slane %v1832, 2
    %v1834 = vmax.f32 %v1832, %v1833
    %v1835 = vrot.slane %v1834, 1
    %v1836 = vmax.f32 %v1834, %v1835
    %v1837 = vpack.i.bf16 %v1836, %v1836
    %v1838 = vunpack.i.l.bf16 %v1540
    %v1839 = vunpack.i.h.bf16 %v1540
    %v1840 = vmax.f32 %v1838, %v1839
    %v1841 = vrot.slane %v1840, 4
    %v1842 = vmax.f32 %v1840, %v1841
    %v1843 = vrot.slane %v1842, 2
    %v1844 = vmax.f32 %v1842, %v1843
    %v1845 = vrot.slane %v1844, 1
    %v1846 = vmax.f32 %v1844, %v1845
    %v1847 = vpack.i.bf16 %v1846, %v1846
    %v1848 = vunpack.i.l.bf16 %v1541
    %v1849 = vunpack.i.h.bf16 %v1541
    %v1850 = vmax.f32 %v1848, %v1849
    %v1851 = vrot.slane %v1850, 4
    %v1852 = vmax.f32 %v1850, %v1851
    %v1853 = vrot.slane %v1852, 2
    %v1854 = vmax.f32 %v1852, %v1853
    %v1855 = vrot.slane %v1854, 1
    %v1856 = vmax.f32 %v1854, %v1855
    %v1857 = vpack.i.bf16 %v1856, %v1856
    %v1858 = vunpack.i.l.bf16 %v1542
    %v1859 = vunpack.i.h.bf16 %v1542
    %v1860 = vmax.f32 %v1858, %v1859
    %v1861 = vrot.slane %v1860, 4
    %v1862 = vmax.f32 %v1860, %v1861
    %v1863 = vrot.slane %v1862, 2
    %v1864 = vmax.f32 %v1862, %v1863
    %v1865 = vrot.slane %v1864, 1
    %v1866 = vmax.f32 %v1864, %v1865
    %v1867 = vpack.i.bf16 %v1866, %v1866
    %v1868 = vunpack.i.l.bf16 %v1543
    %v1869 = vunpack.i.h.bf16 %v1543
    %v1870 = vmax.f32 %v1868, %v1869
    %v1871 = vrot.slane %v1870, 4
    %v1872 = vmax.f32 %v1870, %v1871
    %v1873 = vrot.slane %v1872, 2
    %v1874 = vmax.f32 %v1872, %v1873
    %v1875 = vrot.slane %v1874, 1
    %v1876 = vmax.f32 %v1874, %v1875
    %v1877 = vpack.i.bf16 %v1876, %v1876
    %v1878 = vunpack.i.l.bf16 %v1544
    %v1879 = vunpack.i.h.bf16 %v1544
    %v1880 = vmax.f32 %v1878, %v1879
    %v1881 = vrot.slane %v1880, 4
    %v1882 = vmax.f32 %v1880, %v1881
    %v1883 = vrot.slane %v1882, 2
    %v1884 = vmax.f32 %v1882, %v1883
    %v1885 = vrot.slane %v1884, 1
    %v1886 = vmax.f32 %v1884, %v1885
    %v1887 = vpack.i.bf16 %v1886, %v1886
    %v1888 = vunpack.i.l.bf16 %v1545
    %v1889 = vunpack.i.h.bf16 %v1545
    %v1890 = vmax.f32 %v1888, %v1889
    %v1891 = vrot.slane %v1890, 4
    %v1892 = vmax.f32 %v1890, %v1891
    %v1893 = vrot.slane %v1892, 2
    %v1894 = vmax.f32 %v1892, %v1893
    %v1895 = vrot.slane %v1894, 1
    %v1896 = vmax.f32 %v1894, %v1895
    %v1897 = vpack.i.bf16 %v1896, %v1896
    %v1898 = vunpack.i.l.bf16 %v1546
    %v1899 = vunpack.i.h.bf16 %v1546
    %v1900 = vmax.f32 %v1898, %v1899
    %v1901 = vrot.slane %v1900, 4
    %v1902 = vmax.f32 %v1900, %v1901
    %v1903 = vrot.slane %v1902, 2
    %v1904 = vmax.f32 %v1902, %v1903
    %v1905 = vrot.slane %v1904, 1
    %v1906 = vmax.f32 %v1904, %v1905
    %v1907 = vpack.i.bf16 %v1906, %v1906
    %v1908 = vunpack.i.l.bf16 %v1547
    %v1909 = vunpack.i.h.bf16 %v1547
    %v1910 = vmax.f32 %v1908, %v1909
    %v1911 = vrot.slane %v1910, 4
    %v1912 = vmax.f32 %v1910, %v1911
    %v1913 = vrot.slane %v1912, 2
    %v1914 = vmax.f32 %v1912, %v1913
    %v1915 = vrot.slane %v1914, 1
    %v1916 = vmax.f32 %v1914, %v1915
    %v1917 = vpack.i.bf16 %v1916, %v1916
    %v1918 = vunpack.i.l.bf16 %v1548
    %v1919 = vunpack.i.h.bf16 %v1548
    %v1920 = vmax.f32 %v1918, %v1919
    %v1921 = vrot.slane %v1920, 4
    %v1922 = vmax.f32 %v1920, %v1921
    %v1923 = vrot.slane %v1922, 2
    %v1924 = vmax.f32 %v1922, %v1923
    %v1925 = vrot.slane %v1924, 1
    %v1926 = vmax.f32 %v1924, %v1925
    %v1927 = vpack.i.bf16 %v1926, %v1926
    %v1928 = vunpack.i.l.bf16 %v1549
    %v1929 = vunpack.i.h.bf16 %v1549
    %v1930 = vmax.f32 %v1928, %v1929
    %v1931 = vrot.slane %v1930, 4
    %v1932 = vmax.f32 %v1930, %v1931
    %v1933 = vrot.slane %v1932, 2
    %v1934 = vmax.f32 %v1932, %v1933
    %v1935 = vrot.slane %v1934, 1
    %v1936 = vmax.f32 %v1934, %v1935
    %v1937 = vpack.i.bf16 %v1936, %v1936
    %v1938 = vunpack.i.l.bf16 %v1550
    %v1939 = vunpack.i.h.bf16 %v1550
    %v1940 = vmax.f32 %v1938, %v1939
    %v1941 = vrot.slane %v1940, 4
    %v1942 = vmax.f32 %v1940, %v1941
    %v1943 = vrot.slane %v1942, 2
    %v1944 = vmax.f32 %v1942, %v1943
    %v1945 = vrot.slane %v1944, 1
    %v1946 = vmax.f32 %v1944, %v1945
    %v1947 = vpack.i.bf16 %v1946, %v1946
    %v1948 = vunpack.i.l.bf16 %v1551
    %v1949 = vunpack.i.h.bf16 %v1551
    %v1950 = vmax.f32 %v1948, %v1949
    %v1951 = vrot.slane %v1950, 4
    %v1952 = vmax.f32 %v1950, %v1951
    %v1953 = vrot.slane %v1952, 2
    %v1954 = vmax.f32 %v1952, %v1953
    %v1955 = vrot.slane %v1954, 1
    %v1956 = vmax.f32 %v1954, %v1955
    %v1957 = vpack.i.bf16 %v1956, %v1956
    %v1958 = vunpack.i.l.bf16 %v1552
    %v1959 = vunpack.i.h.bf16 %v1552
    %v1960 = vmax.f32 %v1958, %v1959
    %v1961 = vrot.slane %v1960, 4
    %v1962 = vmax.f32 %v1960, %v1961
    %v1963 = vrot.slane %v1962, 2
    %v1964 = vmax.f32 %v1962, %v1963
    %v1965 = vrot.slane %v1964, 1
    %v1966 = vmax.f32 %v1964, %v1965
    %v1967 = vpack.i.bf16 %v1966, %v1966
    %v1968 = vunpack.i.l.bf16 %v1553
    %v1969 = vunpack.i.h.bf16 %v1553
    %v1970 = vmax.f32 %v1968, %v1969
    %v1971 = vrot.slane %v1970, 4
    %v1972 = vmax.f32 %v1970, %v1971
    %v1973 = vrot.slane %v1972, 2
    %v1974 = vmax.f32 %v1972, %v1973
    %v1975 = vrot.slane %v1974, 1
    %v1976 = vmax.f32 %v1974, %v1975
    %v1977 = vpack.i.bf16 %v1976, %v1976
    %v1978 = vunpack.i.l.bf16 %v1554
    %v1979 = vunpack.i.h.bf16 %v1554
    %v1980 = vmax.f32 %v1978, %v1979
    %v1981 = vrot.slane %v1980, 4
    %v1982 = vmax.f32 %v1980, %v1981
    %v1983 = vrot.slane %v1982, 2
    %v1984 = vmax.f32 %v1982, %v1983
    %v1985 = vrot.slane %v1984, 1
    %v1986 = vmax.f32 %v1984, %v1985
    %v1987 = vpack.i.bf16 %v1986, %v1986
    %v1988 = vunpack.i.l.bf16 %v1555
    %v1989 = vunpack.i.h.bf16 %v1555
    %v1990 = vmax.f32 %v1988, %v1989
    %v1991 = vrot.slane %v1990, 4
    %v1992 = vmax.f32 %v1990, %v1991
    %v1993 = vrot.slane %v1992, 2
    %v1994 = vmax.f32 %v1992, %v1993
    %v1995 = vrot.slane %v1994, 1
    %v1996 = vmax.f32 %v1994, %v1995
    %v1997 = vpack.i.bf16 %v1996, %v1996
    %v1998 = vunpack.i.l.bf16 %v1556
    %v1999 = vunpack.i.h.bf16 %v1556
    %v2000 = vmax.f32 %v1998, %v1999
    %v2001 = vrot.slane %v2000, 4
    %v2002 = vmax.f32 %v2000, %v2001
    %v2003 = vrot.slane %v2002, 2
    %v2004 = vmax.f32 %v2002, %v2003
    %v2005 = vrot.slane %v2004, 1
    %v2006 = vmax.f32 %v2004, %v2005
    %v2007 = vpack.i.bf16 %v2006, %v2006
    %v2008 = vunpack.i.l.bf16 %v1557
    %v2009 = vunpack.i.h.bf16 %v1557
    %v2010 = vmax.f32 %v2008, %v2009
    %v2011 = vrot.slane %v2010, 4
    %v2012 = vmax.f32 %v2010, %v2011
    %v2013 = vrot.slane %v2012, 2
    %v2014 = vmax.f32 %v2012, %v2013
    %v2015 = vrot.slane %v2014, 1
    %v2016 = vmax.f32 %v2014, %v2015
    %v2017 = vpack.i.bf16 %v2016, %v2016
    %v2018 = vunpack.i.l.bf16 %v1558
    %v2019 = vunpack.i.h.bf16 %v1558
    %v2020 = vmax.f32 %v2018, %v2019
    %v2021 = vrot.slane %v2020, 4
    %v2022 = vmax.f32 %v2020, %v2021
    %v2023 = vrot.slane %v2022, 2
    %v2024 = vmax.f32 %v2022, %v2023
    %v2025 = vrot.slane %v2024, 1
    %v2026 = vmax.f32 %v2024, %v2025
    %v2027 = vpack.i.bf16 %v2026, %v2026
    %v2028 = vunpack.i.l.bf16 %v1559
    %v2029 = vunpack.i.h.bf16 %v1559
    %v2030 = vmax.f32 %v2028, %v2029
    %v2031 = vrot.slane %v2030, 4
    %v2032 = vmax.f32 %v2030, %v2031
    %v2033 = vrot.slane %v2032, 2
    %v2034 = vmax.f32 %v2032, %v2033
    %v2035 = vrot.slane %v2034, 1
    %v2036 = vmax.f32 %v2034, %v2035
    %v2037 = vpack.i.bf16 %v2036, %v2036
    %v2038 = vunpack.i.l.bf16 %v1560
    %v2039 = vunpack.i.h.bf16 %v1560
    %v2040 = vmax.f32 %v2038, %v2039
    %v2041 = vrot.slane %v2040, 4
    %v2042 = vmax.f32 %v2040, %v2041
    %v2043 = vrot.slane %v2042, 2
    %v2044 = vmax.f32 %v2042, %v2043
    %v2045 = vrot.slane %v2044, 1
    %v2046 = vmax.f32 %v2044, %v2045
    %v2047 = vpack.i.bf16 %v2046, %v2046
    %v2048 = vunpack.i.l.bf16 %v1561
    %v2049 = vunpack.i.h.bf16 %v1561
    %v2050 = vmax.f32 %v2048, %v2049
    %v2051 = vrot.slane %v2050, 4
    %v2052 = vmax.f32 %v2050, %v2051
    %v2053 = vrot.slane %v2052, 2
    %v2054 = vmax.f32 %v2052, %v2053
    %v2055 = vrot.slane %v2054, 1
    %v2056 = vmax.f32 %v2054, %v2055
    %v2057 = vpack.i.bf16 %v2056, %v2056
    %v2058 = vunpack.i.l.bf16 %v1562
    %v2059 = vunpack.i.h.bf16 %v1562
    %v2060 = vmax.f32 %v2058, %v2059
    %v2061 = vrot.slane %v2060, 4
    %v2062 = vmax.f32 %v2060, %v2061
    %v2063 = vrot.slane %v2062, 2
    %v2064 = vmax.f32 %v2062, %v2063
    %v2065 = vrot.slane %v2064, 1
    %v2066 = vmax.f32 %v2064, %v2065
    %v2067 = vpack.i.bf16 %v2066, %v2066
    %v2068 = vunpack.i.l.bf16 %v1563
    %v2069 = vunpack.i.h.bf16 %v1563
    %v2070 = vmax.f32 %v2068, %v2069
    %v2071 = vrot.slane %v2070, 4
    %v2072 = vmax.f32 %v2070, %v2071
    %v2073 = vrot.slane %v2072, 2
    %v2074 = vmax.f32 %v2072, %v2073
    %v2075 = vrot.slane %v2074, 1
    %v2076 = vmax.f32 %v2074, %v2075
    %v2077 = vpack.i.bf16 %v2076, %v2076
    %v2078 = vunpack.i.l.bf16 %v1564
    %v2079 = vunpack.i.h.bf16 %v1564
    %v2080 = vmax.f32 %v2078, %v2079
    %v2081 = vrot.slane %v2080, 4
    %v2082 = vmax.f32 %v2080, %v2081
    %v2083 = vrot.slane %v2082, 2
    %v2084 = vmax.f32 %v2082, %v2083
    %v2085 = vrot.slane %v2084, 1
    %v2086 = vmax.f32 %v2084, %v2085
    %v2087 = vpack.i.bf16 %v2086, %v2086
    %v2088 = vunpack.i.l.bf16 %v1565
    %v2089 = vunpack.i.h.bf16 %v1565
    %v2090 = vmax.f32 %v2088, %v2089
    %v2091 = vrot.slane %v2090, 4
    %v2092 = vmax.f32 %v2090, %v2091
    %v2093 = vrot.slane %v2092, 2
    %v2094 = vmax.f32 %v2092, %v2093
    %v2095 = vrot.slane %v2094, 1
    %v2096 = vmax.f32 %v2094, %v2095
    %v2097 = vpack.i.bf16 %v2096, %v2096
    %v2098 = vunpack.i.l.bf16 %v1566
    %v2099 = vunpack.i.h.bf16 %v1566
    %v2100 = vmax.f32 %v2098, %v2099
    %v2101 = vrot.slane %v2100, 4
    %v2102 = vmax.f32 %v2100, %v2101
    %v2103 = vrot.slane %v2102, 2
    %v2104 = vmax.f32 %v2102, %v2103
    %v2105 = vrot.slane %v2104, 1
    %v2106 = vmax.f32 %v2104, %v2105
    %v2107 = vpack.i.bf16 %v2106, %v2106
    %v2108 = vunpack.i.l.bf16 %v1567
    %v2109 = vunpack.i.h.bf16 %v1567
    %v2110 = vmax.f32 %v2108, %v2109
    %v2111 = vrot.slane %v2110, 4
    %v2112 = vmax.f32 %v2110, %v2111
    %v2113 = vrot.slane %v2112, 2
    %v2114 = vmax.f32 %v2112, %v2113
    %v2115 = vrot.slane %v2114, 1
    %v2116 = vmax.f32 %v2114, %v2115
    %v2117 = vpack.i.bf16 %v2116, %v2116
    %v2118 = vunpack.i.l.bf16 %v1568
    %v2119 = vunpack.i.h.bf16 %v1568
    %v2120 = vmax.f32 %v2118, %v2119
    %v2121 = vrot.slane %v2120, 4
    %v2122 = vmax.f32 %v2120, %v2121
    %v2123 = vrot.slane %v2122, 2
    %v2124 = vmax.f32 %v2122, %v2123
    %v2125 = vrot.slane %v2124, 1
    %v2126 = vmax.f32 %v2124, %v2125
    %v2127 = vpack.i.bf16 %v2126, %v2126
    %v2128 = vunpack.i.l.bf16 %v1569
    %v2129 = vunpack.i.h.bf16 %v1569
    %v2130 = vmax.f32 %v2128, %v2129
    %v2131 = vrot.slane %v2130, 4
    %v2132 = vmax.f32 %v2130, %v2131
    %v2133 = vrot.slane %v2132, 2
    %v2134 = vmax.f32 %v2132, %v2133
    %v2135 = vrot.slane %v2134, 1
    %v2136 = vmax.f32 %v2134, %v2135
    %v2137 = vpack.i.bf16 %v2136, %v2136
    %v2138 = vunpack.i.l.bf16 %v1570
    %v2139 = vunpack.i.h.bf16 %v1570
    %v2140 = vmax.f32 %v2138, %v2139
    %v2141 = vrot.slane %v2140, 4
    %v2142 = vmax.f32 %v2140, %v2141
    %v2143 = vrot.slane %v2142, 2
    %v2144 = vmax.f32 %v2142, %v2143
    %v2145 = vrot.slane %v2144, 1
    %v2146 = vmax.f32 %v2144, %v2145
    %v2147 = vpack.i.bf16 %v2146, %v2146
    %v2148 = vunpack.i.l.bf16 %v1571
    %v2149 = vunpack.i.h.bf16 %v1571
    %v2150 = vmax.f32 %v2148, %v2149
    %v2151 = vrot.slane %v2150, 4
    %v2152 = vmax.f32 %v2150, %v2151
    %v2153 = vrot.slane %v2152, 2
    %v2154 = vmax.f32 %v2152, %v2153
    %v2155 = vrot.slane %v2154, 1
    %v2156 = vmax.f32 %v2154, %v2155
    %v2157 = vpack.i.bf16 %v2156, %v2156
    %v2158 = vunpack.i.l.bf16 %v1572
    %v2159 = vunpack.i.h.bf16 %v1572
    %v2160 = vmax.f32 %v2158, %v2159
    %v2161 = vrot.slane %v2160, 4
    %v2162 = vmax.f32 %v2160, %v2161
    %v2163 = vrot.slane %v2162, 2
    %v2164 = vmax.f32 %v2162, %v2163
    %v2165 = vrot.slane %v2164, 1
    %v2166 = vmax.f32 %v2164, %v2165
    %v2167 = vpack.i.bf16 %v2166, %v2166
    %v2168 = vunpack.i.l.bf16 %v1573
    %v2169 = vunpack.i.h.bf16 %v1573
    %v2170 = vmax.f32 %v2168, %v2169
    %v2171 = vrot.slane %v2170, 4
    %v2172 = vmax.f32 %v2170, %v2171
    %v2173 = vrot.slane %v2172, 2
    %v2174 = vmax.f32 %v2172, %v2173
    %v2175 = vrot.slane %v2174, 1
    %v2176 = vmax.f32 %v2174, %v2175
    %v2177 = vpack.i.bf16 %v2176, %v2176
    %v2178 = vunpack.i.l.bf16 %v1574
    %v2179 = vunpack.i.h.bf16 %v1574
    %v2180 = vmax.f32 %v2178, %v2179
    %v2181 = vrot.slane %v2180, 4
    %v2182 = vmax.f32 %v2180, %v2181
    %v2183 = vrot.slane %v2182, 2
    %v2184 = vmax.f32 %v2182, %v2183
    %v2185 = vrot.slane %v2184, 1
    %v2186 = vmax.f32 %v2184, %v2185
    %v2187 = vpack.i.bf16 %v2186, %v2186
    %v2188 = vunpack.i.l.bf16 %v1575
    %v2189 = vunpack.i.h.bf16 %v1575
    %v2190 = vmax.f32 %v2188, %v2189
    %v2191 = vrot.slane %v2190, 4
    %v2192 = vmax.f32 %v2190, %v2191
    %v2193 = vrot.slane %v2192, 2
    %v2194 = vmax.f32 %v2192, %v2193
    %v2195 = vrot.slane %v2194, 1
    %v2196 = vmax.f32 %v2194, %v2195
    %v2197 = vpack.i.bf16 %v2196, %v2196
    %v2198 = vunpack.i.l.bf16 %v1576
    %v2199 = vunpack.i.h.bf16 %v1576
    %v2200 = vmax.f32 %v2198, %v2199
    %v2201 = vrot.slane %v2200, 4
    %v2202 = vmax.f32 %v2200, %v2201
    %v2203 = vrot.slane %v2202, 2
    %v2204 = vmax.f32 %v2202, %v2203
    %v2205 = vrot.slane %v2204, 1
    %v2206 = vmax.f32 %v2204, %v2205
    %v2207 = vpack.i.bf16 %v2206, %v2206
    %v2208 = vunpack.i.l.bf16 %v1577
    %v2209 = vunpack.i.h.bf16 %v1577
    %v2210 = vmax.f32 %v2208, %v2209
    %v2211 = vrot.slane %v2210, 4
    %v2212 = vmax.f32 %v2210, %v2211
    %v2213 = vrot.slane %v2212, 2
    %v2214 = vmax.f32 %v2212, %v2213
    %v2215 = vrot.slane %v2214, 1
    %v2216 = vmax.f32 %v2214, %v2215
    %v2217 = vpack.i.bf16 %v2216, %v2216
    %v2282 = vunpack.c.l.b16 %v1587
    %v2283 = vunpack.c.l.b16 %v1597
    %v2284 = vunpack.c.l.b16 %v1607
    %v2285 = vunpack.c.l.b16 %v1617
    %v2286 = vunpack.c.l.b16 %v1627
    %v2287 = vunpack.c.l.b16 %v1637
    %v2288 = vunpack.c.l.b16 %v1647
    %v2289 = vunpack.c.l.b16 %v1657
    %v2290 = vunpack.c.l.b16 %v1667
    %v2291 = vunpack.c.l.b16 %v1677
    %v2292 = vunpack.c.l.b16 %v1687
    %v2293 = vunpack.c.l.b16 %v1697
    %v2294 = vunpack.c.l.b16 %v1707
    %v2295 = vunpack.c.l.b16 %v1717
    %v2296 = vunpack.c.l.b16 %v1727
    %v2297 = vunpack.c.l.b16 %v1737
    %v2298 = vunpack.c.l.b16 %v1747
    %v2299 = vunpack.c.l.b16 %v1757
    %v2300 = vunpack.c.l.b16 %v1767
    %v2301 = vunpack.c.l.b16 %v1777
    %v2302 = vunpack.c.l.b16 %v1787
    %v2303 = vunpack.c.l.b16 %v1797
    %v2304 = vunpack.c.l.b16 %v1807
    %v2305 = vunpack.c.l.b16 %v1817
    %v2306 = vunpack.c.l.b16 %v1827
    %v2307 = vunpack.c.l.b16 %v1837
    %v2308 = vunpack.c.l.b16 %v1847
    %v2309 = vunpack.c.l.b16 %v1857
    %v2310 = vunpack.c.l.b16 %v1867
    %v2311 = vunpack.c.l.b16 %v1877
    %v2312 = vunpack.c.l.b16 %v1887
    %v2313 = vunpack.c.l.b16 %v1897
    %v2314 = vunpack.c.l.b16 %v1907
    %v2315 = vunpack.c.l.b16 %v1917
    %v2316 = vunpack.c.l.b16 %v1927
    %v2317 = vunpack.c.l.b16 %v1937
    %v2318 = vunpack.c.l.b16 %v1947
    %v2319 = vunpack.c.l.b16 %v1957
    %v2320 = vunpack.c.l.b16 %v1967
    %v2321 = vunpack.c.l.b16 %v1977
    %v2322 = vunpack.c.l.b16 %v1987
    %v2323 = vunpack.c.l.b16 %v1997
    %v2324 = vunpack.c.l.b16 %v2007
    %v2325 = vunpack.c.l.b16 %v2017
    %v2326 = vunpack.c.l.b16 %v2027
    %v2327 = vunpack.c.l.b16 %v2037
    %v2328 = vunpack.c.l.b16 %v2047
    %v2329 = vunpack.c.l.b16 %v2057
    %v2330 = vunpack.c.l.b16 %v2067
    %v2331 = vunpack.c.l.b16 %v2077
    %v2332 = vunpack.c.l.b16 %v2087
    %v2333 = vunpack.c.l.b16 %v2097
    %v2334 = vunpack.c.l.b16 %v2107
    %v2335 = vunpack.c.l.b16 %v2117
    %v2336 = vunpack.c.l.b16 %v2127
    %v2337 = vunpack.c.l.b16 %v2137
    %v2338 = vunpack.c.l.b16 %v2147
    %v2339 = vunpack.c.l.b16 %v2157
    %v2340 = vunpack.c.l.b16 %v2167
    %v2341 = vunpack.c.l.b16 %v2177
    %v2342 = vunpack.c.l.b16 %v2187
    %v2343 = vunpack.c.l.b16 %v2197
    %v2344 = vunpack.c.l.b16 %v2207
    %v2345 = vunpack.c.l.b16 %v2217
    %v2346 = vpack.c.b16 %v2283, %v2282
    %v2347 = vpack.c.b16 %v2285, %v2284
    %v2348 = vpack.c.b16 %v2287, %v2286
    %v2349 = vpack.c.b16 %v2289, %v2288
    %v2350 = vpack.c.b16 %v2291, %v2290
    %v2351 = vpack.c.b16 %v2293, %v2292
    %v2352 = vpack.c.b16 %v2295, %v2294
    %v2353 = vpack.c.b16 %v2297, %v2296
    %v2354 = vpack.c.b16 %v2299, %v2298
    %v2355 = vpack.c.b16 %v2301, %v2300
    %v2356 = vpack.c.b16 %v2303, %v2302
    %v2357 = vpack.c.b16 %v2305, %v2304
    %v2358 = vpack.c.b16 %v2307, %v2306
    %v2359 = vpack.c.b16 %v2309, %v2308
    %v2360 = vpack.c.b16 %v2311, %v2310
    %v2361 = vpack.c.b16 %v2313, %v2312
    %v2362 = vpack.c.b16 %v2315, %v2314
    %v2363 = vpack.c.b16 %v2317, %v2316
    %v2364 = vpack.c.b16 %v2319, %v2318
    %v2365 = vpack.c.b16 %v2321, %v2320
    %v2366 = vpack.c.b16 %v2323, %v2322
    %v2367 = vpack.c.b16 %v2325, %v2324
    %v2368 = vpack.c.b16 %v2327, %v2326
    %v2369 = vpack.c.b16 %v2329, %v2328
    %v2370 = vpack.c.b16 %v2331, %v2330
    %v2371 = vpack.c.b16 %v2333, %v2332
    %v2372 = vpack.c.b16 %v2335, %v2334
    %v2373 = vpack.c.b16 %v2337, %v2336
    %v2374 = vpack.c.b16 %v2339, %v2338
    %v2375 = vpack.c.b16 %v2341, %v2340
    %v2376 = vpack.c.b16 %v2343, %v2342
    %v2377 = vpack.c.b16 %v2345, %v2344
    %v2378 = vunpack.c.l.b16 %v2346
    %v2379 = vunpack.c.h.b16 %v2346
    %v2380 = vunpack.c.l.b16 %v2347
    %v2381 = vunpack.c.h.b16 %v2347
    %v2382 = vunpack.c.l.b16 %v2348
    %v2383 = vunpack.c.h.b16 %v2348
    %v2384 = vunpack.c.l.b16 %v2349
    %v2385 = vunpack.c.h.b16 %v2349
    %v2386 = vunpack.c.l.b16 %v2350
    %v2387 = vunpack.c.h.b16 %v2350
    %v2388 = vunpack.c.l.b16 %v2351
    %v2389 = vunpack.c.h.b16 %v2351
    %v2390 = vunpack.c.l.b16 %v2352
    %v2391 = vunpack.c.h.b16 %v2352
    %v2392 = vunpack.c.l.b16 %v2353
    %v2393 = vunpack.c.h.b16 %v2353
    %v2394 = vunpack.c.l.b16 %v2354
    %v2395 = vunpack.c.h.b16 %v2354
    %v2396 = vunpack.c.l.b16 %v2355
    %v2397 = vunpack.c.h.b16 %v2355
    %v2398 = vunpack.c.l.b16 %v2356
    %v2399 = vunpack.c.h.b16 %v2356
    %v2400 = vunpack.c.l.b16 %v2357
    %v2401 = vunpack.c.h.b16 %v2357
    %v2402 = vunpack.c.l.b16 %v2358
    %v2403 = vunpack.c.h.b16 %v2358
    %v2404 = vunpack.c.l.b16 %v2359
    %v2405 = vunpack.c.h.b16 %v2359
    %v2406 = vunpack.c.l.b16 %v2360
    %v2407 = vunpack.c.h.b16 %v2360
    %v2408 = vunpack.c.l.b16 %v2361
    %v2409 = vunpack.c.h.b16 %v2361
    %v2410 = vunpack.c.l.b16 %v2362
    %v2411 = vunpack.c.h.b16 %v2362
    %v2412 = vunpack.c.l.b16 %v2363
    %v2413 = vunpack.c.h.b16 %v2363
    %v2414 = vunpack.c.l.b16 %v2364
    %v2415 = vunpack.c.h.b16 %v2364
    %v2416 = vunpack.c.l.b16 %v2365
    %v2417 = vunpack.c.h.b16 %v2365
    %v2418 = vunpack.c.l.b16 %v2366
    %v2419 = vunpack.c.h.b16 %v2366
    %v2420 = vunpack.c.l.b16 %v2367
    %v2421 = vunpack.c.h.b16 %v2367
    %v2422 = vunpack.c.l.b16 %v2368
    %v2423 = vunpack.c.h.b16 %v2368
    %v2424 = vunpack.c.l.b16 %v2369
    %v2425 = vunpack.c.h.b16 %v2369
    %v2426 = vunpack.c.l.b16 %v2370
    %v2427 = vunpack.c.h.b16 %v2370
    %v2428 = vunpack.c.l.b16 %v2371
    %v2429 = vunpack.c.h.b16 %v2371
    %v2430 = vunpack.c.l.b16 %v2372
    %v2431 = vunpack.c.h.b16 %v2372
    %v2432 = vunpack.c.l.b16 %v2373
    %v2433 = vunpack.c.h.b16 %v2373
    %v2434 = vunpack.c.l.b16 %v2374
    %v2435 = vunpack.c.h.b16 %v2374
    %v2436 = vunpack.c.l.b16 %v2375
    %v2437 = vunpack.c.h.b16 %v2375
    %v2438 = vunpack.c.l.b16 %v2376
    %v2439 = vunpack.c.h.b16 %v2376
    %v2440 = vunpack.c.l.b16 %v2377
    %v2441 = vunpack.c.h.b16 %v2377
    %vm2442 = vcmask 1041409
    %v2443 = vsel %vm2442, %v2386, %v2378
    %vm2444 = vcmask 1042434
    %v2445 = vsel %vm2444, %v2394, %v2443
    %vm2446 = vcmask 1043459
    %v2447 = vsel %vm2446, %v2402, %v2445
    %vm2448 = vcmask 1044484
    %v2449 = vsel %vm2448, %v2410, %v2447
    %vm2450 = vcmask 1045509
    %v2451 = vsel %vm2450, %v2418, %v2449
    %vm2452 = vcmask 1046534
    %v2453 = vsel %vm2452, %v2426, %v2451
    %vm2454 = vcmask 1047559
    %v2455 = vsel %vm2454, %v2434, %v2453
    %v2456 = vsel %vm2442, %v2387, %v2379
    %v2457 = vsel %vm2444, %v2395, %v2456
    %v2458 = vsel %vm2446, %v2403, %v2457
    %v2459 = vsel %vm2448, %v2411, %v2458
    %v2460 = vsel %vm2450, %v2419, %v2459
    %v2461 = vsel %vm2452, %v2427, %v2460
    %v2462 = vsel %vm2454, %v2435, %v2461
    %v2463 = vsel %vm2442, %v2388, %v2380
    %v2464 = vsel %vm2444, %v2396, %v2463
    %v2465 = vsel %vm2446, %v2404, %v2464
    %v2466 = vsel %vm2448, %v2412, %v2465
    %v2467 = vsel %vm2450, %v2420, %v2466
    %v2468 = vsel %vm2452, %v2428, %v2467
    %v2469 = vsel %vm2454, %v2436, %v2468
    %v2470 = vsel %vm2442, %v2389, %v2381
    %v2471 = vsel %vm2444, %v2397, %v2470
    %v2472 = vsel %vm2446, %v2405, %v2471
    %v2473 = vsel %vm2448, %v2413, %v2472
    %v2474 = vsel %vm2450, %v2421, %v2473
    %v2475 = vsel %vm2452, %v2429, %v2474
    %v2476 = vsel %vm2454, %v2437, %v2475
    %v2477 = vsel %vm2442, %v2390, %v2382
    %v2478 = vsel %vm2444, %v2398, %v2477
    %v2479 = vsel %vm2446, %v2406, %v2478
    %v2480 = vsel %vm2448, %v2414, %v2479
    %v2481 = vsel %vm2450, %v2422, %v2480
    %v2482 = vsel %vm2452, %v2430, %v2481
    %v2483 = vsel %vm2454, %v2438, %v2482
    %v2484 = vsel %vm2442, %v2391, %v2383
    %v2485 = vsel %vm2444, %v2399, %v2484
    %v2486 = vsel %vm2446, %v2407, %v2485
    %v2487 = vsel %vm2448, %v2415, %v2486
    %v2488 = vsel %vm2450, %v2423, %v2487
    %v2489 = vsel %vm2452, %v2431, %v2488
    %v2490 = vsel %vm2454, %v2439, %v2489
    %v2491 = vsel %vm2442, %v2392, %v2384
    %v2492 = vsel %vm2444, %v2400, %v2491
    %v2493 = vsel %vm2446, %v2408, %v2492
    %v2494 = vsel %vm2448, %v2416, %v2493
    %v2495 = vsel %vm2450, %v2424, %v2494
    %v2496 = vsel %vm2452, %v2432, %v2495
    %v2497 = vsel %vm2454, %v2440, %v2496
    %v2498 = vsel %vm2442, %v2393, %v2385
    %v2499 = vsel %vm2444, %v2401, %v2498
    %v2500 = vsel %vm2446, %v2409, %v2499
    %v2501 = vsel %vm2448, %v2417, %v2500
    %v2502 = vsel %vm2450, %v2425, %v2501
    %v2503 = vsel %vm2452, %v2433, %v2502
    %v2504 = vsel %vm2454, %v2441, %v2503
    %v2505 = vpack.c.b16 %v2462, %v2455
    %v2506 = vpack.c.b16 %v2476, %v2469
    %v2507 = vpack.c.b16 %v2490, %v2483
    %v2508 = vpack.c.b16 %v2504, %v2497
    %2513 = vst [vmem:[#allocation10] sm:$0xff] %v2505
    %2514 = vst [vmem:[#allocation10 + $0x8] sm:$0xff] %v2506
    %2515 = vst [vmem:[#allocation10 + $0x10] sm:$0xff] %v2507
    %2516 = vst [vmem:[#allocation10 + $0x18] sm:$0xff] %v2508
    // Predicated region
    $region46: #{tpu_custom_call.1} parent=1 // pred_check
      _
    $region47: #{tpu_custom_call.1} parent=1 // pred_check_branch
      %2518 = sbr.rel (0) target = $region49
    $region48: #{tpu_custom_call.1} parent=1 // pred_region
      %s2520 = ssub.s32 512, 512
      %2521 = vsyncadd [#allocation4], %s2520
      %s2523 = sshll.u32 [#allocation10], 4
      %s2524 = int_to_ptr.vmem [resolvable:$true] %s2523
      %2526 = dma.vmem_to_hbm [thread:$0]  %s2524, 512, %s7, [#allocation4]
    $region49: #{tpu_custom_call.1} parent=1 // pred_fallthru
      _
    // Predicated region
    $region50: #{tpu_custom_call.1} parent=1 // pred_check
      _
    $region51: #{tpu_custom_call.1} parent=1 // pred_check_branch
      %2528 = sbr.rel (0) target = $region53
    $region52: #{tpu_custom_call.1} parent=1 // pred_region
      %2529 = dma.done [#allocation4], 512
    $region53: #{tpu_custom_call.1} parent=1 // pred_fallthru
      _
    %2530 = vsyncpa [#allocation3], 1
    %2531 = vsyncpa [#allocation6], 1
    %2532 = vsyncpa [#allocation9], 1
    %2533 = vsyncpa [#allocation4], 1

// kernel: tpu_custom_call.1
$region0: #{tpu_custom_call.1}
  #allocation0 [shape = 'u32[]', space=smem, size = 0x4, offset = 0x4, fixed_abs, tag = 'smem constant byte address 0x4 - core index']
  #allocation1 [shape = 'u32[144,128]{1,0:T(1,128)}', space=vmem, size = 0x12000, scoped, tag = 'internal scratch']
  %s0 = inlined_call_operand.hbm [shape: bf16[8,16,64], index: 0, kind: input, shape index: {}]
  %s1 = inlined_call_operand.hbm [shape: bf16[64,64], index: 1, kind: input, shape index: {}]
  %s2 = inlined_call_operand.vmem [shape: f32[1,64], index: 2, kind: input, shape index: {}]
  %s3 = inlined_call_operand.hbm [shape: bf16[64,128], index: 3, kind: input, shape index: {}]
  %s4 = inlined_call_operand.vmem [shape: f32[1,128], index: 4, kind: input, shape index: {}]
  %s5 = inlined_call_operand.hbm [shape: bf16[128,1024], index: 5, kind: input, shape index: {}]
  %s6 = inlined_call_operand.vmem [shape: f32[1,1024], index: 6, kind: input, shape index: {}]
  %s7 = inlined_call_operand.hbm [shape: bf16[8,1024], index: 7, kind: output, shape index: {}]
  %s8 = sld [smem:[#allocation0]]
  $region54: #{tpu_custom_call.1} parent=0
    _
  %s10 = ssub.s32 1, %s8
  %s11 = scalar_select 0, %s10, %s8
  $region1: #{tpu_custom_call.1} parent=0
    #allocation2 [shape = 'u8[32768]{0}', space=vmem, size = 0x8000, scoped, tag = 'input window, operand 0, single buffered']
    #allocation3 [shape = 's32[1]{0}', space=sflag, size = 0x4, scoped, tag = 'scoped memory for tpu_custom_call.1']
    #allocation4 [shape = 's32[1]{0}', space=sflag, size = 0x4, scoped, tag = 'scoped memory for tpu_custom_call.1']
    #allocation5 [shape = 'u8[16384]{0}', space=vmem, size = 0x4000, scoped, tag = 'input window, operand 1, single buffered']
    #allocation6 [shape = 's32[1]{0}', space=sflag, size = 0x4, scoped, tag = 'scoped memory for tpu_custom_call.1']
    #allocation7 [shape = 'u8[16384]{0}', space=vmem, size = 0x4000, scoped, tag = 'input window, operand 3, single buffered']
    #allocation8 [shape = 'u8[262144]{0}', space=vmem, size = 0x40000, scoped, tag = 'input window, operand 5, single buffered']
    #allocation9 [shape = 's32[1]{0}', space=sflag, size = 0x4, scoped, tag = 'scoped memory for tpu_custom_call.1']
    #allocation10 [shape = 'u8[16384]{0}', space=vmem, size = 0x4000, scoped, tag = 'output window, operand 0, single buffered']
    %12 = vsyncpa [#allocation3], 0
    %13 = vsyncpa [#allocation6], 0
    %14 = vsyncpa [#allocation9], 0
    %15 = vsyncpa [#allocation4], 0
    // Predicated region
    $region2: #{tpu_custom_call.1} parent=1 // pred_check
      _
    $region3: #{tpu_custom_call.1} parent=1 // pred_check_branch
      %17 = sbr.rel (0) target = $region5
    $region4: #{tpu_custom_call.1} parent=1 // pred_region
      %s19 = ssub.s32 1024, 1024
      %20 = vsyncadd [#allocation3], %s19
      %s21 = sshll.u32 [#allocation2], 4
      %s22 = int_to_ptr.vmem [resolvable:$true] %s21
      %27 = dma.hbm_to_vmem [thread:$0]  %s0, 1024, %s22, [#allocation3], 64, 64, 4
    $region5: #{tpu_custom_call.1} parent=1 // pred_fallthru
      _
    // Predicated region
    $region6: #{tpu_custom_call.1} parent=1 // pred_check
      _
    $region7: #{tpu_custom_call.1} parent=1 // pred_check_branch
      %29 = sbr.rel (0) target = $region9
    $region8: #{tpu_custom_call.1} parent=1 // pred_region
      %s31 = ssub.s32 512, 512
      %32 = vsyncadd [#allocation6], %s31
      %s33 = sshll.u32 [#allocation5], 4
      %s34 = int_to_ptr.vmem [resolvable:$true] %s33
      %39 = dma.hbm_to_vmem [thread:$0]  %s1, 512, %s34, [#allocation6], 64, 64, 4
    $region9: #{tpu_custom_call.1} parent=1 // pred_fallthru
      _
    // Predicated region
    $region10: #{tpu_custom_call.1} parent=1 // pred_check
      _
    $region11: #{tpu_custom_call.1} parent=1 // pred_check_branch
      %41 = sbr.rel (0) target = $region13
    $region12: #{tpu_custom_call.1} parent=1 // pred_region
      _
    $region13: #{tpu_custom_call.1} parent=1 // pred_fallthru
      _
    // Predicated region
    $region14: #{tpu_custom_call.1} parent=1 // pred_check
      _
    $region15: #{tpu_custom_call.1} parent=1 // pred_check_branch
      %43 = sbr.rel (0) target = $region17
    $region16: #{tpu_custom_call.1} parent=1 // pred_region
      %s45 = ssub.s32 512, 512
      %46 = vsyncadd [#allocation6], %s45
      %s47 = sshll.u32 [#allocation7], 4
      %s48 = int_to_ptr.vmem [resolvable:$true] %s47
      %53 = dma.hbm_to_vmem [thread:$0]  %s3, 512, %s48, [#allocation6], 64, 64, 4
    $region17: #{tpu_custom_call.1} parent=1 // pred_fallthru
      _
    // Predicated region
    $region18: #{tpu_custom_call.1} parent=1 // pred_check
      _
    $region19: #{tpu_custom_call.1} parent=1 // pred_check_branch
      %55 = sbr.rel (0) target = $region21
    $region20: #{tpu_custom_call.1} parent=1 // pred_region
      _
    $region21: #{tpu_custom_call.1} parent=1 // pred_fallthru
      _
    // Predicated region
    $region22: #{tpu_custom_call.1} parent=1 // pred_check
      _
    $region23: #{tpu_custom_call.1} parent=1 // pred_check_branch
      %57 = sbr.rel (0) target = $region25
    $region24: #{tpu_custom_call.1} parent=1 // pred_region
      %s59 = ssub.s32 8192, 8192
      %60 = vsyncadd [#allocation9], %s59
      %s61 = sshll.u32 [#allocation8], 4
      %s62 = int_to_ptr.vmem [resolvable:$true] %s61
      %67 = dma.hbm_to_vmem [thread:$0]  %s5, 8192, %s62, [#allocation9], 512, 512, 32
    $region25: #{tpu_custom_call.1} parent=1 // pred_fallthru
      _
    // Predicated region
    $region26: #{tpu_custom_call.1} parent=1 // pred_check
      _
    $region27: #{tpu_custom_call.1} parent=1 // pred_check_branch
      %69 = sbr.rel (0) target = $region29
    $region28: #{tpu_custom_call.1} parent=1 // pred_region
      _
    $region29: #{tpu_custom_call.1} parent=1 // pred_fallthru
      _
    // Predicated region
    $region30: #{tpu_custom_call.1} parent=1 // pred_check
      _
    $region31: #{tpu_custom_call.1} parent=1 // pred_check_branch
      %71 = sbr.rel (0) target = $region33
    $region32: #{tpu_custom_call.1} parent=1 // pred_region
      %72 = dma.done [#allocation3], 1024
    $region33: #{tpu_custom_call.1} parent=1 // pred_fallthru
      _
    // Predicated region
    $region34: #{tpu_custom_call.1} parent=1 // pred_check
      _
    $region35: #{tpu_custom_call.1} parent=1 // pred_check_branch
      %74 = sbr.rel (0) target = $region37
    $region36: #{tpu_custom_call.1} parent=1 // pred_region
      %75 = dma.done [#allocation6], 512
    $region37: #{tpu_custom_call.1} parent=1 // pred_fallthru
      _
    // Predicated region
    $region38: #{tpu_custom_call.1} parent=1 // pred_check
      _
    $region39: #{tpu_custom_call.1} parent=1 // pred_check_branch
      %77 = sbr.rel (0) target = $region41
    $region40: #{tpu_custom_call.1} parent=1 // pred_region
      %78 = dma.done [#allocation6], 512
    $region41: #{tpu_custom_call.1} parent=1 // pred_fallthru
      _
    // Predicated region
    $region42: #{tpu_custom_call.1} parent=1 // pred_check
      _
    $region43: #{tpu_custom_call.1} parent=1 // pred_check_branch
      %80 = sbr.rel (0) target = $region45
    $region44: #{tpu_custom_call.1} parent=1 // pred_region
      %81 = dma.done [#allocation9], 8192
    $region45: #{tpu_custom_call.1} parent=1 // pred_fallthru
      _
    %v83 = vld [vmem:[#allocation2] sm:$0xf]
    %v84 = vld [vmem:[#allocation2 + $0x4] sm:$0xf]
    %v85 = vld [vmem:[#allocation2 + $0x8] sm:$0xf]
    %v86 = vld [vmem:[#allocation2 + $0xc] sm:$0xf]
    %v87 = vld [vmem:[#allocation2 + $0x10] sm:$0xf]
    %v88 = vld [vmem:[#allocation2 + $0x14] sm:$0xf]
    %v89 = vld [vmem:[#allocation2 + $0x18] sm:$0xf]
    %v90 = vld [vmem:[#allocation2 + $0x1c] sm:$0xf]
    %v91 = vld [vmem:[#allocation2 + $0x20] sm:$0xf]
    %v92 = vld [vmem:[#allocation2 + $0x24] sm:$0xf]
    %v93 = vld [vmem:[#allocation2 + $0x28] sm:$0xf]
    %v94 = vld [vmem:[#allocation2 + $0x2c] sm:$0xf]
    %v95 = vld [vmem:[#allocation2 + $0x30] sm:$0xf]
    %v96 = vld [vmem:[#allocation2 + $0x34] sm:$0xf]
    %v97 = vld [vmem:[#allocation2 + $0x38] sm:$0xf]
    %v98 = vld [vmem:[#allocation2 + $0x3c] sm:$0xf]
    %v99 = vld [vmem:[#allocation5] sm:$0xf]
    %v100 = vld [vmem:[#allocation5 + $0x4] sm:$0xf]
    %v101 = vld [vmem:[#allocation5 + $0x8] sm:$0xf]
    %v102 = vld [vmem:[#allocation5 + $0xc] sm:$0xf]
    %v103 = vld [vmem:[#allocation5 + $0x10] sm:$0xf]
    %v104 = vld [vmem:[#allocation5 + $0x14] sm:$0xf]
    %v105 = vld [vmem:[#allocation5 + $0x18] sm:$0xf]
    %v106 = vld [vmem:[#allocation5 + $0x1c] sm:$0xf]
    %v107 = vld [vmem:[%s2] sm:$0x1]
    %v109 = vlaneseq
    %v110 = vshrl.u32 %v109, 7
    %v111 = vsub.s32 0, %v110
    %v112 = vrot.slane %v107, %v111
    %v130 = vunpack.c.l.b16 %v83
    %v131 = vunpack.c.l.b16 %v84
    %v132 = vunpack.c.l.b16 %v85
    %v133 = vunpack.c.l.b16 %v86
    %v134 = vunpack.c.l.b16 %v87
    %v135 = vunpack.c.l.b16 %v88
    %v136 = vunpack.c.l.b16 %v89
    %v137 = vunpack.c.l.b16 %v90
    %v138 = vunpack.c.l.b16 %v91
    %v139 = vunpack.c.l.b16 %v92
    %v140 = vunpack.c.l.b16 %v93
    %v141 = vunpack.c.l.b16 %v94
    %v142 = vunpack.c.l.b16 %v95
    %v143 = vunpack.c.l.b16 %v96
    %v144 = vunpack.c.l.b16 %v97
    %v145 = vunpack.c.l.b16 %v98
    %v146 = vpack.c.b16 %v131, %v130
    %v147 = vpack.c.b16 %v133, %v132
    %v148 = vpack.c.b16 %v135, %v134
    %v149 = vpack.c.b16 %v137, %v136
    %v150 = vpack.c.b16 %v139, %v138
    %v151 = vpack.c.b16 %v141, %v140
    %v152 = vpack.c.b16 %v143, %v142
    %v153 = vpack.c.b16 %v145, %v144
    %v162 = vunpack.c.l.b16 %v99
    %v163 = vunpack.c.l.b16 %v100
    %v164 = vunpack.c.l.b16 %v101
    %v165 = vunpack.c.l.b16 %v102
    %v166 = vunpack.c.l.b16 %v103
    %v167 = vunpack.c.l.b16 %v104
    %v168 = vunpack.c.l.b16 %v105
    %v169 = vunpack.c.l.b16 %v106
    %v170 = vpack.c.b16 %v163, %v162
    %v171 = vpack.c.b16 %v165, %v164
    %v172 = vpack.c.b16 %v167, %v166
    %v173 = vpack.c.b16 %v169, %v168
    %vm178 = vcmask 523264
    %v180 = vsel %vm178, %v146, 0
    %v183 = vsel %vm178, %v147, 0
    %v186 = vsel %vm178, %v148, 0
    %v189 = vsel %vm178, %v149, 0
    %v192 = vsel %vm178, %v150, 0
    %v195 = vsel %vm178, %v151, 0
    %v198 = vsel %vm178, %v152, 0
    %v201 = vsel %vm178, %v153, 0
    %203 = vmatprep.subr.bf16.mxu0 0
    %204 = vmatpush1.bf16.msra.mxu0 %v170
    %205 = vmatprep.subr.bf16.mxu0 0
    %206 = vmatpush1.bf16.msra.mxu0 %v171
    %207 = vmatprep.subr.bf16.mxu0 0
    %208 = vmatpush1.bf16.msra.mxu0 %v172
    %209 = vmatprep.subr.bf16.mxu0 0
    %210 = vmatpush1.bf16.msra.mxu0 %v173
    %211 = vmatprep.subr.bf16.mxu0 0
    %212 = vmatpush1.bf16.msra.mxu0 0
    %213 = vmatprep.subr.bf16.mxu0 0
    %214 = vmatpush1.bf16.msra.mxu0 0
    %215 = vmatprep.subr.bf16.mxu0 0
    %216 = vmatpush1.bf16.msra.mxu0 0
    %217 = vmatprep.subr.bf16.mxu0 0
    %218 = vmatpush1.bf16.msra.mxu0 0
    %219 = vmatprep.subr.bf16.mxu0 0
    %220 = vmatpush1.bf16.msra.mxu0 0
    %221 = vmatprep.subr.bf16.mxu0 0
    %222 = vmatpush1.bf16.msra.mxu0 0
    %223 = vmatprep.subr.bf16.mxu0 0
    %224 = vmatpush1.bf16.msra.mxu0 0
    %225 = vmatprep.subr.bf16.mxu0 0
    %226 = vmatpush1.bf16.msra.mxu0 0
    %227 = vmatprep.subr.bf16.mxu0 0
    %228 = vmatpush1.bf16.msra.mxu0 0
    %229 = vmatprep.subr.bf16.mxu0 0
    %230 = vmatpush1.bf16.msra.mxu0 0
    %231 = vmatprep.subr.bf16.mxu0 0
    %232 = vmatpush1.bf16.msra.mxu0 0
    %233 = vmatprep.subr.bf16.mxu0 0
    %234 = vmatpush1.bf16.msra.mxu0 0
    %235 = vmatprep.mubr.bf16.mxu0 0
    %236 = vmatmul.mubr.bf16.gmra.mrb[0].mxu0 %v180
    %v237 = vpop.f32.mrb[0].mxu0
    %v238 = vadd.f32 %v112, %v237
    %v239 = vpop.f32.mrb[0].mxu0
    %v240 = vpop.f32.mrb[0].mxu0
    %v241 = vadd.f32 %v112, %v240
    %v242 = vpop.f32.mrb[0].mxu0
    %243 = vmatprep.mubr.bf16.mxu0 0
    %244 = vmatmul.mubr.bf16.gmra.mrb[0].mxu0 %v183
    %v245 = vpop.f32.mrb[0].mxu0
    %v246 = vadd.f32 %v112, %v245
    %v247 = vpop.f32.mrb[0].mxu0
    %v248 = vpop.f32.mrb[0].mxu0
    %v249 = vadd.f32 %v112, %v248
    %v250 = vpop.f32.mrb[0].mxu0
    %251 = vmatprep.mubr.bf16.mxu0 0
    %252 = vmatmul.mubr.bf16.gmra.mrb[0].mxu0 %v186
    %v253 = vpop.f32.mrb[0].mxu0
    %v254 = vadd.f32 %v112, %v253
    %v255 = vpop.f32.mrb[0].mxu0
    %v256 = vpop.f32.mrb[0].mxu0
    %v257 = vadd.f32 %v112, %v256
    %v258 = vpop.f32.mrb[0].mxu0
    %259 = vmatprep.mubr.bf16.mxu0 0
    %260 = vmatmul.mubr.bf16.gmra.mrb[0].mxu0 %v189
    %v261 = vpop.f32.mrb[0].mxu0
    %v262 = vadd.f32 %v112, %v261
    %v263 = vpop.f32.mrb[0].mxu0
    %v264 = vpop.f32.mrb[0].mxu0
    %v265 = vadd.f32 %v112, %v264
    %v266 = vpop.f32.mrb[0].mxu0
    %267 = vmatprep.mubr.bf16.mxu0 0
    %268 = vmatmul.mubr.bf16.gmra.mrb[0].mxu0 %v192
    %v269 = vpop.f32.mrb[0].mxu0
    %v270 = vadd.f32 %v112, %v269
    %v271 = vpop.f32.mrb[0].mxu0
    %v272 = vpop.f32.mrb[0].mxu0
    %v273 = vadd.f32 %v112, %v272
    %v274 = vpop.f32.mrb[0].mxu0
    %275 = vmatprep.mubr.bf16.mxu0 0
    %276 = vmatmul.mubr.bf16.gmra.mrb[0].mxu0 %v195
    %v277 = vpop.f32.mrb[0].mxu0
    %v278 = vadd.f32 %v112, %v277
    %v279 = vpop.f32.mrb[0].mxu0
    %v280 = vpop.f32.mrb[0].mxu0
    %v281 = vadd.f32 %v112, %v280
    %v282 = vpop.f32.mrb[0].mxu0
    %283 = vmatprep.mubr.bf16.mxu0 0
    %284 = vmatmul.mubr.bf16.gmra.mrb[0].mxu0 %v198
    %v285 = vpop.f32.mrb[0].mxu0
    %v286 = vadd.f32 %v112, %v285
    %v287 = vpop.f32.mrb[0].mxu0
    %v288 = vpop.f32.mrb[0].mxu0
    %v289 = vadd.f32 %v112, %v288
    %v290 = vpop.f32.mrb[0].mxu0
    %291 = vmatprep.mubr.bf16.mxu0 0
    %292 = vmatmul.mubr.bf16.gmra.mrb[0].mxu0 %v201
    %v293 = vpop.f32.mrb[0].mxu0
    %v294 = vadd.f32 %v112, %v293
    %v295 = vpop.f32.mrb[0].mxu0
    %v296 = vpop.f32.mrb[0].mxu0
    %v297 = vadd.f32 %v112, %v296
    %v298 = vpop.f32.mrb[0].mxu0
    %299 = vdwg.mxu0
    %v300 = vmax.f32 %v238, 0.0
    %v301 = vmax.f32 %v241, 0.0
    %v302 = vmax.f32 %v246, 0.0
    %v303 = vmax.f32 %v249, 0.0
    %v304 = vmax.f32 %v254, 0.0
    %v305 = vmax.f32 %v257, 0.0
    %v306 = vmax.f32 %v262, 0.0
    %v307 = vmax.f32 %v265, 0.0
    %v308 = vmax.f32 %v270, 0.0
    %v309 = vmax.f32 %v273, 0.0
    %v310 = vmax.f32 %v278, 0.0
    %v311 = vmax.f32 %v281, 0.0
    %v312 = vmax.f32 %v286, 0.0
    %v313 = vmax.f32 %v289, 0.0
    %v314 = vmax.f32 %v294, 0.0
    %v315 = vmax.f32 %v297, 0.0
    %v316 = vpack.c.bf16 %v301, %v300
    %v317 = vpack.c.bf16 %v303, %v302
    %v318 = vpack.c.bf16 %v305, %v304
    %v319 = vpack.c.bf16 %v307, %v306
    %v320 = vpack.c.bf16 %v309, %v308
    %v321 = vpack.c.bf16 %v311, %v310
    %v322 = vpack.c.bf16 %v313, %v312
    %v323 = vpack.c.bf16 %v315, %v314
    %v324 = vld [vmem:[#allocation7] sm:$0xf]
    %v325 = vld [vmem:[#allocation7 + $0x4] sm:$0xf]
    %v326 = vld [vmem:[#allocation7 + $0x8] sm:$0xf]
    %v327 = vld [vmem:[#allocation7 + $0xc] sm:$0xf]
    %v328 = vld [vmem:[#allocation7 + $0x10] sm:$0xf]
    %v329 = vld [vmem:[#allocation7 + $0x14] sm:$0xf]
    %v330 = vld [vmem:[#allocation7 + $0x18] sm:$0xf]
    %v331 = vld [vmem:[#allocation7 + $0x1c] sm:$0xf]
    %v332 = vld [vmem:[%s4] sm:$0x1]
    %v334 = vlaneseq
    %v335 = vshrl.u32 %v334, 7
    %v336 = vsub.s32 0, %v335
    %v337 = vrot.slane %v332, %v336
    %v347 = vunpack.c.l.b16 %v324
    %v348 = vunpack.c.l.b16 %v325
    %v349 = vunpack.c.l.b16 %v326
    %v350 = vunpack.c.l.b16 %v327
    %v351 = vunpack.c.l.b16 %v328
    %v352 = vunpack.c.l.b16 %v329
    %v353 = vunpack.c.l.b16 %v330
    %v354 = vunpack.c.l.b16 %v331
    %v355 = vpack.c.b16 %v348, %v347
    %v356 = vpack.c.b16 %v350, %v349
    %v357 = vpack.c.b16 %v352, %v351
    %v358 = vpack.c.b16 %v354, %v353
    %v364 = vsel %vm178, %v316, 0
    %v367 = vsel %vm178, %v317, 0
    %v370 = vsel %vm178, %v318, 0
    %v373 = vsel %vm178, %v319, 0
    %v376 = vsel %vm178, %v320, 0
    %v379 = vsel %vm178, %v321, 0
    %v382 = vsel %vm178, %v322, 0
    %v385 = vsel %vm178, %v323, 0
    %387 = vmatprep.subr.bf16.mxu0 0
    %388 = vmatpush1.bf16.msra.mxu0 %v355
    %389 = vmatprep.subr.bf16.mxu0 0
    %390 = vmatpush1.bf16.msra.mxu0 %v356
    %391 = vmatprep.subr.bf16.mxu0 0
    %392 = vmatpush1.bf16.msra.mxu0 %v357
    %393 = vmatprep.subr.bf16.mxu0 0
    %394 = vmatpush1.bf16.msra.mxu0 %v358
    %395 = vmatprep.subr.bf16.mxu0 0
    %396 = vmatpush1.bf16.msra.mxu0 0
    %397 = vmatprep.subr.bf16.mxu0 0
    %398 = vmatpush1.bf16.msra.mxu0 0
    %399 = vmatprep.subr.bf16.mxu0 0
    %400 = vmatpush1.bf16.msra.mxu0 0
    %401 = vmatprep.subr.bf16.mxu0 0
    %402 = vmatpush1.bf16.msra.mxu0 0
    %403 = vmatprep.subr.bf16.mxu0 0
    %404 = vmatpush1.bf16.msra.mxu0 0
    %405 = vmatprep.subr.bf16.mxu0 0
    %406 = vmatpush1.bf16.msra.mxu0 0
    %407 = vmatprep.subr.bf16.mxu0 0
    %408 = vmatpush1.bf16.msra.mxu0 0
    %409 = vmatprep.subr.bf16.mxu0 0
    %410 = vmatpush1.bf16.msra.mxu0 0
    %411 = vmatprep.subr.bf16.mxu0 0
    %412 = vmatpush1.bf16.msra.mxu0 0
    %413 = vmatprep.subr.bf16.mxu0 0
    %414 = vmatpush1.bf16.msra.mxu0 0
    %415 = vmatprep.subr.bf16.mxu0 0
    %416 = vmatpush1.bf16.msra.mxu0 0
    %417 = vmatprep.subr.bf16.mxu0 0
    %418 = vmatpush1.bf16.msra.mxu0 0
    %419 = vmatprep.mubr.bf16.mxu0 0
    %420 = vmatmul.mubr.bf16.gmra.mrb[0].mxu0 %v364
    %v421 = vpop.f32.mrb[0].mxu0
    %v422 = vadd.f32 %v337, %v421
    %v423 = vpop.f32.mrb[0].mxu0
    %v424 = vpop.f32.mrb[0].mxu0
    %v425 = vadd.f32 %v337, %v424
    %v426 = vpop.f32.mrb[0].mxu0
    %427 = vmatprep.mubr.bf16.mxu0 0
    %428 = vmatmul.mubr.bf16.gmra.mrb[0].mxu0 %v367
    %v429 = vpop.f32.mrb[0].mxu0
    %v430 = vadd.f32 %v337, %v429
    %v431 = vpop.f32.mrb[0].mxu0
    %v432 = vpop.f32.mrb[0].mxu0
    %v433 = vadd.f32 %v337, %v432
    %v434 = vpop.f32.mrb[0].mxu0
    %435 = vmatprep.mubr.bf16.mxu0 0
    %436 = vmatmul.mubr.bf16.gmra.mrb[0].mxu0 %v370
    %v437 = vpop.f32.mrb[0].mxu0
    %v438 = vadd.f32 %v337, %v437
    %v439 = vpop.f32.mrb[0].mxu0
    %v440 = vpop.f32.mrb[0].mxu0
    %v441 = vadd.f32 %v337, %v440
    %v442 = vpop.f32.mrb[0].mxu0
    %443 = vmatprep.mubr.bf16.mxu0 0
    %444 = vmatmul.mubr.bf16.gmra.mrb[0].mxu0 %v373
    %v445 = vpop.f32.mrb[0].mxu0
    %v446 = vadd.f32 %v337, %v445
    %v447 = vpop.f32.mrb[0].mxu0
    %v448 = vpop.f32.mrb[0].mxu0
    %v449 = vadd.f32 %v337, %v448
    %v450 = vpop.f32.mrb[0].mxu0
    %451 = vmatprep.mubr.bf16.mxu0 0
    %452 = vmatmul.mubr.bf16.gmra.mrb[0].mxu0 %v376
    %v453 = vpop.f32.mrb[0].mxu0
    %v454 = vadd.f32 %v337, %v453
    %v455 = vpop.f32.mrb[0].mxu0
    %v456 = vpop.f32.mrb[0].mxu0
    %v457 = vadd.f32 %v337, %v456
    %v458 = vpop.f32.mrb[0].mxu0
    %459 = vmatprep.mubr.bf16.mxu0 0
    %460 = vmatmul.mubr.bf16.gmra.mrb[0].mxu0 %v379
    %v461 = vpop.f32.mrb[0].mxu0
    %v462 = vadd.f32 %v337, %v461
    %v463 = vpop.f32.mrb[0].mxu0
    %v464 = vpop.f32.mrb[0].mxu0
    %v465 = vadd.f32 %v337, %v464
    %v466 = vpop.f32.mrb[0].mxu0
    %467 = vmatprep.mubr.bf16.mxu0 0
    %468 = vmatmul.mubr.bf16.gmra.mrb[0].mxu0 %v382
    %v469 = vpop.f32.mrb[0].mxu0
    %v470 = vadd.f32 %v337, %v469
    %v471 = vpop.f32.mrb[0].mxu0
    %v472 = vpop.f32.mrb[0].mxu0
    %v473 = vadd.f32 %v337, %v472
    %v474 = vpop.f32.mrb[0].mxu0
    %475 = vmatprep.mubr.bf16.mxu0 0
    %476 = vmatmul.mubr.bf16.gmra.mrb[0].mxu0 %v385
    %v477 = vpop.f32.mrb[0].mxu0
    %v478 = vadd.f32 %v337, %v477
    %v479 = vpop.f32.mrb[0].mxu0
    %v480 = vpop.f32.mrb[0].mxu0
    %v481 = vadd.f32 %v337, %v480
    %v482 = vpop.f32.mrb[0].mxu0
    %483 = vdwg.mxu0
    %v484 = vmax.f32 %v422, 0.0
    %v485 = vmax.f32 %v425, 0.0
    %v486 = vmax.f32 %v430, 0.0
    %v487 = vmax.f32 %v433, 0.0
    %v488 = vmax.f32 %v438, 0.0
    %v489 = vmax.f32 %v441, 0.0
    %v490 = vmax.f32 %v446, 0.0
    %v491 = vmax.f32 %v449, 0.0
    %v492 = vmax.f32 %v454, 0.0
    %v493 = vmax.f32 %v457, 0.0
    %v494 = vmax.f32 %v462, 0.0
    %v495 = vmax.f32 %v465, 0.0
    %v496 = vmax.f32 %v470, 0.0
    %v497 = vmax.f32 %v473, 0.0
    %v498 = vmax.f32 %v478, 0.0
    %v499 = vmax.f32 %v481, 0.0
    %v500 = vpack.c.bf16 %v485, %v484
    %v501 = vpack.c.bf16 %v487, %v486
    %v502 = vpack.c.bf16 %v489, %v488
    %v503 = vpack.c.bf16 %v491, %v490
    %v504 = vpack.c.bf16 %v493, %v492
    %v505 = vpack.c.bf16 %v495, %v494
    %v506 = vpack.c.bf16 %v497, %v496
    %v507 = vpack.c.bf16 %v499, %v498
    %v508 = vld [vmem:[#allocation8] sm:$0xff]
    %v509 = vld [vmem:[#allocation8 + $0x8] sm:$0xff]
    %v510 = vld [vmem:[#allocation8 + $0x10] sm:$0xff]
    %v511 = vld [vmem:[#allocation8 + $0x18] sm:$0xff]
    %v512 = vld [vmem:[#allocation8 + $0x20] sm:$0xff]
    %v513 = vld [vmem:[#allocation8 + $0x28] sm:$0xff]
    %v514 = vld [vmem:[#allocation8 + $0x30] sm:$0xff]
    %v515 = vld [vmem:[#allocation8 + $0x38] sm:$0xff]
    %v516 = vld [vmem:[#allocation8 + $0x40] sm:$0xff]
    %v517 = vld [vmem:[#allocation8 + $0x48] sm:$0xff]
    %v518 = vld [vmem:[#allocation8 + $0x50] sm:$0xff]
    %v519 = vld [vmem:[#allocation8 + $0x58] sm:$0xff]
    %v520 = vld [vmem:[#allocation8 + $0x60] sm:$0xff]
    %v521 = vld [vmem:[#allocation8 + $0x68] sm:$0xff]
    %v522 = vld [vmem:[#allocation8 + $0x70] sm:$0xff]
    %v523 = vld [vmem:[#allocation8 + $0x78] sm:$0xff]
    %v524 = vld [vmem:[#allocation8 + $0x80] sm:$0xff]
    %v525 = vld [vmem:[#allocation8 + $0x88] sm:$0xff]
    %v526 = vld [vmem:[#allocation8 + $0x90] sm:$0xff]
    %v527 = vld [vmem:[#allocation8 + $0x98] sm:$0xff]
    %v528 = vld [vmem:[#allocation8 + $0xa0] sm:$0xff]
    %v529 = vld [vmem:[#allocation8 + $0xa8] sm:$0xff]
    %v530 = vld [vmem:[#allocation8 + $0xb0] sm:$0xff]
    %v531 = vld [vmem:[#allocation8 + $0xb8] sm:$0xff]
    %v532 = vld [vmem:[#allocation8 + $0xc0] sm:$0xff]
    %v533 = vld [vmem:[#allocation8 + $0xc8] sm:$0xff]
    %v534 = vld [vmem:[#allocation8 + $0xd0] sm:$0xff]
    %v535 = vld [vmem:[#allocation8 + $0xd8] sm:$0xff]
    %v536 = vld [vmem:[#allocation8 + $0xe0] sm:$0xff]
    %v537 = vld [vmem:[#allocation8 + $0xe8] sm:$0xff]
    %v538 = vld [vmem:[#allocation8 + $0xf0] sm:$0xff]
    %v539 = vld [vmem:[#allocation8 + $0xf8] sm:$0xff]
    %v540 = vld [vmem:[#allocation8 + $0x100] sm:$0xff]
    %v541 = vld [vmem:[#allocation8 + $0x108] sm:$0xff]
    %v542 = vld [vmem:[#allocation8 + $0x110] sm:$0xff]
    %v543 = vld [vmem:[#allocation8 + $0x118] sm:$0xff]
    %v544 = vld [vmem:[#allocation8 + $0x120] sm:$0xff]
    %v545 = vld [vmem:[#allocation8 + $0x128] sm:$0xff]
    %v546 = vld [vmem:[#allocation8 + $0x130] sm:$0xff]
    %v547 = vld [vmem:[#allocation8 + $0x138] sm:$0xff]
    %v548 = vld [vmem:[#allocation8 + $0x140] sm:$0xff]
    %v549 = vld [vmem:[#allocation8 + $0x148] sm:$0xff]
    %v550 = vld [vmem:[#allocation8 + $0x150] sm:$0xff]
    %v551 = vld [vmem:[#allocation8 + $0x158] sm:$0xff]
    %v552 = vld [vmem:[#allocation8 + $0x160] sm:$0xff]
    %v553 = vld [vmem:[#allocation8 + $0x168] sm:$0xff]
    %v554 = vld [vmem:[#allocation8 + $0x170] sm:$0xff]
    %v555 = vld [vmem:[#allocation8 + $0x178] sm:$0xff]
    %v556 = vld [vmem:[#allocation8 + $0x180] sm:$0xff]
    %v557 = vld [vmem:[#allocation8 + $0x188] sm:$0xff]
    %v558 = vld [vmem:[#allocation8 + $0x190] sm:$0xff]
    %v559 = vld [vmem:[#allocation8 + $0x198] sm:$0xff]
    %v560 = vld [vmem:[#allocation8 + $0x1a0] sm:$0xff]
    %v561 = vld [vmem:[#allocation8 + $0x1a8] sm:$0xff]
    %v562 = vld [vmem:[#allocation8 + $0x1b0] sm:$0xff]
    %v563 = vld [vmem:[#allocation8 + $0x1b8] sm:$0xff]
    %v564 = vld [vmem:[#allocation8 + $0x1c0] sm:$0xff]
    %v565 = vld [vmem:[#allocation8 + $0x1c8] sm:$0xff]
    %v566 = vld [vmem:[#allocation8 + $0x1d0] sm:$0xff]
    %v567 = vld [vmem:[#allocation8 + $0x1d8] sm:$0xff]
    %v568 = vld [vmem:[#allocation8 + $0x1e0] sm:$0xff]
    %v569 = vld [vmem:[#allocation8 + $0x1e8] sm:$0xff]
    %v570 = vld [vmem:[#allocation8 + $0x1f0] sm:$0xff]
    %v571 = vld [vmem:[#allocation8 + $0x1f8] sm:$0xff]
    %v572 = vld [vmem:[%s6] sm:$0xff]
    %v574 = vlaneseq
    %v575 = vshrl.u32 %v574, 7
    %v576 = vsub.s32 0, %v575
    %v577 = vrot.slane %v572, %v576
    %v578 = vlaneseq
    %v579 = vshrl.u32 %v578, 7
    %v580 = vsub.s32 1, %v579
    %v581 = vrot.slane %v572, %v580
    %v582 = vlaneseq
    %v583 = vshrl.u32 %v582, 7
    %v584 = vsub.s32 2, %v583
    %v585 = vrot.slane %v572, %v584
    %v586 = vlaneseq
    %v587 = vshrl.u32 %v586, 7
    %v588 = vsub.s32 3, %v587
    %v589 = vrot.slane %v572, %v588
    %v590 = vlaneseq
    %v591 = vshrl.u32 %v590, 7
    %v592 = vsub.s32 4, %v591
    %v593 = vrot.slane %v572, %v592
    %v594 = vlaneseq
    %v595 = vshrl.u32 %v594, 7
    %v596 = vsub.s32 5, %v595
    %v597 = vrot.slane %v572, %v596
    %v598 = vlaneseq
    %v599 = vshrl.u32 %v598, 7
    %v600 = vsub.s32 6, %v599
    %v601 = vrot.slane %v572, %v600
    %v602 = vlaneseq
    %v603 = vshrl.u32 %v602, 7
    %v604 = vsub.s32 7, %v603
    %v605 = vrot.slane %v572, %v604
    %v678 = vunpack.c.l.b16 %v508
    %v679 = vunpack.c.h.b16 %v508
    %v680 = vunpack.c.l.b16 %v509
    %v681 = vunpack.c.h.b16 %v509
    %v682 = vunpack.c.l.b16 %v510
    %v683 = vunpack.c.h.b16 %v510
    %v684 = vunpack.c.l.b16 %v511
    %v685 = vunpack.c.h.b16 %v511
    %v686 = vunpack.c.l.b16 %v512
    %v687 = vunpack.c.h.b16 %v512
    %v688 = vunpack.c.l.b16 %v513
    %v689 = vunpack.c.h.b16 %v513
    %v690 = vunpack.c.l.b16 %v514
    %v691 = vunpack.c.h.b16 %v514
    %v692 = vunpack.c.l.b16 %v515
    %v693 = vunpack.c.h.b16 %v515
    %v694 = vunpack.c.l.b16 %v516
    %v695 = vunpack.c.h.b16 %v516
    %v696 = vunpack.c.l.b16 %v517
    %v697 = vunpack.c.h.b16 %v517
    %v698 = vunpack.c.l.b16 %v518
    %v699 = vunpack.c.h.b16 %v518
    %v700 = vunpack.c.l.b16 %v519
    %v701 = vunpack.c.h.b16 %v519
    %v702 = vunpack.c.l.b16 %v520
    %v703 = vunpack.c.h.b16 %v520
    %v704 = vunpack.c.l.b16 %v521
    %v705 = vunpack.c.h.b16 %v521
    %v706 = vunpack.c.l.b16 %v522
    %v707 = vunpack.c.h.b16 %v522
    %v708 = vunpack.c.l.b16 %v523
    %v709 = vunpack.c.h.b16 %v523
    %v710 = vunpack.c.l.b16 %v524
    %v711 = vunpack.c.h.b16 %v524
    %v712 = vunpack.c.l.b16 %v525
    %v713 = vunpack.c.h.b16 %v525
    %v714 = vunpack.c.l.b16 %v526
    %v715 = vunpack.c.h.b16 %v526
    %v716 = vunpack.c.l.b16 %v527
    %v717 = vunpack.c.h.b16 %v527
    %v718 = vunpack.c.l.b16 %v528
    %v719 = vunpack.c.h.b16 %v528
    %v720 = vunpack.c.l.b16 %v529
    %v721 = vunpack.c.h.b16 %v529
    %v722 = vunpack.c.l.b16 %v530
    %v723 = vunpack.c.h.b16 %v530
    %v724 = vunpack.c.l.b16 %v531
    %v725 = vunpack.c.h.b16 %v531
    %v726 = vunpack.c.l.b16 %v532
    %v727 = vunpack.c.h.b16 %v532
    %v728 = vunpack.c.l.b16 %v533
    %v729 = vunpack.c.h.b16 %v533
    %v730 = vunpack.c.l.b16 %v534
    %v731 = vunpack.c.h.b16 %v534
    %v732 = vunpack.c.l.b16 %v535
    %v733 = vunpack.c.h.b16 %v535
    %v734 = vunpack.c.l.b16 %v536
    %v735 = vunpack.c.h.b16 %v536
    %v736 = vunpack.c.l.b16 %v537
    %v737 = vunpack.c.h.b16 %v537
    %v738 = vunpack.c.l.b16 %v538
    %v739 = vunpack.c.h.b16 %v538
    %v740 = vunpack.c.l.b16 %v539
    %v741 = vunpack.c.h.b16 %v539
    %v742 = vunpack.c.l.b16 %v540
    %v743 = vunpack.c.h.b16 %v540
    %v744 = vunpack.c.l.b16 %v541
    %v745 = vunpack.c.h.b16 %v541
    %v746 = vunpack.c.l.b16 %v542
    %v747 = vunpack.c.h.b16 %v542
    %v748 = vunpack.c.l.b16 %v543
    %v749 = vunpack.c.h.b16 %v543
    %v750 = vunpack.c.l.b16 %v544
    %v751 = vunpack.c.h.b16 %v544
    %v752 = vunpack.c.l.b16 %v545
    %v753 = vunpack.c.h.b16 %v545
    %v754 = vunpack.c.l.b16 %v546
    %v755 = vunpack.c.h.b16 %v546
    %v756 = vunpack.c.l.b16 %v547
    %v757 = vunpack.c.h.b16 %v547
    %v758 = vunpack.c.l.b16 %v548
    %v759 = vunpack.c.h.b16 %v548
    %v760 = vunpack.c.l.b16 %v549
    %v761 = vunpack.c.h.b16 %v549
    %v762 = vunpack.c.l.b16 %v550
    %v763 = vunpack.c.h.b16 %v550
    %v764 = vunpack.c.l.b16 %v551
    %v765 = vunpack.c.h.b16 %v551
    %v766 = vunpack.c.l.b16 %v552
    %v767 = vunpack.c.h.b16 %v552
    %v768 = vunpack.c.l.b16 %v553
    %v769 = vunpack.c.h.b16 %v553
    %v770 = vunpack.c.l.b16 %v554
    %v771 = vunpack.c.h.b16 %v554
    %v772 = vunpack.c.l.b16 %v555
    %v773 = vunpack.c.h.b16 %v555
    %v774 = vunpack.c.l.b16 %v556
    %v775 = vunpack.c.h.b16 %v556
    %v776 = vunpack.c.l.b16 %v557
    %v777 = vunpack.c.h.b16 %v557
    %v778 = vunpack.c.l.b16 %v558
    %v779 = vunpack.c.h.b16 %v558
    %v780 = vunpack.c.l.b16 %v559
    %v781 = vunpack.c.h.b16 %v559
    %v782 = vunpack.c.l.b16 %v560
    %v783 = vunpack.c.h.b16 %v560
    %v784 = vunpack.c.l.b16 %v561
    %v785 = vunpack.c.h.b16 %v561
    %v786 = vunpack.c.l.b16 %v562
    %v787 = vunpack.c.h.b16 %v562
    %v788 = vunpack.c.l.b16 %v563
    %v789 = vunpack.c.h.b16 %v563
    %v790 = vunpack.c.l.b16 %v564
    %v791 = vunpack.c.h.b16 %v564
    %v792 = vunpack.c.l.b16 %v565
    %v793 = vunpack.c.h.b16 %v565
    %v794 = vunpack.c.l.b16 %v566
    %v795 = vunpack.c.h.b16 %v566
    %v796 = vunpack.c.l.b16 %v567
    %v797 = vunpack.c.h.b16 %v567
    %v798 = vunpack.c.l.b16 %v568
    %v799 = vunpack.c.h.b16 %v568
    %v800 = vunpack.c.l.b16 %v569
    %v801 = vunpack.c.h.b16 %v569
    %v802 = vunpack.c.l.b16 %v570
    %v803 = vunpack.c.h.b16 %v570
    %v804 = vunpack.c.l.b16 %v571
    %v805 = vunpack.c.h.b16 %v571
    %v806 = vpack.c.b16 %v686, %v678
    %v807 = vpack.c.b16 %v687, %v679
    %v808 = vpack.c.b16 %v688, %v680
    %v809 = vpack.c.b16 %v689, %v681
    %v810 = vpack.c.b16 %v690, %v682
    %v811 = vpack.c.b16 %v691, %v683
    %v812 = vpack.c.b16 %v692, %v684
    %v813 = vpack.c.b16 %v693, %v685
    %v814 = vpack.c.b16 %v702, %v694
    %v815 = vpack.c.b16 %v703, %v695
    %v816 = vpack.c.b16 %v704, %v696
    %v817 = vpack.c.b16 %v705, %v697
    %v818 = vpack.c.b16 %v706, %v698
    %v819 = vpack.c.b16 %v707, %v699
    %v820 = vpack.c.b16 %v708, %v700
    %v821 = vpack.c.b16 %v709, %v701
    %v822 = vpack.c.b16 %v718, %v710
    %v823 = vpack.c.b16 %v719, %v711
    %v824 = vpack.c.b16 %v720, %v712
    %v825 = vpack.c.b16 %v721, %v713
    %v826 = vpack.c.b16 %v722, %v714
    %v827 = vpack.c.b16 %v723, %v715
    %v828 = vpack.c.b16 %v724, %v716
    %v829 = vpack.c.b16 %v725, %v717
    %v830 = vpack.c.b16 %v734, %v726
    %v831 = vpack.c.b16 %v735, %v727
    %v832 = vpack.c.b16 %v736, %v728
    %v833 = vpack.c.b16 %v737, %v729
    %v834 = vpack.c.b16 %v738, %v730
    %v835 = vpack.c.b16 %v739, %v731
    %v836 = vpack.c.b16 %v740, %v732
    %v837 = vpack.c.b16 %v741, %v733
    %v838 = vpack.c.b16 %v750, %v742
    %v839 = vpack.c.b16 %v751, %v743
    %v840 = vpack.c.b16 %v752, %v744
    %v841 = vpack.c.b16 %v753, %v745
    %v842 = vpack.c.b16 %v754, %v746
    %v843 = vpack.c.b16 %v755, %v747
    %v844 = vpack.c.b16 %v756, %v748
    %v845 = vpack.c.b16 %v757, %v749
    %v846 = vpack.c.b16 %v766, %v758
    %v847 = vpack.c.b16 %v767, %v759
    %v848 = vpack.c.b16 %v768, %v760
    %v849 = vpack.c.b16 %v769, %v761
    %v850 = vpack.c.b16 %v770, %v762
    %v851 = vpack.c.b16 %v771, %v763
    %v852 = vpack.c.b16 %v772, %v764
    %v853 = vpack.c.b16 %v773, %v765
    %v854 = vpack.c.b16 %v782, %v774
    %v855 = vpack.c.b16 %v783, %v775
    %v856 = vpack.c.b16 %v784, %v776
    %v857 = vpack.c.b16 %v785, %v777
    %v858 = vpack.c.b16 %v786, %v778
    %v859 = vpack.c.b16 %v787, %v779
    %v860 = vpack.c.b16 %v788, %v780
    %v861 = vpack.c.b16 %v789, %v781
    %v862 = vpack.c.b16 %v798, %v790
    %v863 = vpack.c.b16 %v799, %v791
    %v864 = vpack.c.b16 %v800, %v792
    %v865 = vpack.c.b16 %v801, %v793
    %v866 = vpack.c.b16 %v802, %v794
    %v867 = vpack.c.b16 %v803, %v795
    %v868 = vpack.c.b16 %v804, %v796
    %v869 = vpack.c.b16 %v805, %v797
    %934 = vmatprep.subr.bf16.mxu0 %v807
    %935 = vmatpush1.bf16.msra.mxu0 %v806
    %936 = vmatprep.subr.bf16.mxu0 %v815
    %937 = vmatpush1.bf16.msra.mxu0 %v814
    %938 = vmatprep.subr.bf16.mxu0 %v823
    %939 = vmatpush1.bf16.msra.mxu0 %v822
    %940 = vmatprep.subr.bf16.mxu0 %v831
    %941 = vmatpush1.bf16.msra.mxu0 %v830
    %942 = vmatprep.subr.bf16.mxu0 %v839
    %943 = vmatpush1.bf16.msra.mxu0 %v838
    %944 = vmatprep.subr.bf16.mxu0 %v847
    %945 = vmatpush1.bf16.msra.mxu0 %v846
    %946 = vmatprep.subr.bf16.mxu0 %v855
    %947 = vmatpush1.bf16.msra.mxu0 %v854
    %948 = vmatprep.subr.bf16.mxu0 %v863
    %949 = vmatpush1.bf16.msra.mxu0 %v862
    %950 = vmatprep.subr.bf16.mxu0 0
    %951 = vmatpush1.bf16.msra.mxu0 0
    %952 = vmatprep.subr.bf16.mxu0 0
    %953 = vmatpush1.bf16.msra.mxu0 0
    %954 = vmatprep.subr.bf16.mxu0 0
    %955 = vmatpush1.bf16.msra.mxu0 0
    %956 = vmatprep.subr.bf16.mxu0 0
    %957 = vmatpush1.bf16.msra.mxu0 0
    %958 = vmatprep.subr.bf16.mxu0 0
    %959 = vmatpush1.bf16.msra.mxu0 0
    %960 = vmatprep.subr.bf16.mxu0 0
    %961 = vmatpush1.bf16.msra.mxu0 0
    %962 = vmatprep.subr.bf16.mxu0 0
    %963 = vmatpush1.bf16.msra.mxu0 0
    %964 = vmatprep.subr.bf16.mxu0 0
    %965 = vmatpush1.bf16.msra.mxu0 0
    %966 = vmatprep.mubr.bf16.mxu0 0
    %967 = vmatmul.mubr.bf16.gmra.mrb[0].mxu0 %v500
    %v968 = vpop.f32.mrb[0].mxu0
    %v969 = vadd.f32 %v577, %v968
    %v970 = vpop.f32.mrb[0].mxu0
    %v971 = vadd.f32 %v581, %v970
    %v972 = vpop.f32.mrb[0].mxu0
    %v973 = vadd.f32 %v577, %v972
    %v974 = vpop.f32.mrb[0].mxu0
    %v975 = vadd.f32 %v581, %v974
    %976 = vmatprep.mubr.bf16.mxu0 0
    %977 = vmatmul.mubr.bf16.gmra.mrb[0].mxu0 %v501
    %v978 = vpop.f32.mrb[0].mxu0
    %v979 = vadd.f32 %v577, %v978
    %v980 = vpop.f32.mrb[0].mxu0
    %v981 = vadd.f32 %v581, %v980
    %v982 = vpop.f32.mrb[0].mxu0
    %v983 = vadd.f32 %v577, %v982
    %v984 = vpop.f32.mrb[0].mxu0
    %v985 = vadd.f32 %v581, %v984
    %986 = vmatprep.mubr.bf16.mxu0 0
    %987 = vmatmul.mubr.bf16.gmra.mrb[0].mxu0 %v502
    %v988 = vpop.f32.mrb[0].mxu0
    %v989 = vadd.f32 %v577, %v988
    %v990 = vpop.f32.mrb[0].mxu0
    %v991 = vadd.f32 %v581, %v990
    %v992 = vpop.f32.mrb[0].mxu0
    %v993 = vadd.f32 %v577, %v992
    %v994 = vpop.f32.mrb[0].mxu0
    %v995 = vadd.f32 %v581, %v994
    %996 = vmatprep.mubr.bf16.mxu0 0
    %997 = vmatmul.mubr.bf16.gmra.mrb[0].mxu0 %v503
    %v998 = vpop.f32.mrb[0].mxu0
    %v999 = vadd.f32 %v577, %v998
    %v1000 = vpop.f32.mrb[0].mxu0
    %v1001 = vadd.f32 %v581, %v1000
    %v1002 = vpop.f32.mrb[0].mxu0
    %v1003 = vadd.f32 %v577, %v1002
    %v1004 = vpop.f32.mrb[0].mxu0
    %v1005 = vadd.f32 %v581, %v1004
    %1006 = vmatprep.mubr.bf16.mxu0 0
    %1007 = vmatmul.mubr.bf16.gmra.mrb[0].mxu0 %v504
    %v1008 = vpop.f32.mrb[0].mxu0
    %v1009 = vadd.f32 %v577, %v1008
    %v1010 = vpop.f32.mrb[0].mxu0
    %v1011 = vadd.f32 %v581, %v1010
    %v1012 = vpop.f32.mrb[0].mxu0
    %v1013 = vadd.f32 %v577, %v1012
    %v1014 = vpop.f32.mrb[0].mxu0
    %v1015 = vadd.f32 %v581, %v1014
    %1016 = vmatprep.mubr.bf16.mxu0 0
    %1017 = vmatmul.mubr.bf16.gmra.mrb[0].mxu0 %v505
    %v1018 = vpop.f32.mrb[0].mxu0
    %v1019 = vadd.f32 %v577, %v1018
    %v1020 = vpop.f32.mrb[0].mxu0
    %v1021 = vadd.f32 %v581, %v1020
    %v1022 = vpop.f32.mrb[0].mxu0
    %v1023 = vadd.f32 %v577, %v1022
    %v1024 = vpop.f32.mrb[0].mxu0
    %v1025 = vadd.f32 %v581, %v1024
    %1026 = vmatprep.mubr.bf16.mxu0 0
    %1027 = vmatmul.mubr.bf16.gmra.mrb[0].mxu0 %v506
    %v1028 = vpop.f32.mrb[0].mxu0
    %v1029 = vadd.f32 %v577, %v1028
    %v1030 = vpop.f32.mrb[0].mxu0
    %v1031 = vadd.f32 %v581, %v1030
    %v1032 = vpop.f32.mrb[0].mxu0
    %v1033 = vadd.f32 %v577, %v1032
    %v1034 = vpop.f32.mrb[0].mxu0
    %v1035 = vadd.f32 %v581, %v1034
    %1036 = vmatprep.mubr.bf16.mxu0 0
    %1037 = vmatmul.mubr.bf16.gmra.mrb[0].mxu0 %v507
    %v1038 = vpop.f32.mrb[0].mxu0
    %v1039 = vadd.f32 %v577, %v1038
    %v1040 = vpop.f32.mrb[0].mxu0
    %v1041 = vadd.f32 %v581, %v1040
    %v1042 = vpop.f32.mrb[0].mxu0
    %v1043 = vadd.f32 %v577, %v1042
    %v1044 = vpop.f32.mrb[0].mxu0
    %v1045 = vadd.f32 %v581, %v1044
    %1046 = vdwg.mxu0
    %1047 = vmatprep.subr.bf16.mxu0 %v809
    %1048 = vmatpush1.bf16.msra.mxu0 %v808
    %1049 = vmatprep.subr.bf16.mxu0 %v817
    %1050 = vmatpush1.bf16.msra.mxu0 %v816
    %1051 = vmatprep.subr.bf16.mxu0 %v825
    %1052 = vmatpush1.bf16.msra.mxu0 %v824
    %1053 = vmatprep.subr.bf16.mxu0 %v833
    %1054 = vmatpush1.bf16.msra.mxu0 %v832
    %1055 = vmatprep.subr.bf16.mxu0 %v841
    %1056 = vmatpush1.bf16.msra.mxu0 %v840
    %1057 = vmatprep.subr.bf16.mxu0 %v849
    %1058 = vmatpush1.bf16.msra.mxu0 %v848
    %1059 = vmatprep.subr.bf16.mxu0 %v857
    %1060 = vmatpush1.bf16.msra.mxu0 %v856
    %1061 = vmatprep.subr.bf16.mxu0 %v865
    %1062 = vmatpush1.bf16.msra.mxu0 %v864
    %1063 = vmatprep.subr.bf16.mxu0 0
    %1064 = vmatpush1.bf16.msra.mxu0 0
    %1065 = vmatprep.subr.bf16.mxu0 0
    %1066 = vmatpush1.bf16.msra.mxu0 0
    %1067 = vmatprep.subr.bf16.mxu0 0
    %1068 = vmatpush1.bf16.msra.mxu0 0
    %1069 = vmatprep.subr.bf16.mxu0 0
    %1070 = vmatpush1.bf16.msra.mxu0 0
    %1071 = vmatprep.subr.bf16.mxu0 0
    %1072 = vmatpush1.bf16.msra.mxu0 0
    %1073 = vmatprep.subr.bf16.mxu0 0
    %1074 = vmatpush1.bf16.msra.mxu0 0
    %1075 = vmatprep.subr.bf16.mxu0 0
    %1076 = vmatpush1.bf16.msra.mxu0 0
    %1077 = vmatprep.subr.bf16.mxu0 0
    %1078 = vmatpush1.bf16.msra.mxu0 0
    %1079 = vmatprep.mubr.bf16.mxu0 0
    %1080 = vmatmul.mubr.bf16.gmra.mrb[0].mxu0 %v500
    %v1081 = vpop.f32.mrb[0].mxu0
    %v1082 = vadd.f32 %v585, %v1081
    %v1083 = vpop.f32.mrb[0].mxu0
    %v1084 = vadd.f32 %v589, %v1083
    %v1085 = vpop.f32.mrb[0].mxu0
    %v1086 = vadd.f32 %v585, %v1085
    %v1087 = vpop.f32.mrb[0].mxu0
    %v1088 = vadd.f32 %v589, %v1087
    %1089 = vmatprep.mubr.bf16.mxu0 0
    %1090 = vmatmul.mubr.bf16.gmra.mrb[0].mxu0 %v501
    %v1091 = vpop.f32.mrb[0].mxu0
    %v1092 = vadd.f32 %v585, %v1091
    %v1093 = vpop.f32.mrb[0].mxu0
    %v1094 = vadd.f32 %v589, %v1093
    %v1095 = vpop.f32.mrb[0].mxu0
    %v1096 = vadd.f32 %v585, %v1095
    %v1097 = vpop.f32.mrb[0].mxu0
    %v1098 = vadd.f32 %v589, %v1097
    %1099 = vmatprep.mubr.bf16.mxu0 0
    %1100 = vmatmul.mubr.bf16.gmra.mrb[0].mxu0 %v502
    %v1101 = vpop.f32.mrb[0].mxu0
    %v1102 = vadd.f32 %v585, %v1101
    %v1103 = vpop.f32.mrb[0].mxu0
    %v1104 = vadd.f32 %v589, %v1103
    %v1105 = vpop.f32.mrb[0].mxu0
    %v1106 = vadd.f32 %v585, %v1105
    %v1107 = vpop.f32.mrb[0].mxu0
    %v1108 = vadd.f32 %v589, %v1107
    %1109 = vmatprep.mubr.bf16.mxu0 0
    %1110 = vmatmul.mubr.bf16.gmra.mrb[0].mxu0 %v503
    %v1111 = vpop.f32.mrb[0].mxu0
    %v1112 = vadd.f32 %v585, %v1111
    %v1113 = vpop.f32.mrb[0].mxu0
    %v1114 = vadd.f32 %v589, %v1113
    %v1115 = vpop.f32.mrb[0].mxu0
    %v1116 = vadd.f32 %v585, %v1115
    %v1117 = vpop.f32.mrb[0].mxu0
    %v1118 = vadd.f32 %v589, %v1117
    %1119 = vmatprep.mubr.bf16.mxu0 0
    %1120 = vmatmul.mubr.bf16.gmra.mrb[0].mxu0 %v504
    %v1121 = vpop.f32.mrb[0].mxu0
    %v1122 = vadd.f32 %v585, %v1121
    %v1123 = vpop.f32.mrb[0].mxu0
    %v1124 = vadd.f32 %v589, %v1123
    %v1125 = vpop.f32.mrb[0].mxu0
    %v1126 = vadd.f32 %v585, %v1125
    %v1127 = vpop.f32.mrb[0].mxu0
    %v1128 = vadd.f32 %v589, %v1127
    %1129 = vmatprep.mubr.bf16.mxu0 0
    %1130 = vmatmul.mubr.bf16.gmra.mrb[0].mxu0 %v505
    %v1131 = vpop.f32.mrb[0].mxu0
    %v1132 = vadd.f32 %v585, %v1131
    %v1133 = vpop.f32.mrb[0].mxu0
    %v1134 = vadd.f32 %v589, %v1133
    %v1135 = vpop.f32.mrb[0].mxu0
    %v1136 = vadd.f32 %v585, %v1135
    %v1137 = vpop.f32.mrb[0].mxu0
    %v1138 = vadd.f32 %v589, %v1137
    %1139 = vmatprep.mubr.bf16.mxu0 0
    %1140 = vmatmul.mubr.bf16.gmra.mrb[0].mxu0 %v506
    %v1141 = vpop.f32.mrb[0].mxu0
    %v1142 = vadd.f32 %v585, %v1141
    %v1143 = vpop.f32.mrb[0].mxu0
    %v1144 = vadd.f32 %v589, %v1143
    %v1145 = vpop.f32.mrb[0].mxu0
    %v1146 = vadd.f32 %v585, %v1145
    %v1147 = vpop.f32.mrb[0].mxu0
    %v1148 = vadd.f32 %v589, %v1147
    %1149 = vmatprep.mubr.bf16.mxu0 0
    %1150 = vmatmul.mubr.bf16.gmra.mrb[0].mxu0 %v507
    %v1151 = vpop.f32.mrb[0].mxu0
    %v1152 = vadd.f32 %v585, %v1151
    %v1153 = vpop.f32.mrb[0].mxu0
    %v1154 = vadd.f32 %v589, %v1153
    %v1155 = vpop.f32.mrb[0].mxu0
    %v1156 = vadd.f32 %v585, %v1155
    %v1157 = vpop.f32.mrb[0].mxu0
    %v1158 = vadd.f32 %v589, %v1157
    %1159 = vdwg.mxu0
    %1160 = vmatprep.subr.bf16.mxu0 %v811
    %1161 = vmatpush1.bf16.msra.mxu0 %v810
    %1162 = vmatprep.subr.bf16.mxu0 %v819
    %1163 = vmatpush1.bf16.msra.mxu0 %v818
    %1164 = vmatprep.subr.bf16.mxu0 %v827
    %1165 = vmatpush1.bf16.msra.mxu0 %v826
    %1166 = vmatprep.subr.bf16.mxu0 %v835
    %1167 = vmatpush1.bf16.msra.mxu0 %v834
    %1168 = vmatprep.subr.bf16.mxu0 %v843
    %1169 = vmatpush1.bf16.msra.mxu0 %v842
    %1170 = vmatprep.subr.bf16.mxu0 %v851
    %1171 = vmatpush1.bf16.msra.mxu0 %v850
    %1172 = vmatprep.subr.bf16.mxu0 %v859
    %1173 = vmatpush1.bf16.msra.mxu0 %v858
    %1174 = vmatprep.subr.bf16.mxu0 %v867
    %1175 = vmatpush1.bf16.msra.mxu0 %v866
    %1176 = vmatprep.subr.bf16.mxu0 0
    %1177 = vmatpush1.bf16.msra.mxu0 0
    %1178 = vmatprep.subr.bf16.mxu0 0
    %1179 = vmatpush1.bf16.msra.mxu0 0
    %1180 = vmatprep.subr.bf16.mxu0 0
    %1181 = vmatpush1.bf16.msra.mxu0 0
    %1182 = vmatprep.subr.bf16.mxu0 0
    %1183 = vmatpush1.bf16.msra.mxu0 0
    %1184 = vmatprep.subr.bf16.mxu0 0
    %1185 = vmatpush1.bf16.msra.mxu0 0
    %1186 = vmatprep.subr.bf16.mxu0 0
    %1187 = vmatpush1.bf16.msra.mxu0 0
    %1188 = vmatprep.subr.bf16.mxu0 0
    %1189 = vmatpush1.bf16.msra.mxu0 0
    %1190 = vmatprep.subr.bf16.mxu0 0
    %1191 = vmatpush1.bf16.msra.mxu0 0
    %1192 = vmatprep.mubr.bf16.mxu0 0
    %1193 = vmatmul.mubr.bf16.gmra.mrb[0].mxu0 %v500
    %v1194 = vpop.f32.mrb[0].mxu0
    %v1195 = vadd.f32 %v593, %v1194
    %v1196 = vpop.f32.mrb[0].mxu0
    %v1197 = vadd.f32 %v597, %v1196
    %v1198 = vpop.f32.mrb[0].mxu0
    %v1199 = vadd.f32 %v593, %v1198
    %v1200 = vpop.f32.mrb[0].mxu0
    %v1201 = vadd.f32 %v597, %v1200
    %1202 = vmatprep.mubr.bf16.mxu0 0
    %1203 = vmatmul.mubr.bf16.gmra.mrb[0].mxu0 %v501
    %v1204 = vpop.f32.mrb[0].mxu0
    %v1205 = vadd.f32 %v593, %v1204
    %v1206 = vpop.f32.mrb[0].mxu0
    %v1207 = vadd.f32 %v597, %v1206
    %v1208 = vpop.f32.mrb[0].mxu0
    %v1209 = vadd.f32 %v593, %v1208
    %v1210 = vpop.f32.mrb[0].mxu0
    %v1211 = vadd.f32 %v597, %v1210
    %1212 = vmatprep.mubr.bf16.mxu0 0
    %1213 = vmatmul.mubr.bf16.gmra.mrb[0].mxu0 %v502
    %v1214 = vpop.f32.mrb[0].mxu0
    %v1215 = vadd.f32 %v593, %v1214
    %v1216 = vpop.f32.mrb[0].mxu0
    %v1217 = vadd.f32 %v597, %v1216
    %v1218 = vpop.f32.mrb[0].mxu0
    %v1219 = vadd.f32 %v593, %v1218
    %v1220 = vpop.f32.mrb[0].mxu0
    %v1221 = vadd.f32 %v597, %v1220
    %1222 = vmatprep.mubr.bf16.mxu0 0
    %1223 = vmatmul.mubr.bf16.gmra.mrb[0].mxu0 %v503
    %v1224 = vpop.f32.mrb[0].mxu0
    %v1225 = vadd.f32 %v593, %v1224
    %v1226 = vpop.f32.mrb[0].mxu0
    %v1227 = vadd.f32 %v597, %v1226
    %v1228 = vpop.f32.mrb[0].mxu0
    %v1229 = vadd.f32 %v593, %v1228
    %v1230 = vpop.f32.mrb[0].mxu0
    %v1231 = vadd.f32 %v597, %v1230
    %1232 = vmatprep.mubr.bf16.mxu0 0
    %1233 = vmatmul.mubr.bf16.gmra.mrb[0].mxu0 %v504
    %v1234 = vpop.f32.mrb[0].mxu0
    %v1235 = vadd.f32 %v593, %v1234
    %v1236 = vpop.f32.mrb[0].mxu0
    %v1237 = vadd.f32 %v597, %v1236
    %v1238 = vpop.f32.mrb[0].mxu0
    %v1239 = vadd.f32 %v593, %v1238
    %v1240 = vpop.f32.mrb[0].mxu0
    %v1241 = vadd.f32 %v597, %v1240
    %1242 = vmatprep.mubr.bf16.mxu0 0
    %1243 = vmatmul.mubr.bf16.gmra.mrb[0].mxu0 %v505
    %v1244 = vpop.f32.mrb[0].mxu0
    %v1245 = vadd.f32 %v593, %v1244
    %v1246 = vpop.f32.mrb[0].mxu0
    %v1247 = vadd.f32 %v597, %v1246
    %v1248 = vpop.f32.mrb[0].mxu0
    %v1249 = vadd.f32 %v593, %v1248
    %v1250 = vpop.f32.mrb[0].mxu0
    %v1251 = vadd.f32 %v597, %v1250
    %1252 = vmatprep.mubr.bf16.mxu0 0
    %1253 = vmatmul.mubr.bf16.gmra.mrb[0].mxu0 %v506
    %v1254 = vpop.f32.mrb[0].mxu0
    %v1255 = vadd.f32 %v593, %v1254
    %v1256 = vpop.f32.mrb[0].mxu0
    %v1257 = vadd.f32 %v597, %v1256
    %v1258 = vpop.f32.mrb[0].mxu0
    %v1259 = vadd.f32 %v593, %v1258
    %v1260 = vpop.f32.mrb[0].mxu0
    %v1261 = vadd.f32 %v597, %v1260
    %1262 = vmatprep.mubr.bf16.mxu0 0
    %1263 = vmatmul.mubr.bf16.gmra.mrb[0].mxu0 %v507
    %v1264 = vpop.f32.mrb[0].mxu0
    %v1265 = vadd.f32 %v593, %v1264
    %v1266 = vpop.f32.mrb[0].mxu0
    %v1267 = vadd.f32 %v597, %v1266
    %v1268 = vpop.f32.mrb[0].mxu0
    %v1269 = vadd.f32 %v593, %v1268
    %v1270 = vpop.f32.mrb[0].mxu0
    %v1271 = vadd.f32 %v597, %v1270
    %1272 = vdwg.mxu0
    %1273 = vmatprep.subr.bf16.mxu0 %v813
    %1274 = vmatpush1.bf16.msra.mxu0 %v812
    %1275 = vmatprep.subr.bf16.mxu0 %v821
    %1276 = vmatpush1.bf16.msra.mxu0 %v820
    %1277 = vmatprep.subr.bf16.mxu0 %v829
    %1278 = vmatpush1.bf16.msra.mxu0 %v828
    %1279 = vmatprep.subr.bf16.mxu0 %v837
    %1280 = vmatpush1.bf16.msra.mxu0 %v836
    %1281 = vmatprep.subr.bf16.mxu0 %v845
    %1282 = vmatpush1.bf16.msra.mxu0 %v844
    %1283 = vmatprep.subr.bf16.mxu0 %v853
    %1284 = vmatpush1.bf16.msra.mxu0 %v852
    %1285 = vmatprep.subr.bf16.mxu0 %v861
    %1286 = vmatpush1.bf16.msra.mxu0 %v860
    %1287 = vmatprep.subr.bf16.mxu0 %v869
    %1288 = vmatpush1.bf16.msra.mxu0 %v868
    %1289 = vmatprep.subr.bf16.mxu0 0
    %1290 = vmatpush1.bf16.msra.mxu0 0
    %1291 = vmatprep.subr.bf16.mxu0 0
    %1292 = vmatpush1.bf16.msra.mxu0 0
    %1293 = vmatprep.subr.bf16.mxu0 0
    %1294 = vmatpush1.bf16.msra.mxu0 0
    %1295 = vmatprep.subr.bf16.mxu0 0
    %1296 = vmatpush1.bf16.msra.mxu0 0
    %1297 = vmatprep.subr.bf16.mxu0 0
    %1298 = vmatpush1.bf16.msra.mxu0 0
    %1299 = vmatprep.subr.bf16.mxu0 0
    %1300 = vmatpush1.bf16.msra.mxu0 0
    %1301 = vmatprep.subr.bf16.mxu0 0
    %1302 = vmatpush1.bf16.msra.mxu0 0
    %1303 = vmatprep.subr.bf16.mxu0 0
    %1304 = vmatpush1.bf16.msra.mxu0 0
    %1305 = vmatprep.mubr.bf16.mxu0 0
    %1306 = vmatmul.mubr.bf16.gmra.mrb[0].mxu0 %v500
    %v1307 = vpop.f32.mrb[0].mxu0
    %v1308 = vadd.f32 %v601, %v1307
    %v1309 = vpop.f32.mrb[0].mxu0
    %v1310 = vadd.f32 %v605, %v1309
    %v1311 = vpop.f32.mrb[0].mxu0
    %v1312 = vadd.f32 %v601, %v1311
    %v1313 = vpop.f32.mrb[0].mxu0
    %v1314 = vadd.f32 %v605, %v1313
    %1315 = vmatprep.mubr.bf16.mxu0 0
    %1316 = vmatmul.mubr.bf16.gmra.mrb[0].mxu0 %v501
    %v1317 = vpop.f32.mrb[0].mxu0
    %v1318 = vadd.f32 %v601, %v1317
    %v1319 = vpop.f32.mrb[0].mxu0
    %v1320 = vadd.f32 %v605, %v1319
    %v1321 = vpop.f32.mrb[0].mxu0
    %v1322 = vadd.f32 %v601, %v1321
    %v1323 = vpop.f32.mrb[0].mxu0
    %v1324 = vadd.f32 %v605, %v1323
    %1325 = vmatprep.mubr.bf16.mxu0 0
    %1326 = vmatmul.mubr.bf16.gmra.mrb[0].mxu0 %v502
    %v1327 = vpop.f32.mrb[0].mxu0
    %v1328 = vadd.f32 %v601, %v1327
    %v1329 = vpop.f32.mrb[0].mxu0
    %v1330 = vadd.f32 %v605, %v1329
    %v1331 = vpop.f32.mrb[0].mxu0
    %v1332 = vadd.f32 %v601, %v1331
    %v1333 = vpop.f32.mrb[0].mxu0
    %v1334 = vadd.f32 %v605, %v1333
    %1335 = vmatprep.mubr.bf16.mxu0 0
    %1336 = vmatmul.mubr.bf16.gmra.mrb[0].mxu0 %v503
    %v1337 = vpop.f32.mrb[0].mxu0
    %v1338 = vadd.f32 %v601, %v1337
    %v1339 = vpop.f32.mrb[0].mxu0
    %v1340 = vadd.f32 %v605, %v1339
    %v1341 = vpop.f32.mrb[0].mxu0
    %v1342 = vadd.f32 %v601, %v1341
    %v1343 = vpop.f32.mrb[0].mxu0
    %v1344 = vadd.f32 %v605, %v1343
    %1345 = vmatprep.mubr.bf16.mxu0 0
    %1346 = vmatmul.mubr.bf16.gmra.mrb[0].mxu0 %v504
    %v1347 = vpop.f32.mrb[0].mxu0
    %v1348 = vadd.f32 %v601, %v1347
    %v1349 = vpop.f32.mrb[0].mxu0
    %v1350 = vadd.f32 %v605, %v1349
    %v1351 = vpop.f32.mrb[0].mxu0
    %v1352 = vadd.f32 %v601, %v1351
    %v1353 = vpop.f32.mrb[0].mxu0
    %v1354 = vadd.f32 %v605, %v1353
    %1355 = vmatprep.mubr.bf16.mxu0 0
    %1356 = vmatmul.mubr.bf16.gmra.mrb[0].mxu0 %v505
    %v1357 = vpop.f32.mrb[0].mxu0
    %v1358 = vadd.f32 %v601, %v1357
    %v1359 = vpop.f32.mrb[0].mxu0
    %v1360 = vadd.f32 %v605, %v1359
    %v1361 = vpop.f32.mrb[0].mxu0
    %v1362 = vadd.f32 %v601, %v1361
    %v1363 = vpop.f32.mrb[0].mxu0
    %v1364 = vadd.f32 %v605, %v1363
    %1365 = vmatprep.mubr.bf16.mxu0 0
    %1366 = vmatmul.mubr.bf16.gmra.mrb[0].mxu0 %v506
    %v1367 = vpop.f32.mrb[0].mxu0
    %v1368 = vadd.f32 %v601, %v1367
    %v1369 = vpop.f32.mrb[0].mxu0
    %v1370 = vadd.f32 %v605, %v1369
    %v1371 = vpop.f32.mrb[0].mxu0
    %v1372 = vadd.f32 %v601, %v1371
    %v1373 = vpop.f32.mrb[0].mxu0
    %v1374 = vadd.f32 %v605, %v1373
    %1375 = vmatprep.mubr.bf16.mxu0 0
    %1376 = vmatmul.mubr.bf16.gmra.mrb[0].mxu0 %v507
    %v1377 = vpop.f32.mrb[0].mxu0
    %v1378 = vadd.f32 %v601, %v1377
    %v1379 = vpop.f32.mrb[0].mxu0
    %v1380 = vadd.f32 %v605, %v1379
    %v1381 = vpop.f32.mrb[0].mxu0
    %v1382 = vadd.f32 %v601, %v1381
    %v1383 = vpop.f32.mrb[0].mxu0
    %v1384 = vadd.f32 %v605, %v1383
    %1385 = vdwg.mxu0
    %v1386 = vmax.f32 %v969, 0.0
    %v1387 = vmax.f32 %v971, 0.0
    %v1388 = vmax.f32 %v1082, 0.0
    %v1389 = vmax.f32 %v1084, 0.0
    %v1390 = vmax.f32 %v1195, 0.0
    %v1391 = vmax.f32 %v1197, 0.0
    %v1392 = vmax.f32 %v1308, 0.0
    %v1393 = vmax.f32 %v1310, 0.0
    %v1394 = vmax.f32 %v973, 0.0
    %v1395 = vmax.f32 %v975, 0.0
    %v1396 = vmax.f32 %v1086, 0.0
    %v1397 = vmax.f32 %v1088, 0.0
    %v1398 = vmax.f32 %v1199, 0.0
    %v1399 = vmax.f32 %v1201, 0.0
    %v1400 = vmax.f32 %v1312, 0.0
    %v1401 = vmax.f32 %v1314, 0.0
    %v1402 = vmax.f32 %v979, 0.0
    %v1403 = vmax.f32 %v981, 0.0
    %v1404 = vmax.f32 %v1092, 0.0
    %v1405 = vmax.f32 %v1094, 0.0
    %v1406 = vmax.f32 %v1205, 0.0
    %v1407 = vmax.f32 %v1207, 0.0
    %v1408 = vmax.f32 %v1318, 0.0
    %v1409 = vmax.f32 %v1320, 0.0
    %v1410 = vmax.f32 %v983, 0.0
    %v1411 = vmax.f32 %v985, 0.0
    %v1412 = vmax.f32 %v1096, 0.0
    %v1413 = vmax.f32 %v1098, 0.0
    %v1414 = vmax.f32 %v1209, 0.0
    %v1415 = vmax.f32 %v1211, 0.0
    %v1416 = vmax.f32 %v1322, 0.0
    %v1417 = vmax.f32 %v1324, 0.0
    %v1418 = vmax.f32 %v989, 0.0
    %v1419 = vmax.f32 %v991, 0.0
    %v1420 = vmax.f32 %v1102, 0.0
    %v1421 = vmax.f32 %v1104, 0.0
    %v1422 = vmax.f32 %v1215, 0.0
    %v1423 = vmax.f32 %v1217, 0.0
    %v1424 = vmax.f32 %v1328, 0.0
    %v1425 = vmax.f32 %v1330, 0.0
    %v1426 = vmax.f32 %v993, 0.0
    %v1427 = vmax.f32 %v995, 0.0
    %v1428 = vmax.f32 %v1106, 0.0
    %v1429 = vmax.f32 %v1108, 0.0
    %v1430 = vmax.f32 %v1219, 0.0
    %v1431 = vmax.f32 %v1221, 0.0
    %v1432 = vmax.f32 %v1332, 0.0
    %v1433 = vmax.f32 %v1334, 0.0
    %v1434 = vmax.f32 %v999, 0.0
    %v1435 = vmax.f32 %v1001, 0.0
    %v1436 = vmax.f32 %v1112, 0.0
    %v1437 = vmax.f32 %v1114, 0.0
    %v1438 = vmax.f32 %v1225, 0.0
    %v1439 = vmax.f32 %v1227, 0.0
    %v1440 = vmax.f32 %v1338, 0.0
    %v1441 = vmax.f32 %v1340, 0.0
    %v1442 = vmax.f32 %v1003, 0.0
    %v1443 = vmax.f32 %v1005, 0.0
    %v1444 = vmax.f32 %v1116, 0.0
    %v1445 = vmax.f32 %v1118, 0.0
    %v1446 = vmax.f32 %v1229, 0.0
    %v1447 = vmax.f32 %v1231, 0.0
    %v1448 = vmax.f32 %v1342, 0.0
    %v1449 = vmax.f32 %v1344, 0.0
    %v1450 = vmax.f32 %v1009, 0.0
    %v1451 = vmax.f32 %v1011, 0.0
    %v1452 = vmax.f32 %v1122, 0.0
    %v1453 = vmax.f32 %v1124, 0.0
    %v1454 = vmax.f32 %v1235, 0.0
    %v1455 = vmax.f32 %v1237, 0.0
    %v1456 = vmax.f32 %v1348, 0.0
    %v1457 = vmax.f32 %v1350, 0.0
    %v1458 = vmax.f32 %v1013, 0.0
    %v1459 = vmax.f32 %v1015, 0.0
    %v1460 = vmax.f32 %v1126, 0.0
    %v1461 = vmax.f32 %v1128, 0.0
    %v1462 = vmax.f32 %v1239, 0.0
    %v1463 = vmax.f32 %v1241, 0.0
    %v1464 = vmax.f32 %v1352, 0.0
    %v1465 = vmax.f32 %v1354, 0.0
    %v1466 = vmax.f32 %v1019, 0.0
    %v1467 = vmax.f32 %v1021, 0.0
    %v1468 = vmax.f32 %v1132, 0.0
    %v1469 = vmax.f32 %v1134, 0.0
    %v1470 = vmax.f32 %v1245, 0.0
    %v1471 = vmax.f32 %v1247, 0.0
    %v1472 = vmax.f32 %v1358, 0.0
    %v1473 = vmax.f32 %v1360, 0.0
    %v1474 = vmax.f32 %v1023, 0.0
    %v1475 = vmax.f32 %v1025, 0.0
    %v1476 = vmax.f32 %v1136, 0.0
    %v1477 = vmax.f32 %v1138, 0.0
    %v1478 = vmax.f32 %v1249, 0.0
    %v1479 = vmax.f32 %v1251, 0.0
    %v1480 = vmax.f32 %v1362, 0.0
    %v1481 = vmax.f32 %v1364, 0.0
    %v1482 = vmax.f32 %v1029, 0.0
    %v1483 = vmax.f32 %v1031, 0.0
    %v1484 = vmax.f32 %v1142, 0.0
    %v1485 = vmax.f32 %v1144, 0.0
    %v1486 = vmax.f32 %v1255, 0.0
    %v1487 = vmax.f32 %v1257, 0.0
    %v1488 = vmax.f32 %v1368, 0.0
    %v1489 = vmax.f32 %v1370, 0.0
    %v1490 = vmax.f32 %v1033, 0.0
    %v1491 = vmax.f32 %v1035, 0.0
    %v1492 = vmax.f32 %v1146, 0.0
    %v1493 = vmax.f32 %v1148, 0.0
    %v1494 = vmax.f32 %v1259, 0.0
    %v1495 = vmax.f32 %v1261, 0.0
    %v1496 = vmax.f32 %v1372, 0.0
    %v1497 = vmax.f32 %v1374, 0.0
    %v1498 = vmax.f32 %v1039, 0.0
    %v1499 = vmax.f32 %v1041, 0.0
    %v1500 = vmax.f32 %v1152, 0.0
    %v1501 = vmax.f32 %v1154, 0.0
    %v1502 = vmax.f32 %v1265, 0.0
    %v1503 = vmax.f32 %v1267, 0.0
    %v1504 = vmax.f32 %v1378, 0.0
    %v1505 = vmax.f32 %v1380, 0.0
    %v1506 = vmax.f32 %v1043, 0.0
    %v1507 = vmax.f32 %v1045, 0.0
    %v1508 = vmax.f32 %v1156, 0.0
    %v1509 = vmax.f32 %v1158, 0.0
    %v1510 = vmax.f32 %v1269, 0.0
    %v1511 = vmax.f32 %v1271, 0.0
    %v1512 = vmax.f32 %v1382, 0.0
    %v1513 = vmax.f32 %v1384, 0.0
    %v1514 = vpack.c.bf16 %v1394, %v1386
    %v1515 = vpack.c.bf16 %v1395, %v1387
    %v1516 = vpack.c.bf16 %v1396, %v1388
    %v1517 = vpack.c.bf16 %v1397, %v1389
    %v1518 = vpack.c.bf16 %v1398, %v1390
    %v1519 = vpack.c.bf16 %v1399, %v1391
    %v1520 = vpack.c.bf16 %v1400, %v1392
    %v1521 = vpack.c.bf16 %v1401, %v1393
    %v1522 = vpack.c.bf16 %v1410, %v1402
    %v1523 = vpack.c.bf16 %v1411, %v1403
    %v1524 = vpack.c.bf16 %v1412, %v1404
    %v1525 = vpack.c.bf16 %v1413, %v1405
    %v1526 = vpack.c.bf16 %v1414, %v1406
    %v1527 = vpack.c.bf16 %v1415, %v1407
    %v1528 = vpack.c.bf16 %v1416, %v1408
    %v1529 = vpack.c.bf16 %v1417, %v1409
    %v1530 = vpack.c.bf16 %v1426, %v1418
    %v1531 = vpack.c.bf16 %v1427, %v1419
    %v1532 = vpack.c.bf16 %v1428, %v1420
    %v1533 = vpack.c.bf16 %v1429, %v1421
    %v1534 = vpack.c.bf16 %v1430, %v1422
    %v1535 = vpack.c.bf16 %v1431, %v1423
    %v1536 = vpack.c.bf16 %v1432, %v1424
    %v1537 = vpack.c.bf16 %v1433, %v1425
    %v1538 = vpack.c.bf16 %v1442, %v1434
    %v1539 = vpack.c.bf16 %v1443, %v1435
    %v1540 = vpack.c.bf16 %v1444, %v1436
    %v1541 = vpack.c.bf16 %v1445, %v1437
    %v1542 = vpack.c.bf16 %v1446, %v1438
    %v1543 = vpack.c.bf16 %v1447, %v1439
    %v1544 = vpack.c.bf16 %v1448, %v1440
    %v1545 = vpack.c.bf16 %v1449, %v1441
    %v1546 = vpack.c.bf16 %v1458, %v1450
    %v1547 = vpack.c.bf16 %v1459, %v1451
    %v1548 = vpack.c.bf16 %v1460, %v1452
    %v1549 = vpack.c.bf16 %v1461, %v1453
    %v1550 = vpack.c.bf16 %v1462, %v1454
    %v1551 = vpack.c.bf16 %v1463, %v1455
    %v1552 = vpack.c.bf16 %v1464, %v1456
    %v1553 = vpack.c.bf16 %v1465, %v1457
    %v1554 = vpack.c.bf16 %v1474, %v1466
    %v1555 = vpack.c.bf16 %v1475, %v1467
    %v1556 = vpack.c.bf16 %v1476, %v1468
    %v1557 = vpack.c.bf16 %v1477, %v1469
    %v1558 = vpack.c.bf16 %v1478, %v1470
    %v1559 = vpack.c.bf16 %v1479, %v1471
    %v1560 = vpack.c.bf16 %v1480, %v1472
    %v1561 = vpack.c.bf16 %v1481, %v1473
    %v1562 = vpack.c.bf16 %v1490, %v1482
    %v1563 = vpack.c.bf16 %v1491, %v1483
    %v1564 = vpack.c.bf16 %v1492, %v1484
    %v1565 = vpack.c.bf16 %v1493, %v1485
    %v1566 = vpack.c.bf16 %v1494, %v1486
    %v1567 = vpack.c.bf16 %v1495, %v1487
    %v1568 = vpack.c.bf16 %v1496, %v1488
    %v1569 = vpack.c.bf16 %v1497, %v1489
    %v1570 = vpack.c.bf16 %v1506, %v1498
    %v1571 = vpack.c.bf16 %v1507, %v1499
    %v1572 = vpack.c.bf16 %v1508, %v1500
    %v1573 = vpack.c.bf16 %v1509, %v1501
    %v1574 = vpack.c.bf16 %v1510, %v1502
    %v1575 = vpack.c.bf16 %v1511, %v1503
    %v1576 = vpack.c.bf16 %v1512, %v1504
    %v1577 = vpack.c.bf16 %v1513, %v1505
    %v1578 = vunpack.i.l.bf16 %v1514
    %v1579 = vunpack.i.h.bf16 %v1514
    %v1580 = vmax.f32 %v1578, %v1579
    %v1581 = vrot.slane %v1580, 4
    %v1582 = vmax.f32 %v1580, %v1581
    %v1583 = vrot.slane %v1582, 2
    %v1584 = vmax.f32 %v1582, %v1583
    %v1585 = vrot.slane %v1584, 1
    %v1586 = vmax.f32 %v1584, %v1585
    %v1587 = vpack.i.bf16 %v1586, %v1586
    %v1588 = vunpack.i.l.bf16 %v1515
    %v1589 = vunpack.i.h.bf16 %v1515
    %v1590 = vmax.f32 %v1588, %v1589
    %v1591 = vrot.slane %v1590, 4
    %v1592 = vmax.f32 %v1590, %v1591
    %v1593 = vrot.slane %v1592, 2
    %v1594 = vmax.f32 %v1592, %v1593
    %v1595 = vrot.slane %v1594, 1
    %v1596 = vmax.f32 %v1594, %v1595
    %v1597 = vpack.i.bf16 %v1596, %v1596
    %v1598 = vunpack.i.l.bf16 %v1516
    %v1599 = vunpack.i.h.bf16 %v1516
    %v1600 = vmax.f32 %v1598, %v1599
    %v1601 = vrot.slane %v1600, 4
    %v1602 = vmax.f32 %v1600, %v1601
    %v1603 = vrot.slane %v1602, 2
    %v1604 = vmax.f32 %v1602, %v1603
    %v1605 = vrot.slane %v1604, 1
    %v1606 = vmax.f32 %v1604, %v1605
    %v1607 = vpack.i.bf16 %v1606, %v1606
    %v1608 = vunpack.i.l.bf16 %v1517
    %v1609 = vunpack.i.h.bf16 %v1517
    %v1610 = vmax.f32 %v1608, %v1609
    %v1611 = vrot.slane %v1610, 4
    %v1612 = vmax.f32 %v1610, %v1611
    %v1613 = vrot.slane %v1612, 2
    %v1614 = vmax.f32 %v1612, %v1613
    %v1615 = vrot.slane %v1614, 1
    %v1616 = vmax.f32 %v1614, %v1615
    %v1617 = vpack.i.bf16 %v1616, %v1616
    %v1618 = vunpack.i.l.bf16 %v1518
    %v1619 = vunpack.i.h.bf16 %v1518
    %v1620 = vmax.f32 %v1618, %v1619
    %v1621 = vrot.slane %v1620, 4
    %v1622 = vmax.f32 %v1620, %v1621
    %v1623 = vrot.slane %v1622, 2
    %v1624 = vmax.f32 %v1622, %v1623
    %v1625 = vrot.slane %v1624, 1
    %v1626 = vmax.f32 %v1624, %v1625
    %v1627 = vpack.i.bf16 %v1626, %v1626
    %v1628 = vunpack.i.l.bf16 %v1519
    %v1629 = vunpack.i.h.bf16 %v1519
    %v1630 = vmax.f32 %v1628, %v1629
    %v1631 = vrot.slane %v1630, 4
    %v1632 = vmax.f32 %v1630, %v1631
    %v1633 = vrot.slane %v1632, 2
    %v1634 = vmax.f32 %v1632, %v1633
    %v1635 = vrot.slane %v1634, 1
    %v1636 = vmax.f32 %v1634, %v1635
    %v1637 = vpack.i.bf16 %v1636, %v1636
    %v1638 = vunpack.i.l.bf16 %v1520
    %v1639 = vunpack.i.h.bf16 %v1520
    %v1640 = vmax.f32 %v1638, %v1639
    %v1641 = vrot.slane %v1640, 4
    %v1642 = vmax.f32 %v1640, %v1641
    %v1643 = vrot.slane %v1642, 2
    %v1644 = vmax.f32 %v1642, %v1643
    %v1645 = vrot.slane %v1644, 1
    %v1646 = vmax.f32 %v1644, %v1645
    %v1647 = vpack.i.bf16 %v1646, %v1646
    %v1648 = vunpack.i.l.bf16 %v1521
    %v1649 = vunpack.i.h.bf16 %v1521
    %v1650 = vmax.f32 %v1648, %v1649
    %v1651 = vrot.slane %v1650, 4
    %v1652 = vmax.f32 %v1650, %v1651
    %v1653 = vrot.slane %v1652, 2
    %v1654 = vmax.f32 %v1652, %v1653
    %v1655 = vrot.slane %v1654, 1
    %v1656 = vmax.f32 %v1654, %v1655
    %v1657 = vpack.i.bf16 %v1656, %v1656
    %v1658 = vunpack.i.l.bf16 %v1522
    %v1659 = vunpack.i.h.bf16 %v1522
    %v1660 = vmax.f32 %v1658, %v1659
    %v1661 = vrot.slane %v1660, 4
    %v1662 = vmax.f32 %v1660, %v1661
    %v1663 = vrot.slane %v1662, 2
    %v1664 = vmax.f32 %v1662, %v1663
    %v1665 = vrot.slane %v1664, 1
    %v1666 = vmax.f32 %v1664, %v1665
    %v1667 = vpack.i.bf16 %v1666, %v1666
    %v1668 = vunpack.i.l.bf16 %v1523
    %v1669 = vunpack.i.h.bf16 %v1523
    %v1670 = vmax.f32 %v1668, %v1669
    %v1671 = vrot.slane %v1670, 4
    %v1672 = vmax.f32 %v1670, %v1671
    %v1673 = vrot.slane %v1672, 2
    %v1674 = vmax.f32 %v1672, %v1673
    %v1675 = vrot.slane %v1674, 1
    %v1676 = vmax.f32 %v1674, %v1675
    %v1677 = vpack.i.bf16 %v1676, %v1676
    %v1678 = vunpack.i.l.bf16 %v1524
    %v1679 = vunpack.i.h.bf16 %v1524
    %v1680 = vmax.f32 %v1678, %v1679
    %v1681 = vrot.slane %v1680, 4
    %v1682 = vmax.f32 %v1680, %v1681
    %v1683 = vrot.slane %v1682, 2
    %v1684 = vmax.f32 %v1682, %v1683
    %v1685 = vrot.slane %v1684, 1
    %v1686 = vmax.f32 %v1684, %v1685
    %v1687 = vpack.i.bf16 %v1686, %v1686
    %v1688 = vunpack.i.l.bf16 %v1525
    %v1689 = vunpack.i.h.bf16 %v1525
    %v1690 = vmax.f32 %v1688, %v1689
    %v1691 = vrot.slane %v1690, 4
    %v1692 = vmax.f32 %v1690, %v1691
    %v1693 = vrot.slane %v1692, 2
    %v1694 = vmax.f32 %v1692, %v1693
    %v1695 = vrot.slane %v1694, 1
    %v1696 = vmax.f32 %v1694, %v1695
    %v1697 = vpack.i.bf16 %v1696, %v1696
    %v1698 = vunpack.i.l.bf16 %v1526
    %v1699 = vunpack.i.h.bf16 %v1526
    %v1700 = vmax.f32 %v1698, %v1699
    %v1701 = vrot.slane %v1700, 4
    %v1702 = vmax.f32 %v1700, %v1701
    %v1703 = vrot.slane %v1702, 2
    %v1704 = vmax.f32 %v1702, %v1703
    %v1705 = vrot.slane %v1704, 1
    %v1706 = vmax.f32 %v1704, %v1705
    %v1707 = vpack.i.bf16 %v1706, %v1706
    %v1708 = vunpack.i.l.bf16 %v1527
    %v1709 = vunpack.i.h.bf16 %v1527
    %v1710 = vmax.f32 %v1708, %v1709
    %v1711 = vrot.slane %v1710, 4
    %v1712 = vmax.f32 %v1710, %v1711
    %v1713 = vrot.slane %v1712, 2
    %v1714 = vmax.f32 %v1712, %v1713
    %v1715 = vrot.slane %v1714, 1
    %v1716 = vmax.f32 %v1714, %v1715
    %v1717 = vpack.i.bf16 %v1716, %v1716
    %v1718 = vunpack.i.l.bf16 %v1528
    %v1719 = vunpack.i.h.bf16 %v1528
    %v1720 = vmax.f32 %v1718, %v1719
    %v1721 = vrot.slane %v1720, 4
    %v1722 = vmax.f32 %v1720, %v1721
    %v1723 = vrot.slane %v1722, 2
    %v1724 = vmax.f32 %v1722, %v1723
    %v1725 = vrot.slane %v1724, 1
    %v1726 = vmax.f32 %v1724, %v1725
    %v1727 = vpack.i.bf16 %v1726, %v1726
    %v1728 = vunpack.i.l.bf16 %v1529
    %v1729 = vunpack.i.h.bf16 %v1529
    %v1730 = vmax.f32 %v1728, %v1729
    %v1731 = vrot.slane %v1730, 4
    %v1732 = vmax.f32 %v1730, %v1731
    %v1733 = vrot.slane %v1732, 2
    %v1734 = vmax.f32 %v1732, %v1733
    %v1735 = vrot.slane %v1734, 1
    %v1736 = vmax.f32 %v1734, %v1735
    %v1737 = vpack.i.bf16 %v1736, %v1736
    %v1738 = vunpack.i.l.bf16 %v1530
    %v1739 = vunpack.i.h.bf16 %v1530
    %v1740 = vmax.f32 %v1738, %v1739
    %v1741 = vrot.slane %v1740, 4
    %v1742 = vmax.f32 %v1740, %v1741
    %v1743 = vrot.slane %v1742, 2
    %v1744 = vmax.f32 %v1742, %v1743
    %v1745 = vrot.slane %v1744, 1
    %v1746 = vmax.f32 %v1744, %v1745
    %v1747 = vpack.i.bf16 %v1746, %v1746
    %v1748 = vunpack.i.l.bf16 %v1531
    %v1749 = vunpack.i.h.bf16 %v1531
    %v1750 = vmax.f32 %v1748, %v1749
    %v1751 = vrot.slane %v1750, 4
    %v1752 = vmax.f32 %v1750, %v1751
    %v1753 = vrot.slane %v1752, 2
    %v1754 = vmax.f32 %v1752, %v1753
    %v1755 = vrot.slane %v1754, 1
    %v1756 = vmax.f32 %v1754, %v1755
    %v1757 = vpack.i.bf16 %v1756, %v1756
    %v1758 = vunpack.i.l.bf16 %v1532
    %v1759 = vunpack.i.h.bf16 %v1532
    %v1760 = vmax.f32 %v1758, %v1759
    %v1761 = vrot.slane %v1760, 4
    %v1762 = vmax.f32 %v1760, %v1761
    %v1763 = vrot.slane %v1762, 2
    %v1764 = vmax.f32 %v1762, %v1763
    %v1765 = vrot.slane %v1764, 1
    %v1766 = vmax.f32 %v1764, %v1765
    %v1767 = vpack.i.bf16 %v1766, %v1766
    %v1768 = vunpack.i.l.bf16 %v1533
    %v1769 = vunpack.i.h.bf16 %v1533
    %v1770 = vmax.f32 %v1768, %v1769
    %v1771 = vrot.slane %v1770, 4
    %v1772 = vmax.f32 %v1770, %v1771
    %v1773 = vrot.slane %v1772, 2
    %v1774 = vmax.f32 %v1772, %v1773
    %v1775 = vrot.slane %v1774, 1
    %v1776 = vmax.f32 %v1774, %v1775
    %v1777 = vpack.i.bf16 %v1776, %v1776
    %v1778 = vunpack.i.l.bf16 %v1534
    %v1779 = vunpack.i.h.bf16 %v1534
    %v1780 = vmax.f32 %v1778, %v1779
    %v1781 = vrot.slane %v1780, 4
    %v1782 = vmax.f32 %v1780, %v1781
    %v1783 = vrot.slane %v1782, 2
    %v1784 = vmax.f32 %v1782, %v1783
    %v1785 = vrot.slane %v1784, 1
    %v1786 = vmax.f32 %v1784, %v1785
    %v1787 = vpack.i.bf16 %v1786, %v1786
    %v1788 = vunpack.i.l.bf16 %v1535
    %v1789 = vunpack.i.h.bf16 %v1535
    %v1790 = vmax.f32 %v1788, %v1789
    %v1791 = vrot.slane %v1790, 4
    %v1792 = vmax.f32 %v1790, %v1791
    %v1793 = vrot.slane %v1792, 2
    %v1794 = vmax.f32 %v1792, %v1793
    %v1795 = vrot.slane %v1794, 1
    %v1796 = vmax.f32 %v1794, %v1795
    %v1797 = vpack.i.bf16 %v1796, %v1796
    %v1798 = vunpack.i.l.bf16 %v1536
    %v1799 = vunpack.i.h.bf16 %v1536
    %v1800 = vmax.f32 %v1798, %v1799
    %v1801 = vrot.slane %v1800, 4
    %v1802 = vmax.f32 %v1800, %v1801
    %v1803 = vrot.slane %v1802, 2
    %v1804 = vmax.f32 %v1802, %v1803
    %v1805 = vrot.slane %v1804, 1
    %v1806 = vmax.f32 %v1804, %v1805
    %v1807 = vpack.i.bf16 %v1806, %v1806
    %v1808 = vunpack.i.l.bf16 %v1537
    %v1809 = vunpack.i.h.bf16 %v1537
    %v1810 = vmax.f32 %v1808, %v1809
    %v1811 = vrot.slane %v1810, 4
    %v1812 = vmax.f32 %v1810, %v1811
    %v1813 = vrot.slane %v1812, 2
    %v1814 = vmax.f32 %v1812, %v1813
    %v1815 = vrot.slane %v1814, 1
    %v1816 = vmax.f32 %v1814, %v1815
    %v1817 = vpack.i.bf16 %v1816, %v1816
    %v1818 = vunpack.i.l.bf16 %v1538
    %v1819 = vunpack.i.h.bf16 %v1538
    %v1820 = vmax.f32 %v1818, %v1819
    %v1821 = vrot.slane %v1820, 4
    %v1822 = vmax.f32 %v1820, %v1821
    %v1823 = vrot.slane %v1822, 2
    %v1824 = vmax.f32 %v1822, %v1823
    %v1825 = vrot.slane %v1824, 1
    %v1826 = vmax.f32 %v1824, %v1825
    %v1827 = vpack.i.bf16 %v1826, %v1826
    %v1828 = vunpack.i.l.bf16 %v1539
    %v1829 = vunpack.i.h.bf16 %v1539
    %v1830 = vmax.f32 %v1828, %v1829
    %v1831 = vrot.slane %v1830, 4
    %v1832 = vmax.f32 %v1830, %v1831
    %v1833 = vrot.slane %v1832, 2
    %v1834 = vmax.f32 %v1832, %v1833
    %v1835 = vrot.slane %v1834, 1
    %v1836 = vmax.f32 %v1834, %v1835
    %v1837 = vpack.i.bf16 %v1836, %v1836
    %v1838 = vunpack.i.l.bf16 %v1540
    %v1839 = vunpack.i.h.bf16 %v1540
    %v1840 = vmax.f32 %v1838, %v1839
    %v1841 = vrot.slane %v1840, 4
    %v1842 = vmax.f32 %v1840, %v1841
    %v1843 = vrot.slane %v1842, 2
    %v1844 = vmax.f32 %v1842, %v1843
    %v1845 = vrot.slane %v1844, 1
    %v1846 = vmax.f32 %v1844, %v1845
    %v1847 = vpack.i.bf16 %v1846, %v1846
    %v1848 = vunpack.i.l.bf16 %v1541
    %v1849 = vunpack.i.h.bf16 %v1541
    %v1850 = vmax.f32 %v1848, %v1849
    %v1851 = vrot.slane %v1850, 4
    %v1852 = vmax.f32 %v1850, %v1851
    %v1853 = vrot.slane %v1852, 2
    %v1854 = vmax.f32 %v1852, %v1853
    %v1855 = vrot.slane %v1854, 1
    %v1856 = vmax.f32 %v1854, %v1855
    %v1857 = vpack.i.bf16 %v1856, %v1856
    %v1858 = vunpack.i.l.bf16 %v1542
    %v1859 = vunpack.i.h.bf16 %v1542
    %v1860 = vmax.f32 %v1858, %v1859
    %v1861 = vrot.slane %v1860, 4
    %v1862 = vmax.f32 %v1860, %v1861
    %v1863 = vrot.slane %v1862, 2
    %v1864 = vmax.f32 %v1862, %v1863
    %v1865 = vrot.slane %v1864, 1
    %v1866 = vmax.f32 %v1864, %v1865
    %v1867 = vpack.i.bf16 %v1866, %v1866
    %v1868 = vunpack.i.l.bf16 %v1543
    %v1869 = vunpack.i.h.bf16 %v1543
    %v1870 = vmax.f32 %v1868, %v1869
    %v1871 = vrot.slane %v1870, 4
    %v1872 = vmax.f32 %v1870, %v1871
    %v1873 = vrot.slane %v1872, 2
    %v1874 = vmax.f32 %v1872, %v1873
    %v1875 = vrot.slane %v1874, 1
    %v1876 = vmax.f32 %v1874, %v1875
    %v1877 = vpack.i.bf16 %v1876, %v1876
    %v1878 = vunpack.i.l.bf16 %v1544
    %v1879 = vunpack.i.h.bf16 %v1544
    %v1880 = vmax.f32 %v1878, %v1879
    %v1881 = vrot.slane %v1880, 4
    %v1882 = vmax.f32 %v1880, %v1881
    %v1883 = vrot.slane %v1882, 2
    %v1884 = vmax.f32 %v1882, %v1883
    %v1885 = vrot.slane %v1884, 1
    %v1886 = vmax.f32 %v1884, %v1885
    %v1887 = vpack.i.bf16 %v1886, %v1886
    %v1888 = vunpack.i.l.bf16 %v1545
    %v1889 = vunpack.i.h.bf16 %v1545
    %v1890 = vmax.f32 %v1888, %v1889
    %v1891 = vrot.slane %v1890, 4
    %v1892 = vmax.f32 %v1890, %v1891
    %v1893 = vrot.slane %v1892, 2
    %v1894 = vmax.f32 %v1892, %v1893
    %v1895 = vrot.slane %v1894, 1
    %v1896 = vmax.f32 %v1894, %v1895
    %v1897 = vpack.i.bf16 %v1896, %v1896
    %v1898 = vunpack.i.l.bf16 %v1546
    %v1899 = vunpack.i.h.bf16 %v1546
    %v1900 = vmax.f32 %v1898, %v1899
    %v1901 = vrot.slane %v1900, 4
    %v1902 = vmax.f32 %v1900, %v1901
    %v1903 = vrot.slane %v1902, 2
    %v1904 = vmax.f32 %v1902, %v1903
    %v1905 = vrot.slane %v1904, 1
    %v1906 = vmax.f32 %v1904, %v1905
    %v1907 = vpack.i.bf16 %v1906, %v1906
    %v1908 = vunpack.i.l.bf16 %v1547
    %v1909 = vunpack.i.h.bf16 %v1547
    %v1910 = vmax.f32 %v1908, %v1909
    %v1911 = vrot.slane %v1910, 4
    %v1912 = vmax.f32 %v1910, %v1911
    %v1913 = vrot.slane %v1912, 2
    %v1914 = vmax.f32 %v1912, %v1913
    %v1915 = vrot.slane %v1914, 1
    %v1916 = vmax.f32 %v1914, %v1915
    %v1917 = vpack.i.bf16 %v1916, %v1916
    %v1918 = vunpack.i.l.bf16 %v1548
    %v1919 = vunpack.i.h.bf16 %v1548
    %v1920 = vmax.f32 %v1918, %v1919
    %v1921 = vrot.slane %v1920, 4
    %v1922 = vmax.f32 %v1920, %v1921
    %v1923 = vrot.slane %v1922, 2
    %v1924 = vmax.f32 %v1922, %v1923
    %v1925 = vrot.slane %v1924, 1
    %v1926 = vmax.f32 %v1924, %v1925
    %v1927 = vpack.i.bf16 %v1926, %v1926
    %v1928 = vunpack.i.l.bf16 %v1549
    %v1929 = vunpack.i.h.bf16 %v1549
    %v1930 = vmax.f32 %v1928, %v1929
    %v1931 = vrot.slane %v1930, 4
    %v1932 = vmax.f32 %v1930, %v1931
    %v1933 = vrot.slane %v1932, 2
    %v1934 = vmax.f32 %v1932, %v1933
    %v1935 = vrot.slane %v1934, 1
    %v1936 = vmax.f32 %v1934, %v1935
    %v1937 = vpack.i.bf16 %v1936, %v1936
    %v1938 = vunpack.i.l.bf16 %v1550
    %v1939 = vunpack.i.h.bf16 %v1550
    %v1940 = vmax.f32 %v1938, %v1939
    %v1941 = vrot.slane %v1940, 4
    %v1942 = vmax.f32 %v1940, %v1941
    %v1943 = vrot.slane %v1942, 2
    %v1944 = vmax.f32 %v1942, %v1943
    %v1945 = vrot.slane %v1944, 1
    %v1946 = vmax.f32 %v1944, %v1945
    %v1947 = vpack.i.bf16 %v1946, %v1946
    %v1948 = vunpack.i.l.bf16 %v1551
    %v1949 = vunpack.i.h.bf16 %v1551
    %v1950 = vmax.f32 %v1948, %v1949
    %v1951 = vrot.slane %v1950, 4
    %v1952 = vmax.f32 %v1950, %v1951
    %v1953 = vrot.slane %v1952, 2
    %v1954 = vmax.f32 %v1952, %v1953
    %v1955 = vrot.slane %v1954, 1
    %v1956 = vmax.f32 %v1954, %v1955
    %v1957 = vpack.i.bf16 %v1956, %v1956
    %v1958 = vunpack.i.l.bf16 %v1552
    %v1959 = vunpack.i.h.bf16 %v1552
    %v1960 = vmax.f32 %v1958, %v1959
    %v1961 = vrot.slane %v1960, 4
    %v1962 = vmax.f32 %v1960, %v1961
    %v1963 = vrot.slane %v1962, 2
    %v1964 = vmax.f32 %v1962, %v1963
    %v1965 = vrot.slane %v1964, 1
    %v1966 = vmax.f32 %v1964, %v1965
    %v1967 = vpack.i.bf16 %v1966, %v1966
    %v1968 = vunpack.i.l.bf16 %v1553
    %v1969 = vunpack.i.h.bf16 %v1553
    %v1970 = vmax.f32 %v1968, %v1969
    %v1971 = vrot.slane %v1970, 4
    %v1972 = vmax.f32 %v1970, %v1971
    %v1973 = vrot.slane %v1972, 2
    %v1974 = vmax.f32 %v1972, %v1973
    %v1975 = vrot.slane %v1974, 1
    %v1976 = vmax.f32 %v1974, %v1975
    %v1977 = vpack.i.bf16 %v1976, %v1976
    %v1978 = vunpack.i.l.bf16 %v1554
    %v1979 = vunpack.i.h.bf16 %v1554
    %v1980 = vmax.f32 %v1978, %v1979
    %v1981 = vrot.slane %v1980, 4
    %v1982 = vmax.f32 %v1980, %v1981
    %v1983 = vrot.slane %v1982, 2
    %v1984 = vmax.f32 %v1982, %v1983
    %v1985 = vrot.slane %v1984, 1
    %v1986 = vmax.f32 %v1984, %v1985
    %v1987 = vpack.i.bf16 %v1986, %v1986
    %v1988 = vunpack.i.l.bf16 %v1555
    %v1989 = vunpack.i.h.bf16 %v1555
    %v1990 = vmax.f32 %v1988, %v1989
    %v1991 = vrot.slane %v1990, 4
    %v1992 = vmax.f32 %v1990, %v1991
    %v1993 = vrot.slane %v1992, 2
    %v1994 = vmax.f32 %v1992, %v1993
    %v1995 = vrot.slane %v1994, 1
    %v1996 = vmax.f32 %v1994, %v1995
    %v1997 = vpack.i.bf16 %v1996, %v1996
    %v1998 = vunpack.i.l.bf16 %v1556
    %v1999 = vunpack.i.h.bf16 %v1556
    %v2000 = vmax.f32 %v1998, %v1999
    %v2001 = vrot.slane %v2000, 4
    %v2002 = vmax.f32 %v2000, %v2001
    %v2003 = vrot.slane %v2002, 2
    %v2004 = vmax.f32 %v2002, %v2003
    %v2005 = vrot.slane %v2004, 1
    %v2006 = vmax.f32 %v2004, %v2005
    %v2007 = vpack.i.bf16 %v2006, %v2006
    %v2008 = vunpack.i.l.bf16 %v1557
    %v2009 = vunpack.i.h.bf16 %v1557
    %v2010 = vmax.f32 %v2008, %v2009
    %v2011 = vrot.slane %v2010, 4
    %v2012 = vmax.f32 %v2010, %v2011
    %v2013 = vrot.slane %v2012, 2
    %v2014 = vmax.f32 %v2012, %v2013
    %v2015 = vrot.slane %v2014, 1
    %v2016 = vmax.f32 %v2014, %v2015
    %v2017 = vpack.i.bf16 %v2016, %v2016
    %v2018 = vunpack.i.l.bf16 %v1558
    %v2019 = vunpack.i.h.bf16 %v1558
    %v2020 = vmax.f32 %v2018, %v2019
    %v2021 = vrot.slane %v2020, 4
    %v2022 = vmax.f32 %v2020, %v2021
    %v2023 = vrot.slane %v2022, 2
    %v2024 = vmax.f32 %v2022, %v2023
    %v2025 = vrot.slane %v2024, 1
    %v2026 = vmax.f32 %v2024, %v2025
    %v2027 = vpack.i.bf16 %v2026, %v2026
    %v2028 = vunpack.i.l.bf16 %v1559
    %v2029 = vunpack.i.h.bf16 %v1559
    %v2030 = vmax.f32 %v2028, %v2029
    %v2031 = vrot.slane %v2030, 4
    %v2032 = vmax.f32 %v2030, %v2031
    %v2033 = vrot.slane %v2032, 2
    %v2034 = vmax.f32 %v2032, %v2033
    %v2035 = vrot.slane %v2034, 1
    %v2036 = vmax.f32 %v2034, %v2035
    %v2037 = vpack.i.bf16 %v2036, %v2036
    %v2038 = vunpack.i.l.bf16 %v1560
    %v2039 = vunpack.i.h.bf16 %v1560
    %v2040 = vmax.f32 %v2038, %v2039
    %v2041 = vrot.slane %v2040, 4
    %v2042 = vmax.f32 %v2040, %v2041
    %v2043 = vrot.slane %v2042, 2
    %v2044 = vmax.f32 %v2042, %v2043
    %v2045 = vrot.slane %v2044, 1
    %v2046 = vmax.f32 %v2044, %v2045
    %v2047 = vpack.i.bf16 %v2046, %v2046
    %v2048 = vunpack.i.l.bf16 %v1561
    %v2049 = vunpack.i.h.bf16 %v1561
    %v2050 = vmax.f32 %v2048, %v2049
    %v2051 = vrot.slane %v2050, 4
    %v2052 = vmax.f32 %v2050, %v2051
    %v2053 = vrot.slane %v2052, 2
    %v2054 = vmax.f32 %v2052, %v2053
    %v2055 = vrot.slane %v2054, 1
    %v2056 = vmax.f32 %v2054, %v2055
    %v2057 = vpack.i.bf16 %v2056, %v2056
    %v2058 = vunpack.i.l.bf16 %v1562
    %v2059 = vunpack.i.h.bf16 %v1562
    %v2060 = vmax.f32 %v2058, %v2059
    %v2061 = vrot.slane %v2060, 4
    %v2062 = vmax.f32 %v2060, %v2061
    %v2063 = vrot.slane %v2062, 2
    %v2064 = vmax.f32 %v2062, %v2063
    %v2065 = vrot.slane %v2064, 1
    %v2066 = vmax.f32 %v2064, %v2065
    %v2067 = vpack.i.bf16 %v2066, %v2066
    %v2068 = vunpack.i.l.bf16 %v1563
    %v2069 = vunpack.i.h.bf16 %v1563
    %v2070 = vmax.f32 %v2068, %v2069
    %v2071 = vrot.slane %v2070, 4
    %v2072 = vmax.f32 %v2070, %v2071
    %v2073 = vrot.slane %v2072, 2
    %v2074 = vmax.f32 %v2072, %v2073
    %v2075 = vrot.slane %v2074, 1
    %v2076 = vmax.f32 %v2074, %v2075
    %v2077 = vpack.i.bf16 %v2076, %v2076
    %v2078 = vunpack.i.l.bf16 %v1564
    %v2079 = vunpack.i.h.bf16 %v1564
    %v2080 = vmax.f32 %v2078, %v2079
    %v2081 = vrot.slane %v2080, 4
    %v2082 = vmax.f32 %v2080, %v2081
    %v2083 = vrot.slane %v2082, 2
    %v2084 = vmax.f32 %v2082, %v2083
    %v2085 = vrot.slane %v2084, 1
    %v2086 = vmax.f32 %v2084, %v2085
    %v2087 = vpack.i.bf16 %v2086, %v2086
    %v2088 = vunpack.i.l.bf16 %v1565
    %v2089 = vunpack.i.h.bf16 %v1565
    %v2090 = vmax.f32 %v2088, %v2089
    %v2091 = vrot.slane %v2090, 4
    %v2092 = vmax.f32 %v2090, %v2091
    %v2093 = vrot.slane %v2092, 2
    %v2094 = vmax.f32 %v2092, %v2093
    %v2095 = vrot.slane %v2094, 1
    %v2096 = vmax.f32 %v2094, %v2095
    %v2097 = vpack.i.bf16 %v2096, %v2096
    %v2098 = vunpack.i.l.bf16 %v1566
    %v2099 = vunpack.i.h.bf16 %v1566
    %v2100 = vmax.f32 %v2098, %v2099
    %v2101 = vrot.slane %v2100, 4
    %v2102 = vmax.f32 %v2100, %v2101
    %v2103 = vrot.slane %v2102, 2
    %v2104 = vmax.f32 %v2102, %v2103
    %v2105 = vrot.slane %v2104, 1
    %v2106 = vmax.f32 %v2104, %v2105
    %v2107 = vpack.i.bf16 %v2106, %v2106
    %v2108 = vunpack.i.l.bf16 %v1567
    %v2109 = vunpack.i.h.bf16 %v1567
    %v2110 = vmax.f32 %v2108, %v2109
    %v2111 = vrot.slane %v2110, 4
    %v2112 = vmax.f32 %v2110, %v2111
    %v2113 = vrot.slane %v2112, 2
    %v2114 = vmax.f32 %v2112, %v2113
    %v2115 = vrot.slane %v2114, 1
    %v2116 = vmax.f32 %v2114, %v2115
    %v2117 = vpack.i.bf16 %v2116, %v2116
    %v2118 = vunpack.i.l.bf16 %v1568
    %v2119 = vunpack.i.h.bf16 %v1568
    %v2120 = vmax.f32 %v2118, %v2119
    %v2121 = vrot.slane %v2120, 4
    %v2122 = vmax.f32 %v2120, %v2121
    %v2123 = vrot.slane %v2122, 2
    %v2124 = vmax.f32 %v2122, %v2123
    %v2125 = vrot.slane %v2124, 1
    %v2126 = vmax.f32 %v2124, %v2125
    %v2127 = vpack.i.bf16 %v2126, %v2126
    %v2128 = vunpack.i.l.bf16 %v1569
    %v2129 = vunpack.i.h.bf16 %v1569
    %v2130 = vmax.f32 %v2128, %v2129
    %v2131 = vrot.slane %v2130, 4
    %v2132 = vmax.f32 %v2130, %v2131
    %v2133 = vrot.slane %v2132, 2
    %v2134 = vmax.f32 %v2132, %v2133
    %v2135 = vrot.slane %v2134, 1
    %v2136 = vmax.f32 %v2134, %v2135
    %v2137 = vpack.i.bf16 %v2136, %v2136
    %v2138 = vunpack.i.l.bf16 %v1570
    %v2139 = vunpack.i.h.bf16 %v1570
    %v2140 = vmax.f32 %v2138, %v2139
    %v2141 = vrot.slane %v2140, 4
    %v2142 = vmax.f32 %v2140, %v2141
    %v2143 = vrot.slane %v2142, 2
    %v2144 = vmax.f32 %v2142, %v2143
    %v2145 = vrot.slane %v2144, 1
    %v2146 = vmax.f32 %v2144, %v2145
    %v2147 = vpack.i.bf16 %v2146, %v2146
    %v2148 = vunpack.i.l.bf16 %v1571
    %v2149 = vunpack.i.h.bf16 %v1571
    %v2150 = vmax.f32 %v2148, %v2149
    %v2151 = vrot.slane %v2150, 4
    %v2152 = vmax.f32 %v2150, %v2151
    %v2153 = vrot.slane %v2152, 2
    %v2154 = vmax.f32 %v2152, %v2153
    %v2155 = vrot.slane %v2154, 1
    %v2156 = vmax.f32 %v2154, %v2155
    %v2157 = vpack.i.bf16 %v2156, %v2156
    %v2158 = vunpack.i.l.bf16 %v1572
    %v2159 = vunpack.i.h.bf16 %v1572
    %v2160 = vmax.f32 %v2158, %v2159
    %v2161 = vrot.slane %v2160, 4
    %v2162 = vmax.f32 %v2160, %v2161
    %v2163 = vrot.slane %v2162, 2
    %v2164 = vmax.f32 %v2162, %v2163
    %v2165 = vrot.slane %v2164, 1
    %v2166 = vmax.f32 %v2164, %v2165
    %v2167 = vpack.i.bf16 %v2166, %v2166
    %v2168 = vunpack.i.l.bf16 %v1573
    %v2169 = vunpack.i.h.bf16 %v1573
    %v2170 = vmax.f32 %v2168, %v2169
    %v2171 = vrot.slane %v2170, 4
    %v2172 = vmax.f32 %v2170, %v2171
    %v2173 = vrot.slane %v2172, 2
    %v2174 = vmax.f32 %v2172, %v2173
    %v2175 = vrot.slane %v2174, 1
    %v2176 = vmax.f32 %v2174, %v2175
    %v2177 = vpack.i.bf16 %v2176, %v2176
    %v2178 = vunpack.i.l.bf16 %v1574
    %v2179 = vunpack.i.h.bf16 %v1574
    %v2180 = vmax.f32 %v2178, %v2179
    %v2181 = vrot.slane %v2180, 4
    %v2182 = vmax.f32 %v2180, %v2181
    %v2183 = vrot.slane %v2182, 2
    %v2184 = vmax.f32 %v2182, %v2183
    %v2185 = vrot.slane %v2184, 1
    %v2186 = vmax.f32 %v2184, %v2185
    %v2187 = vpack.i.bf16 %v2186, %v2186
    %v2188 = vunpack.i.l.bf16 %v1575
    %v2189 = vunpack.i.h.bf16 %v1575
    %v2190 = vmax.f32 %v2188, %v2189
    %v2191 = vrot.slane %v2190, 4
    %v2192 = vmax.f32 %v2190, %v2191
    %v2193 = vrot.slane %v2192, 2
    %v2194 = vmax.f32 %v2192, %v2193
    %v2195 = vrot.slane %v2194, 1
    %v2196 = vmax.f32 %v2194, %v2195
    %v2197 = vpack.i.bf16 %v2196, %v2196
    %v2198 = vunpack.i.l.bf16 %v1576
    %v2199 = vunpack.i.h.bf16 %v1576
    %v2200 = vmax.f32 %v2198, %v2199
    %v2201 = vrot.slane %v2200, 4
    %v2202 = vmax.f32 %v2200, %v2201
    %v2203 = vrot.slane %v2202, 2
    %v2204 = vmax.f32 %v2202, %v2203
    %v2205 = vrot.slane %v2204, 1
    %v2206 = vmax.f32 %v2204, %v2205
    %v2207 = vpack.i.bf16 %v2206, %v2206
    %v2208 = vunpack.i.l.bf16 %v1577
    %v2209 = vunpack.i.h.bf16 %v1577
    %v2210 = vmax.f32 %v2208, %v2209
    %v2211 = vrot.slane %v2210, 4
    %v2212 = vmax.f32 %v2210, %v2211
    %v2213 = vrot.slane %v2212, 2
    %v2214 = vmax.f32 %v2212, %v2213
    %v2215 = vrot.slane %v2214, 1
    %v2216 = vmax.f32 %v2214, %v2215
    %v2217 = vpack.i.bf16 %v2216, %v2216
    %v2282 = vunpack.c.l.b16 %v1587
    %v2283 = vunpack.c.l.b16 %v1597
    %v2284 = vunpack.c.l.b16 %v1607
    %v2285 = vunpack.c.l.b16 %v1617
    %v2286 = vunpack.c.l.b16 %v1627
    %v2287 = vunpack.c.l.b16 %v1637
    %v2288 = vunpack.c.l.b16 %v1647
    %v2289 = vunpack.c.l.b16 %v1657
    %v2290 = vunpack.c.l.b16 %v1667
    %v2291 = vunpack.c.l.b16 %v1677
    %v2292 = vunpack.c.l.b16 %v1687
    %v2293 = vunpack.c.l.b16 %v1697
    %v2294 = vunpack.c.l.b16 %v1707
    %v2295 = vunpack.c.l.b16 %v1717
    %v2296 = vunpack.c.l.b16 %v1727
    %v2297 = vunpack.c.l.b16 %v1737
    %v2298 = vunpack.c.l.b16 %v1747
    %v2299 = vunpack.c.l.b16 %v1757
    %v2300 = vunpack.c.l.b16 %v1767
    %v2301 = vunpack.c.l.b16 %v1777
    %v2302 = vunpack.c.l.b16 %v1787
    %v2303 = vunpack.c.l.b16 %v1797
    %v2304 = vunpack.c.l.b16 %v1807
    %v2305 = vunpack.c.l.b16 %v1817
    %v2306 = vunpack.c.l.b16 %v1827
    %v2307 = vunpack.c.l.b16 %v1837
    %v2308 = vunpack.c.l.b16 %v1847
    %v2309 = vunpack.c.l.b16 %v1857
    %v2310 = vunpack.c.l.b16 %v1867
    %v2311 = vunpack.c.l.b16 %v1877
    %v2312 = vunpack.c.l.b16 %v1887
    %v2313 = vunpack.c.l.b16 %v1897
    %v2314 = vunpack.c.l.b16 %v1907
    %v2315 = vunpack.c.l.b16 %v1917
    %v2316 = vunpack.c.l.b16 %v1927
    %v2317 = vunpack.c.l.b16 %v1937
    %v2318 = vunpack.c.l.b16 %v1947
    %v2319 = vunpack.c.l.b16 %v1957
    %v2320 = vunpack.c.l.b16 %v1967
    %v2321 = vunpack.c.l.b16 %v1977
    %v2322 = vunpack.c.l.b16 %v1987
    %v2323 = vunpack.c.l.b16 %v1997
    %v2324 = vunpack.c.l.b16 %v2007
    %v2325 = vunpack.c.l.b16 %v2017
    %v2326 = vunpack.c.l.b16 %v2027
    %v2327 = vunpack.c.l.b16 %v2037
    %v2328 = vunpack.c.l.b16 %v2047
    %v2329 = vunpack.c.l.b16 %v2057
    %v2330 = vunpack.c.l.b16 %v2067
    %v2331 = vunpack.c.l.b16 %v2077
    %v2332 = vunpack.c.l.b16 %v2087
    %v2333 = vunpack.c.l.b16 %v2097
    %v2334 = vunpack.c.l.b16 %v2107
    %v2335 = vunpack.c.l.b16 %v2117
    %v2336 = vunpack.c.l.b16 %v2127
    %v2337 = vunpack.c.l.b16 %v2137
    %v2338 = vunpack.c.l.b16 %v2147
    %v2339 = vunpack.c.l.b16 %v2157
    %v2340 = vunpack.c.l.b16 %v2167
    %v2341 = vunpack.c.l.b16 %v2177
    %v2342 = vunpack.c.l.b16 %v2187
    %v2343 = vunpack.c.l.b16 %v2197
    %v2344 = vunpack.c.l.b16 %v2207
    %v2345 = vunpack.c.l.b16 %v2217
    %v2346 = vpack.c.b16 %v2283, %v2282
    %v2347 = vpack.c.b16 %v2285, %v2284
    %v2348 = vpack.c.b16 %v2287, %v2286
    %v2349 = vpack.c.b16 %v2289, %v2288
    %v2350 = vpack.c.b16 %v2291, %v2290
    %v2351 = vpack.c.b16 %v2293, %v2292
    %v2352 = vpack.c.b16 %v2295, %v2294
    %v2353 = vpack.c.b16 %v2297, %v2296
    %v2354 = vpack.c.b16 %v2299, %v2298
    %v2355 = vpack.c.b16 %v2301, %v2300
    %v2356 = vpack.c.b16 %v2303, %v2302
    %v2357 = vpack.c.b16 %v2305, %v2304
    %v2358 = vpack.c.b16 %v2307, %v2306
    %v2359 = vpack.c.b16 %v2309, %v2308
    %v2360 = vpack.c.b16 %v2311, %v2310
    %v2361 = vpack.c.b16 %v2313, %v2312
    %v2362 = vpack.c.b16 %v2315, %v2314
    %v2363 = vpack.c.b16 %v2317, %v2316
    %v2364 = vpack.c.b16 %v2319, %v2318
    %v2365 = vpack.c.b16 %v2321, %v2320
    %v2366 = vpack.c.b16 %v2323, %v2322
    %v2367 = vpack.c.b16 %v2325, %v2324
    %v2368 = vpack.c.b16 %v2327, %v2326
    %v2369 = vpack.c.b16 %v2329, %v2328
    %v2370 = vpack.c.b16 %v2331, %v2330
    %v2371 = vpack.c.b16 %v2333, %v2332
    %v2372 = vpack.c.b16 %v2335, %v2334
    %v2373 = vpack.c.b16 %v2337, %v2336
    %v2374 = vpack.c.b16 %v2339, %v2338
    %v2375 = vpack.c.b16 %v2341, %v2340
    %v2376 = vpack.c.b16 %v2343, %v2342
    %v2377 = vpack.c.b16 %v2345, %v2344
    %v2378 = vunpack.c.l.b16 %v2346
    %v2379 = vunpack.c.h.b16 %v2346
    %v2380 = vunpack.c.l.b16 %v2347
    %v2381 = vunpack.c.h.b16 %v2347
    %v2382 = vunpack.c.l.b16 %v2348
    %v2383 = vunpack.c.h.b16 %v2348
    %v2384 = vunpack.c.l.b16 %v2349
    %v2385 = vunpack.c.h.b16 %v2349
    %v2386 = vunpack.c.l.b16 %v2350
    %v2387 = vunpack.c.h.b16 %v2350
    %v2388 = vunpack.c.l.b16 %v2351
    %v2389 = vunpack.c.h.b16 %v2351
    %v2390 = vunpack.c.l.b16 %v2352
    %v2391 = vunpack.c.h.b16 %v2352
    %v2392 = vunpack.c.l.b16 %v2353
    %v2393 = vunpack.c.h.b16 %v2353
    %v2394 = vunpack.c.l.b16 %v2354
    %v2395 = vunpack.c.h.b16 %v2354
    %v2396 = vunpack.c.l.b16 %v2355
    %v2397 = vunpack.c.h.b16 %v2355
    %v2398 = vunpack.c.l.b16 %v2356
    %v2399 = vunpack.c.h.b16 %v2356
    %v2400 = vunpack.c.l.b16 %v2357
    %v2401 = vunpack.c.h.b16 %v2357
    %v2402 = vunpack.c.l.b16 %v2358
    %v2403 = vunpack.c.h.b16 %v2358
    %v2404 = vunpack.c.l.b16 %v2359
    %v2405 = vunpack.c.h.b16 %v2359
    %v2406 = vunpack.c.l.b16 %v2360
    %v2407 = vunpack.c.h.b16 %v2360
    %v2408 = vunpack.c.l.b16 %v2361
    %v2409 = vunpack.c.h.b16 %v2361
    %v2410 = vunpack.c.l.b16 %v2362
    %v2411 = vunpack.c.h.b16 %v2362
    %v2412 = vunpack.c.l.b16 %v2363
    %v2413 = vunpack.c.h.b16 %v2363
    %v2414 = vunpack.c.l.b16 %v2364
    %v2415 = vunpack.c.h.b16 %v2364
    %v2416 = vunpack.c.l.b16 %v2365
    %v2417 = vunpack.c.h.b16 %v2365
    %v2418 = vunpack.c.l.b16 %v2366
    %v2419 = vunpack.c.h.b16 %v2366
    %v2420 = vunpack.c.l.b16 %v2367
    %v2421 = vunpack.c.h.b16 %v2367
    %v2422 = vunpack.c.l.b16 %v2368
    %v2423 = vunpack.c.h.b16 %v2368
    %v2424 = vunpack.c.l.b16 %v2369
    %v2425 = vunpack.c.h.b16 %v2369
    %v2426 = vunpack.c.l.b16 %v2370
    %v2427 = vunpack.c.h.b16 %v2370
    %v2428 = vunpack.c.l.b16 %v2371
    %v2429 = vunpack.c.h.b16 %v2371
    %v2430 = vunpack.c.l.b16 %v2372
    %v2431 = vunpack.c.h.b16 %v2372
    %v2432 = vunpack.c.l.b16 %v2373
    %v2433 = vunpack.c.h.b16 %v2373
    %v2434 = vunpack.c.l.b16 %v2374
    %v2435 = vunpack.c.h.b16 %v2374
    %v2436 = vunpack.c.l.b16 %v2375
    %v2437 = vunpack.c.h.b16 %v2375
    %v2438 = vunpack.c.l.b16 %v2376
    %v2439 = vunpack.c.h.b16 %v2376
    %v2440 = vunpack.c.l.b16 %v2377
    %v2441 = vunpack.c.h.b16 %v2377
    %vm2442 = vcmask 1041409
    %v2443 = vsel %vm2442, %v2386, %v2378
    %vm2444 = vcmask 1042434
    %v2445 = vsel %vm2444, %v2394, %v2443
    %vm2446 = vcmask 1043459
    %v2447 = vsel %vm2446, %v2402, %v2445
    %vm2448 = vcmask 1044484
    %v2449 = vsel %vm2448, %v2410, %v2447
    %vm2450 = vcmask 1045509
    %v2451 = vsel %vm2450, %v2418, %v2449
    %vm2452 = vcmask 1046534
    %v2453 = vsel %vm2452, %v2426, %v2451
    %vm2454 = vcmask 1047559
    %v2455 = vsel %vm2454, %v2434, %v2453
    %v2456 = vsel %vm2442, %v2387, %v2379
    %v2457 = vsel %vm2444, %v2395, %v2456
    %v2458 = vsel %vm2446, %v2403, %v2457
    %v2459 = vsel %vm2448, %v2411, %v2458
    %v2460 = vsel %vm2450, %v2419, %v2459
    %v2461 = vsel %vm2452, %v2427, %v2460
    %v2462 = vsel %vm2454, %v2435, %v2461
    %v2463 = vsel %vm2442, %v2388, %v2380
    %v2464 = vsel %vm2444, %v2396, %v2463
    %v2465 = vsel %vm2446, %v2404, %v2464
    %v2466 = vsel %vm2448, %v2412, %v2465
    %v2467 = vsel %vm2450, %v2420, %v2466
    %v2468 = vsel %vm2452, %v2428, %v2467
    %v2469 = vsel %vm2454, %v2436, %v2468
    %v2470 = vsel %vm2442, %v2389, %v2381
    %v2471 = vsel %vm2444, %v2397, %v2470
    %v2472 = vsel %vm2446, %v2405, %v2471
    %v2473 = vsel %vm2448, %v2413, %v2472
    %v2474 = vsel %vm2450, %v2421, %v2473
    %v2475 = vsel %vm2452, %v2429, %v2474
    %v2476 = vsel %vm2454, %v2437, %v2475
    %v2477 = vsel %vm2442, %v2390, %v2382
    %v2478 = vsel %vm2444, %v2398, %v2477
    %v2479 = vsel %vm2446, %v2406, %v2478
    %v2480 = vsel %vm2448, %v2414, %v2479
    %v2481 = vsel %vm2450, %v2422, %v2480
    %v2482 = vsel %vm2452, %v2430, %v2481
    %v2483 = vsel %vm2454, %v2438, %v2482
    %v2484 = vsel %vm2442, %v2391, %v2383
    %v2485 = vsel %vm2444, %v2399, %v2484
    %v2486 = vsel %vm2446, %v2407, %v2485
    %v2487 = vsel %vm2448, %v2415, %v2486
    %v2488 = vsel %vm2450, %v2423, %v2487
    %v2489 = vsel %vm2452, %v2431, %v2488
    %v2490 = vsel %vm2454, %v2439, %v2489
    %v2491 = vsel %vm2442, %v2392, %v2384
    %v2492 = vsel %vm2444, %v2400, %v2491
    %v2493 = vsel %vm2446, %v2408, %v2492
    %v2494 = vsel %vm2448, %v2416, %v2493
    %v2495 = vsel %vm2450, %v2424, %v2494
    %v2496 = vsel %vm2452, %v2432, %v2495
    %v2497 = vsel %vm2454, %v2440, %v2496
    %v2498 = vsel %vm2442, %v2393, %v2385
    %v2499 = vsel %vm2444, %v2401, %v2498
    %v2500 = vsel %vm2446, %v2409, %v2499
    %v2501 = vsel %vm2448, %v2417, %v2500
    %v2502 = vsel %vm2450, %v2425, %v2501
    %v2503 = vsel %vm2452, %v2433, %v2502
    %v2504 = vsel %vm2454, %v2441, %v2503
    %v2505 = vpack.c.b16 %v2462, %v2455
    %v2506 = vpack.c.b16 %v2476, %v2469
    %v2507 = vpack.c.b16 %v2490, %v2483
    %v2508 = vpack.c.b16 %v2504, %v2497
    %2513 = vst [vmem:[#allocation10] sm:$0xff] %v2505
    %2514 = vst [vmem:[#allocation10 + $0x8] sm:$0xff] %v2506
    %2515 = vst [vmem:[#allocation10 + $0x10] sm:$0xff] %v2507
    %2516 = vst [vmem:[#allocation10 + $0x18] sm:$0xff] %v2508
    // Predicated region
    $region46: #{tpu_custom_call.1} parent=1 // pred_check
      _
    $region47: #{tpu_custom_call.1} parent=1 // pred_check_branch
      %2518 = sbr.rel (0) target = $region49
    $region48: #{tpu_custom_call.1} parent=1 // pred_region
      %s2520 = ssub.s32 512, 512
      %2521 = vsyncadd [#allocation4], %s2520
      %s2523 = sshll.u32 [#allocation10], 4
      %s2524 = int_to_ptr.vmem [resolvable:$true] %s2523
      %2526 = dma.vmem_to_hbm [thread:$0]  %s2524, 512, %s7, [#allocation4]
    $region49: #{tpu_custom_call.1} parent=1 // pred_fallthru
      _
    // Predicated region
    $region50: #{tpu_custom_call.1} parent=1 // pred_check
      _
    $region51: #{tpu_custom_call.1} parent=1 // pred_check_branch
      %2528 = sbr.rel (0) target = $region53
    $region52: #{tpu_custom_call.1} parent=1 // pred_region
      %2529 = dma.done [#allocation4], 512
    $region53: #{tpu_custom_call.1} parent=1 // pred_fallthru
      _
    %2530 = vsyncpa [#allocation3], 1
    %2531 = vsyncpa [#allocation6], 1
    %2532 = vsyncpa [#allocation9], 1
    %2533 = vsyncpa [#allocation4], 1

</llo_original>
